<compile_context>
chip_gen: v5e
topology: v5e:2x2
jax: 0.10.0
libtpu: 0.0.40
codegen_flags: <defaults>
</compile_context>

<pallas_src>
import jax
import jax.numpy as jnp
import numpy as np
from jax.experimental import pallas as pl
from jax.experimental.pallas import tpu as pltpu

# --- small, MXU/lane-friendly shapes consistent with the module's structure ---
INPUT_DIM = 128
HIDDEN_DIM = 256
LATENT_DIM = 256
HEAD_NUM = 2
OUTPUT_DIM = 128
D_HEAD = HIDDEN_DIM // HEAD_NUM    # per-head input dim of FC_mean / FC_var
L_HEAD = LATENT_DIM // HEAD_NUM    # per-head output dim of FC_mean / FC_var

BATCH = 512       # total rows processed in __main__
TILE_B = 256      # rows per grid step -> 2 parallel steps at BATCH=512


def _leaky(v):
    # nn.LeakyReLU(0.2)
    return jnp.where(v >= 0, v, 0.2 * v)


def mog_vae_kernel(
    x_ref, eps_ref,
    w_in_ref, b_in_ref, w_in2_ref, b_in2_ref,
    w_mv_ref, b_mv_ref,
    w_h_ref, b_h_ref, w_h2_ref, b_h2_ref, w_out_ref, b_out_ref,
    prob_ref, mean_ref, logvar_ref,
):
    # ---------------- Encoder ----------------
    x = x_ref[...]                                                     # (TB, IN)
    h = _leaky(jnp.dot(x, w_in_ref[...],
                       preferred_element_type=jnp.float32) + b_in_ref[...])
    h = _leaky(jnp.dot(h, w_in2_ref[...],
                       preferred_element_type=jnp.float32) + b_in2_ref[...])

    # FC_mean / FC_var share weights across heads. Apply the shared
    # (D_HEAD, 2*L_HEAD) weight [w_mean | w_var] per head on 128-lane-aligned
    # slices of h -- no zero-padded block-diagonal, no reshape across (8,128)
    # tiles, and the per-head (TB, 2*L_HEAD) intermediate stays narrow.
    w_mv = w_mv_ref[...]                                               # (D_HEAD, 2*L_HEAD)
    b_mv = b_mv_ref[...]                                               # (1, 2*L_HEAD)
    eps = eps_ref[...]                                                 # (TB, LATENT)

    z_parts = []
    for hd in range(HEAD_NUM):                                         # static, small
        h_hd = h[:, hd * D_HEAD:(hd + 1) * D_HEAD]                     # (TB, D_HEAD)
        mv = jnp.dot(h_hd, w_mv,
                     preferred_element_type=jnp.float32) + b_mv        # (TB, 2*L_HEAD)
        m = mv[:, :L_HEAD]                                             # lane-aligned slices
        lv = mv[:, L_HEAD:]
        # reparameterization: z = mean + exp(0.5*logvar) * eps
        e = eps[:, hd * L_HEAD:(hd + 1) * L_HEAD]
        z_parts.append(m + jnp.exp(0.5 * lv) * e)
        # lane-dense 128-wide stores straight into the output tiles
        mean_ref[:, hd * L_HEAD:(hd + 1) * L_HEAD] = m
        logvar_ref[:, hd * L_HEAD:(hd + 1) * L_HEAD] = lv

    z = jnp.concatenate(z_parts, axis=1)                               # (TB, LATENT), 128-aligned

    # ---------------- Decoder ----------------
    d = _leaky(jnp.dot(z, w_h_ref[...],
                       preferred_element_type=jnp.float32) + b_h_ref[...])
    d = _leaky(jnp.dot(d, w_h2_ref[...],
                       preferred_element_type=jnp.float32) + b_h2_ref[...])
    prob = jnp.dot(d, w_out_ref[...],
                   preferred_element_type=jnp.float32) + b_out_ref[...]
    # NOTE: reference MoG_VAE decoder returns raw logits (no sigmoid) - kept as-is.
    prob_ref[...] = prob                                               # lane-dense store


def _resident(shape):
    """Full-array block + constant index_map: DMA'd once, VMEM-resident across steps."""
    return pl.BlockSpec(shape, lambda i: (0,) * len(shape))


def _cost_estimate(batch):
    matmul_flops = 2 * batch * (
        INPUT_DIM * HIDDEN_DIM                 # FC_input
        + HIDDEN_DIM * HIDDEN_DIM              # FC_input2
        + HEAD_NUM * D_HEAD * 2 * L_HEAD       # FC_mean/FC_var (shared, per head)
        + LATENT_DIM * HIDDEN_DIM              # FC_hidden
        + HIDDEN_DIM * HIDDEN_DIM              # FC_hidden2
        + HIDDEN_DIM * OUTPUT_DIM)             # FC_output
    weight_bytes = 4 * (
        INPUT_DIM * HIDDEN_DIM + HIDDEN_DIM
        + HIDDEN_DIM * HIDDEN_DIM + HIDDEN_DIM
        + D_HEAD * 2 * L_HEAD + 2 * L_HEAD
        + LATENT_DIM * HIDDEN_DIM + HIDDEN_DIM
        + HIDDEN_DIM * HIDDEN_DIM + HIDDEN_DIM
        + HIDDEN_DIM * OUTPUT_DIM + OUTPUT_DIM)
    act_bytes = 4 * batch * (INPUT_DIM + LATENT_DIM       # inputs: x, eps
                             + OUTPUT_DIM + 2 * LATENT_DIM)  # outputs: prob, mean, logvar
    return pl.CostEstimate(flops=int(matmul_flops),
                           transcendentals=int(batch * LATENT_DIM),
                           bytes_accessed=int(weight_bytes + act_bytes))


def prepare_weights(params):
    """One-time (outside jit) fold of the shared-per-head FC_mean / FC_var into a
    single (D_HEAD, 2*L_HEAD) weight [w_mean | w_var]."""
    (w_in, b_in, w_in2, b_in2, w_mean, b_mean, w_var, b_var,
     w_h, b_h, w_h2, b_h2, w_out, b_out) = params
    w_mv = jnp.concatenate([w_mean, w_var], axis=1)        # (D_HEAD, 2*L_HEAD)
    b_mv = jnp.concatenate([b_mean, b_var], axis=1)        # (1, 2*L_HEAD)
    return (w_in, b_in, w_in2, b_in2, w_mv, b_mv,
            w_h, b_h, w_h2, b_h2, w_out, b_out)


def mog_vae_forward(x, eps, weights):
    """Fused MoG_VAE forward. `weights` comes from prepare_weights().
    Returns (prob_embd, mean, log_var) with mean/log_var in (b, h, d)."""
    batch = x.shape[0]
    assert batch % TILE_B == 0

    eps2d = eps.reshape(batch, LATENT_DIM)   # 'b h d -> b (h d)', matches randn_like(log_var)

    prob, mean_flat, logvar_flat = pl.pallas_call(
        mog_vae_kernel,
        grid=(batch // TILE_B,),
        in_specs=[
            pl.BlockSpec((TILE_B, INPUT_DIM), lambda i: (i, 0)),
            pl.BlockSpec((TILE_B, LATENT_DIM), lambda i: (i, 0)),
        ] + [_resident(w.shape) for w in weights],
        out_specs=(
            pl.BlockSpec((TILE_B, OUTPUT_DIM), lambda i: (i, 0)),
            pl.BlockSpec((TILE_B, LATENT_DIM), lambda i: (i, 0)),
            pl.BlockSpec((TILE_B, LATENT_DIM), lambda i: (i, 0)),
        ),
        out_shape=(
            jax.ShapeDtypeStruct((batch, OUTPUT_DIM), jnp.float32),
            jax.ShapeDtypeStruct((batch, LATENT_DIM), jnp.float32),
            jax.ShapeDtypeStruct((batch, LATENT_DIM), jnp.float32),
        ),
        compiler_params=pltpu.CompilerParams(
            dimension_semantics=("parallel",)),   # batch axis -> both TCs on v7x
        cost_estimate=_cost_estimate(batch),
    )(x, eps2d, *weights)

    # glue: restore the 'b h d' shape PyTorch returns for (mean, log_var)
    mean = mean_flat.reshape(batch, HEAD_NUM, L_HEAD)
    log_var = logvar_flat.reshape(batch, HEAD_NUM, L_HEAD)
    return prob, mean, log_var


def mog_vae_reference(x, eps, params):
    """Pure-JAX reference mirroring the PyTorch module (for correctness check)."""
    (w_in, b_in, w_in2, b_in2, w_mean, b_mean, w_var, b_var,
     w_h, b_h, w_h2, b_h2, w_out, b_out) = params
    h = _leaky(x @ w_in + b_in)
    h = _leaky(h @ w_in2 + b_in2)
    hh = h.reshape(x.shape[0], HEAD_NUM, D_HEAD)            # 'b (h d) -> b h d'
    mean = hh @ w_mean + b_mean
    log_var = hh @ w_var + b_var
    z = mean + jnp.exp(0.5 * log_var) * eps                 # reparameterization
    z = z.reshape(x.shape[0], LATENT_DIM)                   # 'b h d -> b (h d)'
    d = _leaky(z @ w_h + b_h)
    d = _leaky(d @ w_h2 + b_h2)
    prob = d @ w_out + b_out
    return prob, mean, log_var


def _init_linear(key, fan_in, fan_out):
    """Deterministic PyTorch-style init; weight returned pre-transposed (in, out)."""
    kw, kb = jax.random.split(key)
    bound = 1.0 / jnp.sqrt(float(fan_in))
    w = jax.random.uniform(kw, (fan_in, fan_out), jnp.float32, -bound, bound)
    b = jax.random.uniform(kb, (1, fan_out), jnp.float32, -bound, bound)
    return w, b


def make_params(key):
    keys = jax.random.split(key, 7)
    w_in, b_in = _init_linear(keys[0], INPUT_DIM, HIDDEN_DIM)      # Encoder.FC_input
    w_in2, b_in2 = _init_linear(keys[1], HIDDEN_DIM, HIDDEN_DIM)   # Encoder.FC_input2
    w_mean, b_mean = _init_linear(keys[2], D_HEAD, L_HEAD)         # Encoder.FC_mean
    w_var, b_var = _init_linear(keys[3], D_HEAD, L_HEAD)           # Encoder.FC_var
    w_h, b_h = _init_linear(keys[4], LATENT_DIM, HIDDEN_DIM)       # Decoder.FC_hidden
    w_h2, b_h2 = _init_linear(keys[5], HIDDEN_DIM, HIDDEN_DIM)     # Decoder.FC_hidden2
    w_out, b_out = _init_linear(keys[6], HIDDEN_DIM, OUTPUT_DIM)   # Decoder.FC_output
    return (w_in, b_in, w_in2, b_in2, w_mean, b_mean, w_var, b_var,
            w_h, b_h, w_h2, b_h2, w_out, b_out)


if __name__ == "__main__":
    key = jax.random.PRNGKey(0)
    k_x, k_eps, k_params = jax.random.split(key, 3)

    x = jax.random.normal(k_x, (BATCH, INPUT_DIM), jnp.float32)
    # epsilon ~ randn_like(log_var): (b, h, d), generated deterministically in the wrapper
    eps = jax.random.normal(k_eps, (BATCH, HEAD_NUM, L_HEAD), jnp.float32)
    params = make_params(k_params)

    # one-time weight fold, OUTSIDE the jitted forward (perf-review item)
    weights = jax.block_until_ready(prepare_weights(params))

    fwd = jax.jit(mog_vae_forward)
    prob_embd, mean, log_var = fwd(x, eps, weights)
    jax.block_until_ready((prob_embd, mean, log_var))

    assert prob_embd.shape == (BATCH, OUTPUT_DIM)
    assert mean.shape == (BATCH, HEAD_NUM, L_HEAD)
    assert log_var.shape == (BATCH, HEAD_NUM, L_HEAD)

    # correctness: compare against pure-JAX reference of the PyTorch forward
    prob_r, mean_r, logvar_r = jax.jit(mog_vae_reference)(x, eps, params)
    jax.block_until_ready((prob_r, mean_r, logvar_r))
    np.testing.assert_allclose(np.asarray(mean), np.asarray(mean_r), rtol=2e-3, atol=2e-3)
    np.testing.assert_allclose(np.asarray(log_var), np.asarray(logvar_r), rtol=2e-3, atol=2e-3)
    np.testing.assert_allclose(np.asarray(prob_embd), np.asarray(prob_r), rtol=2e-3, atol=2e-3)

    print("KERNEL_OK")
</pallas_src>

<mosaic_0001>
module attributes {stable_mosaic.version = 11 : i64} {
  func.func @mog_vae_kernel(%arg0: i32, %arg1: memref<256x128xf32, #tpu.memory_space<vmem>>, %arg2: memref<256x256xf32, #tpu.memory_space<vmem>>, %arg3: memref<128x256xf32, #tpu.memory_space<vmem>>, %arg4: memref<1x256xf32, #tpu.memory_space<vmem>>, %arg5: memref<256x256xf32, #tpu.memory_space<vmem>>, %arg6: memref<1x256xf32, #tpu.memory_space<vmem>>, %arg7: memref<128x256xf32, #tpu.memory_space<vmem>>, %arg8: memref<1x256xf32, #tpu.memory_space<vmem>>, %arg9: memref<256x256xf32, #tpu.memory_space<vmem>>, %arg10: memref<1x256xf32, #tpu.memory_space<vmem>>, %arg11: memref<256x256xf32, #tpu.memory_space<vmem>>, %arg12: memref<1x256xf32, #tpu.memory_space<vmem>>, %arg13: memref<256x128xf32, #tpu.memory_space<vmem>>, %arg14: memref<1x128xf32, #tpu.memory_space<vmem>>, %arg15: memref<256x128xf32, #tpu.memory_space<vmem>>, %arg16: memref<256x256xf32, #tpu.memory_space<vmem>>, %arg17: memref<256x256xf32, #tpu.memory_space<vmem>>) attributes {dimension_semantics = [#tpu.dimension_semantics<parallel>], iteration_bounds = array<i64: 2>, scalar_prefetch = 0 : i64, scratch_operands = 0 : i64, tpu.core_type = #tpu.core_type<tc>, window_params = [{transform_indices = @transform_0, window_bounds = array<i64: 256, 128>}, {transform_indices = @transform_1, window_bounds = array<i64: 256, 256>}, {pipeline_mode = #tpu.pipeline_mode<synchronous>, transform_indices = @transform_2, window_bounds = array<i64: 128, 256>}, {pipeline_mode = #tpu.pipeline_mode<synchronous>, transform_indices = @transform_3, window_bounds = array<i64: 1, 256>}, {pipeline_mode = #tpu.pipeline_mode<synchronous>, transform_indices = @transform_4, window_bounds = array<i64: 256, 256>}, {pipeline_mode = #tpu.pipeline_mode<synchronous>, transform_indices = @transform_5, window_bounds = array<i64: 1, 256>}, {pipeline_mode = #tpu.pipeline_mode<synchronous>, transform_indices = @transform_6, window_bounds = array<i64: 128, 256>}, {pipeline_mode = #tpu.pipeline_mode<synchronous>, transform_indices = @transform_7, window_bounds = array<i64: 1, 256>}, {pipeline_mode = #tpu.pipeline_mode<synchronous>, transform_indices = @transform_8, window_bounds = array<i64: 256, 256>}, {pipeline_mode = #tpu.pipeline_mode<synchronous>, transform_indices = @transform_9, window_bounds = array<i64: 1, 256>}, {pipeline_mode = #tpu.pipeline_mode<synchronous>, transform_indices = @transform_10, window_bounds = array<i64: 256, 256>}, {pipeline_mode = #tpu.pipeline_mode<synchronous>, transform_indices = @transform_11, window_bounds = array<i64: 1, 256>}, {pipeline_mode = #tpu.pipeline_mode<synchronous>, transform_indices = @transform_12, window_bounds = array<i64: 256, 128>}, {pipeline_mode = #tpu.pipeline_mode<synchronous>, transform_indices = @transform_13, window_bounds = array<i64: 1, 128>}, {transform_indices = @transform_14, window_bounds = array<i64: 256, 128>}, {transform_indices = @transform_15, window_bounds = array<i64: 256, 256>}, {transform_indices = @transform_16, window_bounds = array<i64: 256, 256>}]} {
    %c0 = arith.constant 0 : index
    %c0_0 = arith.constant 0 : index
    %0 = vector.load %arg1[%c0, %c0_0] : memref<256x128xf32, #tpu.memory_space<vmem>>, vector<256x128xf32>
    %c0_1 = arith.constant 0 : index
    %c0_2 = arith.constant 0 : index
    %1 = vector.load %arg3[%c0_1, %c0_2] : memref<128x256xf32, #tpu.memory_space<vmem>>, vector<128x256xf32>
    %cst = arith.constant dense<0.000000e+00> : vector<256x256xf32>
    %2 = tpu.matmul %0, %1, %cst {dimension_numbers = #tpu.dot_dimension_numbers<[1], [0], [0], [1], [0, 0, 1, 1], [], []>} : vector<256x128xf32>, vector<128x256xf32>, vector<256x256xf32> -> vector<256x256xf32>
    %c0_3 = arith.constant 0 : index
    %c0_4 = arith.constant 0 : index
    %3 = vector.load %arg4[%c0_3, %c0_4] : memref<1x256xf32, #tpu.memory_space<vmem>>, vector<1x256xf32>
    %4 = vector.broadcast %3 : vector<1x256xf32> to vector<256x256xf32>
    %5 = arith.addf %2, %4 : vector<256x256xf32>
    %cst_5 = arith.constant 0.000000e+00 : f32
    %6 = vector.broadcast %cst_5 : f32 to vector<256x256xf32>
    %7 = arith.cmpf oge, %5, %6 : vector<256x256xf32>
    %cst_6 = arith.constant 2.000000e-01 : f32
    %8 = vector.broadcast %cst_6 : f32 to vector<256x256xf32>
    %9 = arith.mulf %8, %5 : vector<256x256xf32>
    %10 = arith.select %7, %5, %9 : vector<256x256xi1>, vector<256x256xf32>
    %c0_7 = arith.constant 0 : index
    %c0_8 = arith.constant 0 : index
    %11 = vector.load %arg5[%c0_7, %c0_8] : memref<256x256xf32, #tpu.memory_space<vmem>>, vector<256x256xf32>
    %cst_9 = arith.constant dense<0.000000e+00> : vector<256x256xf32>
    %12 = tpu.matmul %10, %11, %cst_9 {dimension_numbers = #tpu.dot_dimension_numbers<[1], [0], [0], [1], [0, 0, 1, 1], [], []>} : vector<256x256xf32>, vector<256x256xf32>, vector<256x256xf32> -> vector<256x256xf32>
    %c0_10 = arith.constant 0 : index
    %c0_11 = arith.constant 0 : index
    %13 = vector.load %arg6[%c0_10, %c0_11] : memref<1x256xf32, #tpu.memory_space<vmem>>, vector<1x256xf32>
    %14 = vector.broadcast %13 : vector<1x256xf32> to vector<256x256xf32>
    %15 = arith.addf %12, %14 : vector<256x256xf32>
    %cst_12 = arith.constant 0.000000e+00 : f32
    %16 = vector.broadcast %cst_12 : f32 to vector<256x256xf32>
    %17 = arith.cmpf oge, %15, %16 : vector<256x256xf32>
    %cst_13 = arith.constant 2.000000e-01 : f32
    %18 = vector.broadcast %cst_13 : f32 to vector<256x256xf32>
    %19 = arith.mulf %18, %15 : vector<256x256xf32>
    %20 = arith.select %17, %15, %19 : vector<256x256xi1>, vector<256x256xf32>
    %c0_14 = arith.constant 0 : index
    %c0_15 = arith.constant 0 : index
    %21 = vector.load %arg7[%c0_14, %c0_15] : memref<128x256xf32, #tpu.memory_space<vmem>>, vector<128x256xf32>
    %c0_16 = arith.constant 0 : index
    %c0_17 = arith.constant 0 : index
    %22 = vector.load %arg8[%c0_16, %c0_17] : memref<1x256xf32, #tpu.memory_space<vmem>>, vector<1x256xf32>
    %c0_18 = arith.constant 0 : index
    %c0_19 = arith.constant 0 : index
    %23 = vector.load %arg2[%c0_18, %c0_19] : memref<256x256xf32, #tpu.memory_space<vmem>>, vector<256x256xf32>
    %24 = vector.extract_strided_slice %20 {offsets = [0, 0], sizes = [256, 128], strides = [1, 1]} : vector<256x256xf32> to vector<256x128xf32>
    %cst_20 = arith.constant dense<0.000000e+00> : vector<256x256xf32>
    %25 = tpu.matmul %24, %21, %cst_20 {dimension_numbers = #tpu.dot_dimension_numbers<[1], [0], [0], [1], [0, 0, 1, 1], [], []>} : vector<256x128xf32>, vector<128x256xf32>, vector<256x256xf32> -> vector<256x256xf32>
    %26 = vector.broadcast %22 : vector<1x256xf32> to vector<256x256xf32>
    %27 = arith.addf %25, %26 : vector<256x256xf32>
    %28 = vector.extract_strided_slice %27 {offsets = [0, 0], sizes = [256, 128], strides = [1, 1]} : vector<256x256xf32> to vector<256x128xf32>
    %29 = vector.extract_strided_slice %27 {offsets = [0, 128], sizes = [256, 128], strides = [1, 1]} : vector<256x256xf32> to vector<256x128xf32>
    %30 = vector.extract_strided_slice %23 {offsets = [0, 0], sizes = [256, 128], strides = [1, 1]} : vector<256x256xf32> to vector<256x128xf32>
    %cst_21 = arith.constant 5.000000e-01 : f32
    %31 = vector.broadcast %cst_21 : f32 to vector<256x128xf32>
    %32 = arith.mulf %31, %29 : vector<256x128xf32>
    %33 = math.exp %32 : vector<256x128xf32>
    %34 = arith.mulf %33, %30 : vector<256x128xf32>
    %35 = arith.addf %28, %34 : vector<256x128xf32>
    %c0_22 = arith.constant 0 : index
    %c0_23 = arith.constant 0 : index
    %36 = vector.load %arg16[%c0_22, %c0_23] : memref<256x256xf32, #tpu.memory_space<vmem>>, vector<256x128xf32>
    tpu.vector_store %arg16[%c0_22, %c0_23], %28 {strides = array<i32>} : memref<256x256xf32, #tpu.memory_space<vmem>>, vector<256x128xf32>,
    %c0_24 = arith.constant 0 : index
    %c0_25 = arith.constant 0 : index
    %37 = vector.load %arg17[%c0_24, %c0_25] : memref<256x256xf32, #tpu.memory_space<vmem>>, vector<256x128xf32>
    tpu.vector_store %arg17[%c0_24, %c0_25], %29 {strides = array<i32>} : memref<256x256xf32, #tpu.memory_space<vmem>>, vector<256x128xf32>,
    %38 = vector.extract_strided_slice %20 {offsets = [0, 128], sizes = [256, 128], strides = [1, 1]} : vector<256x256xf32> to vector<256x128xf32>
    %cst_26 = arith.constant dense<0.000000e+00> : vector<256x256xf32>
    %39 = tpu.matmul %38, %21, %cst_26 {dimension_numbers = #tpu.dot_dimension_numbers<[1], [0], [0], [1], [0, 0, 1, 1], [], []>} : vector<256x128xf32>, vector<128x256xf32>, vector<256x256xf32> -> vector<256x256xf32>
    %40 = vector.broadcast %22 : vector<1x256xf32> to vector<256x256xf32>
    %41 = arith.addf %39, %40 : vector<256x256xf32>
    %42 = vector.extract_strided_slice %41 {offsets = [0, 0], sizes = [256, 128], strides = [1, 1]} : vector<256x256xf32> to vector<256x128xf32>
    %43 = vector.extract_strided_slice %41 {offsets = [0, 128], sizes = [256, 128], strides = [1, 1]} : vector<256x256xf32> to vector<256x128xf32>
    %44 = vector.extract_strided_slice %23 {offsets = [0, 128], sizes = [256, 128], strides = [1, 1]} : vector<256x256xf32> to vector<256x128xf32>
    %cst_27 = arith.constant 5.000000e-01 : f32
    %45 = vector.broadcast %cst_27 : f32 to vector<256x128xf32>
    %46 = arith.mulf %45, %43 : vector<256x128xf32>
    %47 = math.exp %46 : vector<256x128xf32>
    %48 = arith.mulf %47, %44 : vector<256x128xf32>
    %49 = arith.addf %42, %48 : vector<256x128xf32>
    %c0_28 = arith.constant 0 : index
    %c128 = arith.constant 128 : index
    %50 = vector.load %arg16[%c0_28, %c128] : memref<256x256xf32, #tpu.memory_space<vmem>>, vector<256x128xf32>
    tpu.vector_store %arg16[%c0_28, %c128], %42 {strides = array<i32>} : memref<256x256xf32, #tpu.memory_space<vmem>>, vector<256x128xf32>,
    %c0_29 = arith.constant 0 : index
    %c128_30 = arith.constant 128 : index
    %51 = vector.load %arg17[%c0_29, %c128_30] : memref<256x256xf32, #tpu.memory_space<vmem>>, vector<256x128xf32>
    tpu.vector_store %arg17[%c0_29, %c128_30], %43 {strides = array<i32>} : memref<256x256xf32, #tpu.memory_space<vmem>>, vector<256x128xf32>,
    %52 = tpu.concatenate %35, %49 in 1 : vector<256x128xf32>, vector<256x128xf32> -> vector<256x256xf32>
    %c0_31 = arith.constant 0 : index
    %c0_32 = arith.constant 0 : index
    %53 = vector.load %arg9[%c0_31, %c0_32] : memref<256x256xf32, #tpu.memory_space<vmem>>, vector<256x256xf32>
    %cst_33 = arith.constant dense<0.000000e+00> : vector<256x256xf32>
    %54 = tpu.matmul %52, %53, %cst_33 {dimension_numbers = #tpu.dot_dimension_numbers<[1], [0], [0], [1], [0, 0, 1, 1], [], []>} : vector<256x256xf32>, vector<256x256xf32>, vector<256x256xf32> -> vector<256x256xf32>
    %c0_34 = arith.constant 0 : index
    %c0_35 = arith.constant 0 : index
    %55 = vector.load %arg10[%c0_34, %c0_35] : memref<1x256xf32, #tpu.memory_space<vmem>>, vector<1x256xf32>
    %56 = vector.broadcast %55 : vector<1x256xf32> to vector<256x256xf32>
    %57 = arith.addf %54, %56 : vector<256x256xf32>
    %cst_36 = arith.constant 0.000000e+00 : f32
    %58 = vector.broadcast %cst_36 : f32 to vector<256x256xf32>
    %59 = arith.cmpf oge, %57, %58 : vector<256x256xf32>
    %cst_37 = arith.constant 2.000000e-01 : f32
    %60 = vector.broadcast %cst_37 : f32 to vector<256x256xf32>
    %61 = arith.mulf %60, %57 : vector<256x256xf32>
    %62 = arith.select %59, %57, %61 : vector<256x256xi1>, vector<256x256xf32>
    %c0_38 = arith.constant 0 : index
    %c0_39 = arith.constant 0 : index
    %63 = vector.load %arg11[%c0_38, %c0_39] : memref<256x256xf32, #tpu.memory_space<vmem>>, vector<256x256xf32>
    %cst_40 = arith.constant dense<0.000000e+00> : vector<256x256xf32>
    %64 = tpu.matmul %62, %63, %cst_40 {dimension_numbers = #tpu.dot_dimension_numbers<[1], [0], [0], [1], [0, 0, 1, 1], [], []>} : vector<256x256xf32>, vector<256x256xf32>, vector<256x256xf32> -> vector<256x256xf32>
    %c0_41 = arith.constant 0 : index
    %c0_42 = arith.constant 0 : index
    %65 = vector.load %arg12[%c0_41, %c0_42] : memref<1x256xf32, #tpu.memory_space<vmem>>, vector<1x256xf32>
    %66 = vector.broadcast %65 : vector<1x256xf32> to vector<256x256xf32>
    %67 = arith.addf %64, %66 : vector<256x256xf32>
    %cst_43 = arith.constant 0.000000e+00 : f32
    %68 = vector.broadcast %cst_43 : f32 to vector<256x256xf32>
    %69 = arith.cmpf oge, %67, %68 : vector<256x256xf32>
    %cst_44 = arith.constant 2.000000e-01 : f32
    %70 = vector.broadcast %cst_44 : f32 to vector<256x256xf32>
    %71 = arith.mulf %70, %67 : vector<256x256xf32>
    %72 = arith.select %69, %67, %71 : vector<256x256xi1>, vector<256x256xf32>
    %c0_45 = arith.constant 0 : index
    %c0_46 = arith.constant 0 : index
    %73 = vector.load %arg13[%c0_45, %c0_46] : memref<256x128xf32, #tpu.memory_space<vmem>>, vector<256x128xf32>
    %cst_47 = arith.constant dense<0.000000e+00> : vector<256x128xf32>
    %74 = tpu.matmul %72, %73, %cst_47 {dimension_numbers = #tpu.dot_dimension_numbers<[1], [0], [0], [1], [0, 0, 1, 1], [], []>} : vector<256x256xf32>, vector<256x128xf32>, vector<256x128xf32> -> vector<256x128xf32>
    %c0_48 = arith.constant 0 : index
    %c0_49 = arith.constant 0 : index
    %75 = vector.load %arg14[%c0_48, %c0_49] : memref<1x128xf32, #tpu.memory_space<vmem>>, vector<1x128xf32>
    %76 = vector.broadcast %75 : vector<1x128xf32> to vector<256x128xf32>
    %77 = arith.addf %74, %76 : vector<256x128xf32>
    %c0_50 = arith.constant 0 : index
    %c0_51 = arith.constant 0 : index
    %78 = vector.load %arg15[%c0_50, %c0_51] : memref<256x128xf32, #tpu.memory_space<vmem>>, vector<256x128xf32>
    tpu.vector_store %arg15[%c0_50, %c0_51], %77 {strides = array<i32>} : memref<256x128xf32, #tpu.memory_space<vmem>>, vector<256x128xf32>,
    return
  }
  func.func @transform_0(%arg0: i32) -> (i32, i32) {
    %c0_i32 = arith.constant 0 : i32
    %c0_i32_0 = arith.constant 0 : i32
    return %arg0, %c0_i32 : i32, i32
  }
  func.func @transform_1(%arg0: i32) -> (i32, i32) {
    %c0_i32 = arith.constant 0 : i32
    %c0_i32_0 = arith.constant 0 : i32
    return %arg0, %c0_i32 : i32, i32
  }
  func.func @transform_2(%arg0: i32) -> (i32, i32) {
    %c0_i32 = arith.constant 0 : i32
    %c0_i32_0 = arith.constant 0 : i32
    %c0_i32_1 = arith.constant 0 : i32
    return %c0_i32, %c0_i32_0 : i32, i32
  }
  func.func @transform_3(%arg0: i32) -> (i32, i32) {
    %c0_i32 = arith.constant 0 : i32
    %c0_i32_0 = arith.constant 0 : i32
    %c0_i32_1 = arith.constant 0 : i32
    return %c0_i32, %c0_i32_0 : i32, i32
  }
  func.func @transform_4(%arg0: i32) -> (i32, i32) {
    %c0_i32 = arith.constant 0 : i32
    %c0_i32_0 = arith.constant 0 : i32
    %c0_i32_1 = arith.constant 0 : i32
    return %c0_i32, %c0_i32_0 : i32, i32
  }
  func.func @transform_5(%arg0: i32) -> (i32, i32) {
    %c0_i32 = arith.constant 0 : i32
    %c0_i32_0 = arith.constant 0 : i32
    %c0_i32_1 = arith.constant 0 : i32
    return %c0_i32, %c0_i32_0 : i32, i32
  }
  func.func @transform_6(%arg0: i32) -> (i32, i32) {
    %c0_i32 = arith.constant 0 : i32
    %c0_i32_0 = arith.constant 0 : i32
    %c0_i32_1 = arith.constant 0 : i32
    return %c0_i32, %c0_i32_0 : i32, i32
  }
  func.func @transform_7(%arg0: i32) -> (i32, i32) {
    %c0_i32 = arith.constant 0 : i32
    %c0_i32_0 = arith.constant 0 : i32
    %c0_i32_1 = arith.constant 0 : i32
    return %c0_i32, %c0_i32_0 : i32, i32
  }
  func.func @transform_8(%arg0: i32) -> (i32, i32) {
    %c0_i32 = arith.constant 0 : i32
    %c0_i32_0 = arith.constant 0 : i32
    %c0_i32_1 = arith.constant 0 : i32
    return %c0_i32, %c0_i32_0 : i32, i32
  }
  func.func @transform_9(%arg0: i32) -> (i32, i32) {
    %c0_i32 = arith.constant 0 : i32
    %c0_i32_0 = arith.constant 0 : i32
    %c0_i32_1 = arith.constant 0 : i32
    return %c0_i32, %c0_i32_0 : i32, i32
  }
  func.func @transform_10(%arg0: i32) -> (i32, i32) {
    %c0_i32 = arith.constant 0 : i32
    %c0_i32_0 = arith.constant 0 : i32
    %c0_i32_1 = arith.constant 0 : i32
    return %c0_i32, %c0_i32_0 : i32, i32
  }
  func.func @transform_11(%arg0: i32) -> (i32, i32) {
    %c0_i32 = arith.constant 0 : i32
    %c0_i32_0 = arith.constant 0 : i32
    %c0_i32_1 = arith.constant 0 : i32
    return %c0_i32, %c0_i32_0 : i32, i32
  }
  func.func @transform_12(%arg0: i32) -> (i32, i32) {
    %c0_i32 = arith.constant 0 : i32
    %c0_i32_0 = arith.constant 0 : i32
    %c0_i32_1 = arith.constant 0 : i32
    return %c0_i32, %c0_i32_0 : i32, i32
  }
  func.func @transform_13(%arg0: i32) -> (i32, i32) {
    %c0_i32 = arith.constant 0 : i32
    %c0_i32_0 = arith.constant 0 : i32
    %c0_i32_1 = arith.constant 0 : i32
    return %c0_i32, %c0_i32_0 : i32, i32
  }
  func.func @transform_14(%arg0: i32) -> (i32, i32) {
    %c0_i32 = arith.constant 0 : i32
    %c0_i32_0 = arith.constant 0 : i32
    return %arg0, %c0_i32 : i32, i32
  }
  func.func @transform_15(%arg0: i32) -> (i32, i32) {
    %c0_i32 = arith.constant 0 : i32
    %c0_i32_0 = arith.constant 0 : i32
    return %arg0, %c0_i32 : i32, i32
  }
  func.func @transform_16(%arg0: i32) -> (i32, i32) {
    %c0_i32 = arith.constant 0 : i32
    %c0_i32_0 = arith.constant 0 : i32
    return %arg0, %c0_i32 : i32, i32
  }
}

</mosaic_0001>

<llo_original>
// kernel: mog_vae_forward.1
$region0: #{mog_vae_forward.1}
  #allocation0 [shape = 'u32[]', space=smem, size = 0x4, offset = 0x4, fixed_abs, tag = 'smem constant byte address 0x4 - core index']
  #allocation1 [shape = 'u32[72,128]{1,0:T(1,128)}', space=vmem, size = 0x9000, scoped, tag = 'internal scratch']
  %s0 = inlined_call_operand.vmem [shape: f32[512,128], index: 0, kind: input, shape index: {}]
  %s1 = inlined_call_operand.vmem [shape: f32[512,256], index: 1, kind: input, shape index: {}]
  %s2 = inlined_call_operand.hbm [shape: f32[128,256], index: 2, kind: input, shape index: {}]
  %s3 = inlined_call_operand.hbm [shape: f32[1,256], index: 3, kind: input, shape index: {}]
  %s4 = inlined_call_operand.vmem [shape: f32[256,256], index: 4, kind: input, shape index: {}]
  %s5 = inlined_call_operand.hbm [shape: f32[1,256], index: 5, kind: input, shape index: {}]
  %s6 = inlined_call_operand.hbm [shape: f32[128,256], index: 6, kind: input, shape index: {}]
  %s7 = inlined_call_operand.hbm [shape: f32[1,256], index: 7, kind: input, shape index: {}]
  %s8 = inlined_call_operand.vmem [shape: f32[256,256], index: 8, kind: input, shape index: {}]
  %s9 = inlined_call_operand.hbm [shape: f32[1,256], index: 9, kind: input, shape index: {}]
  %s10 = inlined_call_operand.vmem [shape: f32[256,256], index: 10, kind: input, shape index: {}]
  %s11 = inlined_call_operand.hbm [shape: f32[1,256], index: 11, kind: input, shape index: {}]
  %s12 = inlined_call_operand.hbm [shape: f32[256,128], index: 12, kind: input, shape index: {}]
  %s13 = inlined_call_operand.hbm [shape: f32[1,128], index: 13, kind: input, shape index: {}]
  %s14 = inlined_call_operand.hbm [shape: f32[512,128], index: 14, kind: output, shape index: {0}]
  %s15 = inlined_call_operand.vmem [shape: f32[512,256], index: 15, kind: output, shape index: {1}]
  %s16 = inlined_call_operand.vmem [shape: f32[512,256], index: 16, kind: output, shape index: {2}]
  %17 = xla_tuple %s14, %s15, %s16
  %s18 = sld [smem:[#allocation0]]
  $region141: #{mog_vae_forward.1} parent=0
    _
  %s20 = ssub.s32 1, %s18
  %s21 = scalar_select 0, %s20, %s18
  $region1: #{mog_vae_forward.1} parent=0
    #allocation2 [shape = 'u8[131072]{0}', space=vmem, size = 0x20000, scoped, tag = 'input window, operand 2, single buffered']
    #allocation3 [shape = 's32[2]{0}', space=sflag, size = 0x8, scoped, tag = 'scoped memory for mog_vae_forward.1']
    #allocation4 [shape = 's32[2]{0}', space=sflag, size = 0x8, scoped, tag = 'scoped memory for mog_vae_forward.1']
    #allocation5 [shape = 'u8[1024]{0}', space=vmem, size = 0x400, scoped, tag = 'input window, operand 3, single buffered']
    #allocation6 [shape = 's32[1]{0}', space=sflag, size = 0x4, scoped, tag = 'scoped memory for mog_vae_forward.1']
    #allocation7 [shape = 'u8[1024]{0}', space=vmem, size = 0x400, scoped, tag = 'input window, operand 5, single buffered']
    #allocation8 [shape = 'u8[131072]{0}', space=vmem, size = 0x20000, scoped, tag = 'input window, operand 6, single buffered']
    #allocation9 [shape = 's32[1]{0}', space=sflag, size = 0x4, scoped, tag = 'scoped memory for mog_vae_forward.1']
    #allocation10 [shape = 'u8[1024]{0}', space=vmem, size = 0x400, scoped, tag = 'input window, operand 7, single buffered']
    #allocation11 [shape = 'u8[1024]{0}', space=vmem, size = 0x400, scoped, tag = 'input window, operand 9, single buffered']
    #allocation12 [shape = 's32[1]{0}', space=sflag, size = 0x4, scoped, tag = 'scoped memory for mog_vae_forward.1']
    #allocation13 [shape = 'u8[1024]{0}', space=vmem, size = 0x400, scoped, tag = 'input window, operand 11, single buffered']
    #allocation14 [shape = 'u8[131072]{0}', space=vmem, size = 0x20000, scoped, tag = 'input window, operand 12, single buffered']
    #allocation15 [shape = 's32[1]{0}', space=sflag, size = 0x4, scoped, tag = 'scoped memory for mog_vae_forward.1']
    #allocation16 [shape = 'u8[512]{0}', space=vmem, size = 0x400, scoped, tag = 'input window, operand 13, single buffered']
    #allocation17 [shape = 'u8[262144]{0}', space=vmem, size = 0x40000, scoped, tag = 'output window, operand 0']
    %22 = vsyncpa [#allocation3], 0
    %23 = vsyncpa [#allocation6], 0
    %24 = vsyncpa [#allocation9], 0
    %25 = vsyncpa [#allocation12], 0
    %26 = vsyncpa [#allocation15], 0
    %27 = vsyncpa [#allocation4], 0
    %s28 = scalar_lea.sflag [#allocation4], 1
    %29 = vsyncpa %s28, 0
    loop: start=0, step=1, limit=4
    $region2: #{mog_vae_forward.1} parent=1 // loop_pre_header
      _
    $region3: #{mog_vae_forward.1} parent=1 // loop_header
      %s31 = sphi 0, %s35
      %p32 = scmp.ge.s32.totalorder %s31, 4
      %s41 = sphi 0, %s43
      %s44 = sphi 0, %s41
      %s45 = sphi 0, %s44
      %s61 = sphi 0, %s45
      %s67 = sphi 0, %s69
      %s70 = sphi 0, %s67
      %s71 = sphi 0, %s70
      %s87 = sphi 0, %s71
      %s91 = sphi 0, %s91
      %s93 = sphi 0, %s91
      %s94 = sphi 0, %s93
      %s108 = sphi 0, %s94
      %s112 = sphi 0, %s112
      %s114 = sphi 0, %s112
      %s115 = sphi 0, %s114
      %s129 = sphi 0, %s115
      %s133 = sphi 0, %s133
      %s135 = sphi 0, %s133
      %s136 = sphi 0, %s135
      %s150 = sphi 0, %s136
      %s154 = sphi 0, %s154
      %s156 = sphi 0, %s154
      %s157 = sphi 0, %s156
      %s171 = sphi 0, %s157
      %s175 = sphi 0, %s175
      %s177 = sphi 0, %s175
      %s178 = sphi 0, %s177
      %s192 = sphi 0, %s178
      %s196 = sphi 0, %s196
      %s198 = sphi 0, %s196
      %s199 = sphi 0, %s198
      %s213 = sphi 0, %s199
      %s217 = sphi 0, %s217
      %s219 = sphi 0, %s217
      %s220 = sphi 0, %s219
      %s234 = sphi 0, %s220
      %s238 = sphi 0, %s238
      %s240 = sphi 0, %s238
      %s241 = sphi 0, %s240
      %s255 = sphi 0, %s241
      %s259 = sphi 0, %s259
      %s261 = sphi 0, %s259
      %s262 = sphi 0, %s261
      %s276 = sphi 0, %s262
      %s280 = sphi 0, %s280
      %s282 = sphi 0, %s280
      %s283 = sphi 0, %s282
      %s297 = sphi 0, %s283
      %s301 = sphi 0, %s301
      %s303 = sphi 0, %s301
      %s304 = sphi 0, %s303
      %s318 = sphi 0, %s304
      %s322 = sphi 0, %s322
      %s324 = sphi 0, %s322
      %s325 = sphi 0, %s324
      %s339 = sphi 0, %s325
      %s345 = sphi 0, %s347
      %s348 = sphi 0, %s345
      %s349 = sphi 0, %s348
      %s365 = sphi 0, %s349
      %s371 = sphi 0, %s373
      %s374 = sphi 0, %s371
      %s375 = sphi 0, %s374
      %s391 = sphi 0, %s375
      %s397 = sphi 0, %s399
      %s400 = sphi 0, %s397
      %s401 = sphi 0, %s400
      %s417 = sphi 0, %s401
    $region4: #{mog_vae_forward.1} parent=1 // loop_header_branch
      %34 = sbr.rel (%p32) target = $region8
    $region5: #{mog_vae_forward.1} parent=1 // loop_body
      %s36 = ssub.s32 %s31, 1
      %s37 = ssub.s32 %s31, 2
      %s38 = sadd.s32 %s31, 1
      %s39 = ssub.s32 %s31, %s38
      %p40 = scmp.eq.s32.totalorder %s39, 0
      %s42 = sadd.s32 %s41, 1
      %s43 = scalar_select %p40, %s41, %s42
      %p46 = pneg %p40
      %p47 = scmp.eq.s32.totalorder %s31, 1
      %p48 = por %p46, %p47
      %p49 = scmp.ne.s32.totalorder %s41, %s44
      %p50 = scmp.eq.s32.totalorder %s31, 0
      %p51 = por %p49, %p50
      %p52 = scmp.ne.s32.totalorder %s41, %s44
      %p53 = scmp.eq.s32.totalorder %s36, 1
      %p54 = por %p52, %p53
      %p55 = scmp.ne.s32.totalorder %s44, %s45
      %p56 = scmp.eq.s32.totalorder %s36, 0
      %p57 = por %p55, %p56
      %p58 = scmp.ne.s32.totalorder %s44, %s45
      %p59 = scmp.eq.s32.totalorder %s37, 1
      %p60 = por %p58, %p59
      %p62 = scmp.ne.s32.totalorder %s45, %s61
      %p63 = scmp.eq.s32.totalorder %s37, 0
      %p64 = por %p62, %p63
      %s65 = ssub.s32 %s31, %s38
      %p66 = scmp.eq.s32.totalorder %s65, 0
      %s68 = sadd.s32 %s67, 1
      %s69 = scalar_select %p66, %s67, %s68
      %p72 = pneg %p66
      %p73 = scmp.eq.s32.totalorder %s31, 1
      %p74 = por %p72, %p73
      %p75 = scmp.ne.s32.totalorder %s67, %s70
      %p76 = scmp.eq.s32.totalorder %s31, 0
      %p77 = por %p75, %p76
      %p78 = scmp.ne.s32.totalorder %s67, %s70
      %p79 = scmp.eq.s32.totalorder %s36, 1
      %p80 = por %p78, %p79
      %p81 = scmp.ne.s32.totalorder %s70, %s71
      %p82 = scmp.eq.s32.totalorder %s36, 0
      %p83 = por %p81, %p82
      %p84 = scmp.ne.s32.totalorder %s70, %s71
      %p85 = scmp.eq.s32.totalorder %s37, 1
      %p86 = por %p84, %p85
      %p88 = scmp.ne.s32.totalorder %s71, %s87
      %p89 = scmp.eq.s32.totalorder %s37, 0
      %p90 = por %p88, %p89
      %s92 = sadd.s32 %s91, 1
      %p95 = scmp.eq.s32.totalorder %s31, 1
      %p96 = scmp.ne.s32.totalorder %s91, %s93
      %p97 = scmp.eq.s32.totalorder %s31, 0
      %p98 = por %p96, %p97
      %p99 = scmp.ne.s32.totalorder %s91, %s93
      %p100 = scmp.eq.s32.totalorder %s36, 1
      %p101 = por %p99, %p100
      %p102 = scmp.ne.s32.totalorder %s93, %s94
      %p103 = scmp.eq.s32.totalorder %s36, 0
      %p104 = por %p102, %p103
      %p105 = scmp.ne.s32.totalorder %s93, %s94
      %p106 = scmp.eq.s32.totalorder %s37, 1
      %p107 = por %p105, %p106
      %p109 = scmp.ne.s32.totalorder %s94, %s108
      %p110 = scmp.eq.s32.totalorder %s37, 0
      %p111 = por %p109, %p110
      %s113 = sadd.s32 %s112, 1
      %p116 = scmp.eq.s32.totalorder %s31, 1
      %p117 = scmp.ne.s32.totalorder %s112, %s114
      %p118 = scmp.eq.s32.totalorder %s31, 0
      %p119 = por %p117, %p118
      %p120 = scmp.ne.s32.totalorder %s112, %s114
      %p121 = scmp.eq.s32.totalorder %s36, 1
      %p122 = por %p120, %p121
      %p123 = scmp.ne.s32.totalorder %s114, %s115
      %p124 = scmp.eq.s32.totalorder %s36, 0
      %p125 = por %p123, %p124
      %p126 = scmp.ne.s32.totalorder %s114, %s115
      %p127 = scmp.eq.s32.totalorder %s37, 1
      %p128 = por %p126, %p127
      %p130 = scmp.ne.s32.totalorder %s115, %s129
      %p131 = scmp.eq.s32.totalorder %s37, 0
      %p132 = por %p130, %p131
      %s134 = sadd.s32 %s133, 1
      %p137 = scmp.eq.s32.totalorder %s31, 1
      %p138 = scmp.ne.s32.totalorder %s133, %s135
      %p139 = scmp.eq.s32.totalorder %s31, 0
      %p140 = por %p138, %p139
      %p141 = scmp.ne.s32.totalorder %s133, %s135
      %p142 = scmp.eq.s32.totalorder %s36, 1
      %p143 = por %p141, %p142
      %p144 = scmp.ne.s32.totalorder %s135, %s136
      %p145 = scmp.eq.s32.totalorder %s36, 0
      %p146 = por %p144, %p145
      %p147 = scmp.ne.s32.totalorder %s135, %s136
      %p148 = scmp.eq.s32.totalorder %s37, 1
      %p149 = por %p147, %p148
      %p151 = scmp.ne.s32.totalorder %s136, %s150
      %p152 = scmp.eq.s32.totalorder %s37, 0
      %p153 = por %p151, %p152
      %s155 = sadd.s32 %s154, 1
      %p158 = scmp.eq.s32.totalorder %s31, 1
      %p159 = scmp.ne.s32.totalorder %s154, %s156
      %p160 = scmp.eq.s32.totalorder %s31, 0
      %p161 = por %p159, %p160
      %p162 = scmp.ne.s32.totalorder %s154, %s156
      %p163 = scmp.eq.s32.totalorder %s36, 1
      %p164 = por %p162, %p163
      %p165 = scmp.ne.s32.totalorder %s156, %s157
      %p166 = scmp.eq.s32.totalorder %s36, 0
      %p167 = por %p165, %p166
      %p168 = scmp.ne.s32.totalorder %s156, %s157
      %p169 = scmp.eq.s32.totalorder %s37, 1
      %p170 = por %p168, %p169
      %p172 = scmp.ne.s32.totalorder %s157, %s171
      %p173 = scmp.eq.s32.totalorder %s37, 0
      %p174 = por %p172, %p173
      %s176 = sadd.s32 %s175, 1
      %p179 = scmp.eq.s32.totalorder %s31, 1
      %p180 = scmp.ne.s32.totalorder %s175, %s177
      %p181 = scmp.eq.s32.totalorder %s31, 0
      %p182 = por %p180, %p181
      %p183 = scmp.ne.s32.totalorder %s175, %s177
      %p184 = scmp.eq.s32.totalorder %s36, 1
      %p185 = por %p183, %p184
      %p186 = scmp.ne.s32.totalorder %s177, %s178
      %p187 = scmp.eq.s32.totalorder %s36, 0
      %p188 = por %p186, %p187
      %p189 = scmp.ne.s32.totalorder %s177, %s178
      %p190 = scmp.eq.s32.totalorder %s37, 1
      %p191 = por %p189, %p190
      %p193 = scmp.ne.s32.totalorder %s178, %s192
      %p194 = scmp.eq.s32.totalorder %s37, 0
      %p195 = por %p193, %p194
      %s197 = sadd.s32 %s196, 1
      %p200 = scmp.eq.s32.totalorder %s31, 1
      %p201 = scmp.ne.s32.totalorder %s196, %s198
      %p202 = scmp.eq.s32.totalorder %s31, 0
      %p203 = por %p201, %p202
      %p204 = scmp.ne.s32.totalorder %s196, %s198
      %p205 = scmp.eq.s32.totalorder %s36, 1
      %p206 = por %p204, %p205
      %p207 = scmp.ne.s32.totalorder %s198, %s199
      %p208 = scmp.eq.s32.totalorder %s36, 0
      %p209 = por %p207, %p208
      %p210 = scmp.ne.s32.totalorder %s198, %s199
      %p211 = scmp.eq.s32.totalorder %s37, 1
      %p212 = por %p210, %p211
      %p214 = scmp.ne.s32.totalorder %s199, %s213
      %p215 = scmp.eq.s32.totalorder %s37, 0
      %p216 = por %p214, %p215
      %s218 = sadd.s32 %s217, 1
      %p221 = scmp.eq.s32.totalorder %s31, 1
      %p222 = scmp.ne.s32.totalorder %s217, %s219
      %p223 = scmp.eq.s32.totalorder %s31, 0
      %p224 = por %p222, %p223
      %p225 = scmp.ne.s32.totalorder %s217, %s219
      %p226 = scmp.eq.s32.totalorder %s36, 1
      %p227 = por %p225, %p226
      %p228 = scmp.ne.s32.totalorder %s219, %s220
      %p229 = scmp.eq.s32.totalorder %s36, 0
      %p230 = por %p228, %p229
      %p231 = scmp.ne.s32.totalorder %s219, %s220
      %p232 = scmp.eq.s32.totalorder %s37, 1
      %p233 = por %p231, %p232
      %p235 = scmp.ne.s32.totalorder %s220, %s234
      %p236 = scmp.eq.s32.totalorder %s37, 0
      %p237 = por %p235, %p236
      %s239 = sadd.s32 %s238, 1
      %p242 = scmp.eq.s32.totalorder %s31, 1
      %p243 = scmp.ne.s32.totalorder %s238, %s240
      %p244 = scmp.eq.s32.totalorder %s31, 0
      %p245 = por %p243, %p244
      %p246 = scmp.ne.s32.totalorder %s238, %s240
      %p247 = scmp.eq.s32.totalorder %s36, 1
      %p248 = por %p246, %p247
      %p249 = scmp.ne.s32.totalorder %s240, %s241
      %p250 = scmp.eq.s32.totalorder %s36, 0
      %p251 = por %p249, %p250
      %p252 = scmp.ne.s32.totalorder %s240, %s241
      %p253 = scmp.eq.s32.totalorder %s37, 1
      %p254 = por %p252, %p253
      %p256 = scmp.ne.s32.totalorder %s241, %s255
      %p257 = scmp.eq.s32.totalorder %s37, 0
      %p258 = por %p256, %p257
      %s260 = sadd.s32 %s259, 1
      %p263 = scmp.eq.s32.totalorder %s31, 1
      %p264 = scmp.ne.s32.totalorder %s259, %s261
      %p265 = scmp.eq.s32.totalorder %s31, 0
      %p266 = por %p264, %p265
      %p267 = scmp.ne.s32.totalorder %s259, %s261
      %p268 = scmp.eq.s32.totalorder %s36, 1
      %p269 = por %p267, %p268
      %p270 = scmp.ne.s32.totalorder %s261, %s262
      %p271 = scmp.eq.s32.totalorder %s36, 0
      %p272 = por %p270, %p271
      %p273 = scmp.ne.s32.totalorder %s261, %s262
      %p274 = scmp.eq.s32.totalorder %s37, 1
      %p275 = por %p273, %p274
      %p277 = scmp.ne.s32.totalorder %s262, %s276
      %p278 = scmp.eq.s32.totalorder %s37, 0
      %p279 = por %p277, %p278
      %s281 = sadd.s32 %s280, 1
      %p284 = scmp.eq.s32.totalorder %s31, 1
      %p285 = scmp.ne.s32.totalorder %s280, %s282
      %p286 = scmp.eq.s32.totalorder %s31, 0
      %p287 = por %p285, %p286
      %p288 = scmp.ne.s32.totalorder %s280, %s282
      %p289 = scmp.eq.s32.totalorder %s36, 1
      %p290 = por %p288, %p289
      %p291 = scmp.ne.s32.totalorder %s282, %s283
      %p292 = scmp.eq.s32.totalorder %s36, 0
      %p293 = por %p291, %p292
      %p294 = scmp.ne.s32.totalorder %s282, %s283
      %p295 = scmp.eq.s32.totalorder %s37, 1
      %p296 = por %p294, %p295
      %p298 = scmp.ne.s32.totalorder %s283, %s297
      %p299 = scmp.eq.s32.totalorder %s37, 0
      %p300 = por %p298, %p299
      %s302 = sadd.s32 %s301, 1
      %p305 = scmp.eq.s32.totalorder %s31, 1
      %p306 = scmp.ne.s32.totalorder %s301, %s303
      %p307 = scmp.eq.s32.totalorder %s31, 0
      %p308 = por %p306, %p307
      %p309 = scmp.ne.s32.totalorder %s301, %s303
      %p310 = scmp.eq.s32.totalorder %s36, 1
      %p311 = por %p309, %p310
      %p312 = scmp.ne.s32.totalorder %s303, %s304
      %p313 = scmp.eq.s32.totalorder %s36, 0
      %p314 = por %p312, %p313
      %p315 = scmp.ne.s32.totalorder %s303, %s304
      %p316 = scmp.eq.s32.totalorder %s37, 1
      %p317 = por %p315, %p316
      %p319 = scmp.ne.s32.totalorder %s304, %s318
      %p320 = scmp.eq.s32.totalorder %s37, 0
      %p321 = por %p319, %p320
      %s323 = sadd.s32 %s322, 1
      %p326 = scmp.eq.s32.totalorder %s31, 1
      %p327 = scmp.ne.s32.totalorder %s322, %s324
      %p328 = scmp.eq.s32.totalorder %s31, 0
      %p329 = por %p327, %p328
      %p330 = scmp.ne.s32.totalorder %s322, %s324
      %p331 = scmp.eq.s32.totalorder %s36, 1
      %p332 = por %p330, %p331
      %p333 = scmp.ne.s32.totalorder %s324, %s325
      %p334 = scmp.eq.s32.totalorder %s36, 0
      %p335 = por %p333, %p334
      %p336 = scmp.ne.s32.totalorder %s324, %s325
      %p337 = scmp.eq.s32.totalorder %s37, 1
      %p338 = por %p336, %p337
      %p340 = scmp.ne.s32.totalorder %s325, %s339
      %p341 = scmp.eq.s32.totalorder %s37, 0
      %p342 = por %p340, %p341
      %s343 = ssub.s32 %s31, %s38
      %p344 = scmp.eq.s32.totalorder %s343, 0
      %s346 = sadd.s32 %s345, 1
      %s347 = scalar_select %p344, %s345, %s346
      %p350 = pneg %p344
      %p351 = scmp.eq.s32.totalorder %s31, 1
      %p352 = por %p350, %p351
      %p353 = scmp.ne.s32.totalorder %s345, %s348
      %p354 = scmp.eq.s32.totalorder %s31, 0
      %p355 = por %p353, %p354
      %p356 = scmp.ne.s32.totalorder %s345, %s348
      %p357 = scmp.eq.s32.totalorder %s36, 1
      %p358 = por %p356, %p357
      %p359 = scmp.ne.s32.totalorder %s348, %s349
      %p360 = scmp.eq.s32.totalorder %s36, 0
      %p361 = por %p359, %p360
      %p362 = scmp.ne.s32.totalorder %s348, %s349
      %p363 = scmp.eq.s32.totalorder %s37, 1
      %p364 = por %p362, %p363
      %p366 = scmp.ne.s32.totalorder %s349, %s365
      %p367 = scmp.eq.s32.totalorder %s37, 0
      %p368 = por %p366, %p367
      %s369 = ssub.s32 %s31, %s38
      %p370 = scmp.eq.s32.totalorder %s369, 0
      %s372 = sadd.s32 %s371, 1
      %s373 = scalar_select %p370, %s371, %s372
      %p376 = pneg %p370
      %p377 = scmp.eq.s32.totalorder %s31, 1
      %p378 = por %p376, %p377
      %p379 = scmp.ne.s32.totalorder %s371, %s374
      %p380 = scmp.eq.s32.totalorder %s31, 0
      %p381 = por %p379, %p380
      %p382 = scmp.ne.s32.totalorder %s371, %s374
      %p383 = scmp.eq.s32.totalorder %s36, 1
      %p384 = por %p382, %p383
      %p385 = scmp.ne.s32.totalorder %s374, %s375
      %p386 = scmp.eq.s32.totalorder %s36, 0
      %p387 = por %p385, %p386
      %p388 = scmp.ne.s32.totalorder %s374, %s375
      %p389 = scmp.eq.s32.totalorder %s37, 1
      %p390 = por %p388, %p389
      %p392 = scmp.ne.s32.totalorder %s375, %s391
      %p393 = scmp.eq.s32.totalorder %s37, 0
      %p394 = por %p392, %p393
      %s395 = ssub.s32 %s31, %s38
      %p396 = scmp.eq.s32.totalorder %s395, 0
      %s398 = sadd.s32 %s397, 1
      %s399 = scalar_select %p396, %s397, %s398
      %p402 = pneg %p396
      %p403 = scmp.eq.s32.totalorder %s31, 1
      %p404 = por %p402, %p403
      %p405 = scmp.ne.s32.totalorder %s397, %s400
      %p406 = scmp.eq.s32.totalorder %s31, 0
      %p407 = por %p405, %p406
      %p408 = scmp.ne.s32.totalorder %s397, %s400
      %p409 = scmp.eq.s32.totalorder %s36, 1
      %p410 = por %p408, %p409
      %p411 = scmp.ne.s32.totalorder %s400, %s401
      %p412 = scmp.eq.s32.totalorder %s36, 0
      %p413 = por %p411, %p412
      %p414 = scmp.ne.s32.totalorder %s400, %s401
      %p415 = scmp.eq.s32.totalorder %s37, 1
      %p416 = por %p414, %p415
      %p418 = scmp.ne.s32.totalorder %s401, %s417
      %p419 = scmp.eq.s32.totalorder %s37, 0
      %p420 = por %p418, %p419
      %p421 = scmp.le.s32.totalorder 1, %s31
      %p422 = scmp.lt.s32.totalorder %s31, 3
      %p423 = pnand %p421, %p422
      %p424 = pneg %p423
      // Predicated region
      $region9: #{mog_vae_forward.1} parent=5 // pred_check
        _
      $region10: #{mog_vae_forward.1} parent=5 // pred_check_branch
        %426 = sbr.rel (%p423) target = $region12
      $region11: #{mog_vae_forward.1} parent=5 // pred_region
        %s427 = ssub.s32 %s31, 1
        // Predicated region
        $region13: #{mog_vae_forward.1} parent=11 // pred_check
          %p428 = pneg %p104
        $region14: #{mog_vae_forward.1} parent=11 // pred_check_branch
          %430 = sbr.rel (%p428) target = $region16
        $region15: #{mog_vae_forward.1} parent=11 // pred_region
          %432 = vsyncadd [#allocation3], 0
          %s433 = sshll.u32 %s2, 4
          %s434 = int_to_ptr.hbm [resolvable:$true] %s433
          %s435 = sshll.u32 [#allocation2], 4
          %s436 = int_to_ptr.vmem [resolvable:$true] %s435
          %441 = dma.hbm_to_vmem [thread:$0]  %s434, 4096, %s436, [#allocation3], 256, 256, 16
        $region16: #{mog_vae_forward.1} parent=11 // pred_fallthru
          _
        // Predicated region
        $region17: #{mog_vae_forward.1} parent=11 // pred_check
          %p442 = pneg %p125
        $region18: #{mog_vae_forward.1} parent=11 // pred_check_branch
          %444 = sbr.rel (%p442) target = $region20
        $region19: #{mog_vae_forward.1} parent=11 // pred_region
          %446 = vsyncadd [#allocation6], 0
          %s448 = sshll.u32 %s3, 4
          %s449 = int_to_ptr.hbm [resolvable:$true] %s448
          %s450 = sshll.u32 [#allocation5], 4
          %s451 = int_to_ptr.vmem [resolvable:$true] %s450
          %453 = dma.hbm_to_vmem [thread:$0]  %s449, 32, %s451, [#allocation6]
        $region20: #{mog_vae_forward.1} parent=11 // pred_fallthru
          _
        // Predicated region
        $region21: #{mog_vae_forward.1} parent=11 // pred_check
          %p454 = pneg %p146
        $region22: #{mog_vae_forward.1} parent=11 // pred_check_branch
          %456 = sbr.rel (%p454) target = $region24
        $region23: #{mog_vae_forward.1} parent=11 // pred_region
          _
        $region24: #{mog_vae_forward.1} parent=11 // pred_fallthru
          _
        // Predicated region
        $region25: #{mog_vae_forward.1} parent=11 // pred_check
          %p457 = pneg %p167
        $region26: #{mog_vae_forward.1} parent=11 // pred_check_branch
          %459 = sbr.rel (%p457) target = $region28
        $region27: #{mog_vae_forward.1} parent=11 // pred_region
          %461 = vsyncadd [#allocation6], 0
          %s463 = sshll.u32 %s5, 4
          %s464 = int_to_ptr.hbm [resolvable:$true] %s463
          %s465 = sshll.u32 [#allocation7], 4
          %s466 = int_to_ptr.vmem [resolvable:$true] %s465
          %468 = dma.hbm_to_vmem [thread:$0]  %s464, 32, %s466, [#allocation6]
        $region28: #{mog_vae_forward.1} parent=11 // pred_fallthru
          _
        // Predicated region
        $region29: #{mog_vae_forward.1} parent=11 // pred_check
          %p469 = pneg %p188
        $region30: #{mog_vae_forward.1} parent=11 // pred_check_branch
          %471 = sbr.rel (%p469) target = $region32
        $region31: #{mog_vae_forward.1} parent=11 // pred_region
          %473 = vsyncadd [#allocation9], 0
          %s474 = sshll.u32 %s6, 4
          %s475 = int_to_ptr.hbm [resolvable:$true] %s474
          %s476 = sshll.u32 [#allocation8], 4
          %s477 = int_to_ptr.vmem [resolvable:$true] %s476
          %482 = dma.hbm_to_vmem [thread:$0]  %s475, 4096, %s477, [#allocation9], 256, 256, 16
        $region32: #{mog_vae_forward.1} parent=11 // pred_fallthru
          _
        // Predicated region
        $region33: #{mog_vae_forward.1} parent=11 // pred_check
          %p483 = pneg %p209
        $region34: #{mog_vae_forward.1} parent=11 // pred_check_branch
          %485 = sbr.rel (%p483) target = $region36
        $region35: #{mog_vae_forward.1} parent=11 // pred_region
          %487 = vsyncadd [#allocation9], 0
          %s489 = sshll.u32 %s7, 4
          %s490 = int_to_ptr.hbm [resolvable:$true] %s489
          %s491 = sshll.u32 [#allocation10], 4
          %s492 = int_to_ptr.vmem [resolvable:$true] %s491
          %494 = dma.hbm_to_vmem [thread:$0]  %s490, 32, %s492, [#allocation9]
        $region36: #{mog_vae_forward.1} parent=11 // pred_fallthru
          _
        // Predicated region
        $region37: #{mog_vae_forward.1} parent=11 // pred_check
          %p495 = pneg %p230
        $region38: #{mog_vae_forward.1} parent=11 // pred_check_branch
          %497 = sbr.rel (%p495) target = $region40
        $region39: #{mog_vae_forward.1} parent=11 // pred_region
          _
        $region40: #{mog_vae_forward.1} parent=11 // pred_fallthru
          _
        // Predicated region
        $region41: #{mog_vae_forward.1} parent=11 // pred_check
          %p498 = pneg %p251
        $region42: #{mog_vae_forward.1} parent=11 // pred_check_branch
          %500 = sbr.rel (%p498) target = $region44
        $region43: #{mog_vae_forward.1} parent=11 // pred_region
          %502 = vsyncadd [#allocation12], 0
          %s504 = sshll.u32 %s9, 4
          %s505 = int_to_ptr.hbm [resolvable:$true] %s504
          %s506 = sshll.u32 [#allocation11], 4
          %s507 = int_to_ptr.vmem [resolvable:$true] %s506
          %509 = dma.hbm_to_vmem [thread:$0]  %s505, 32, %s507, [#allocation12]
        $region44: #{mog_vae_forward.1} parent=11 // pred_fallthru
          _
        // Predicated region
        $region45: #{mog_vae_forward.1} parent=11 // pred_check
          %p510 = pneg %p272
        $region46: #{mog_vae_forward.1} parent=11 // pred_check_branch
          %512 = sbr.rel (%p510) target = $region48
        $region47: #{mog_vae_forward.1} parent=11 // pred_region
          _
        $region48: #{mog_vae_forward.1} parent=11 // pred_fallthru
          _
        // Predicated region
        $region49: #{mog_vae_forward.1} parent=11 // pred_check
          %p513 = pneg %p293
        $region50: #{mog_vae_forward.1} parent=11 // pred_check_branch
          %515 = sbr.rel (%p513) target = $region52
        $region51: #{mog_vae_forward.1} parent=11 // pred_region
          %517 = vsyncadd [#allocation12], 0
          %s519 = sshll.u32 %s11, 4
          %s520 = int_to_ptr.hbm [resolvable:$true] %s519
          %s521 = sshll.u32 [#allocation13], 4
          %s522 = int_to_ptr.vmem [resolvable:$true] %s521
          %524 = dma.hbm_to_vmem [thread:$0]  %s520, 32, %s522, [#allocation12]
        $region52: #{mog_vae_forward.1} parent=11 // pred_fallthru
          _
        // Predicated region
        $region53: #{mog_vae_forward.1} parent=11 // pred_check
          %p525 = pneg %p314
        $region54: #{mog_vae_forward.1} parent=11 // pred_check_branch
          %527 = sbr.rel (%p525) target = $region56
        $region55: #{mog_vae_forward.1} parent=11 // pred_region
          %529 = vsyncadd [#allocation15], 0
          %s530 = sshll.u32 %s12, 4
          %s531 = int_to_ptr.hbm [resolvable:$true] %s530
          %s532 = sshll.u32 [#allocation14], 4
          %s533 = int_to_ptr.vmem [resolvable:$true] %s532
          %538 = dma.hbm_to_vmem [thread:$0]  %s531, 4096, %s533, [#allocation15], 128, 128, 8
        $region56: #{mog_vae_forward.1} parent=11 // pred_fallthru
          _
        // Predicated region
        $region57: #{mog_vae_forward.1} parent=11 // pred_check
          %p539 = pneg %p335
        $region58: #{mog_vae_forward.1} parent=11 // pred_check_branch
          %541 = sbr.rel (%p539) target = $region60
        $region59: #{mog_vae_forward.1} parent=11 // pred_region
          %543 = vsyncadd [#allocation15], 0
          %s545 = sshll.u32 %s13, 4
          %s546 = int_to_ptr.hbm [resolvable:$true] %s545
          %s547 = sshll.u32 [#allocation16], 4
          %s548 = int_to_ptr.vmem [resolvable:$true] %s547
          %550 = dma.hbm_to_vmem [thread:$0]  %s546, 16, %s548, [#allocation15]
        $region60: #{mog_vae_forward.1} parent=11 // pred_fallthru
          _
      $region12: #{mog_vae_forward.1} parent=5 // pred_fallthru
        _
      %p551 = scmp.lt.s32.totalorder %s31, 2
      // Predicated region
      $region61: #{mog_vae_forward.1} parent=5 // pred_check
        %p552 = pneg %p551
      $region62: #{mog_vae_forward.1} parent=5 // pred_check_branch
        %554 = sbr.rel (%p552) target = $region64
      $region63: #{mog_vae_forward.1} parent=5 // pred_region
        // Predicated region
        $region65: #{mog_vae_forward.1} parent=63 // pred_check
          %p555 = pneg %p51
        $region66: #{mog_vae_forward.1} parent=63 // pred_check_branch
          %557 = sbr.rel (%p555) target = $region68
        $region67: #{mog_vae_forward.1} parent=63 // pred_region
          %s558 = smul.u32 32, %s31
          %p559 = scmp.lt.s32.totalorder %s558, 63
          %s560 = scalar_select %p559, %s558, 63
          %s561 = smul.addr %s560, 8
          %s562 = scalar_lea.vmem %s0, %s561
          %s563 = smul.u32 32, %s31
        $region68: #{mog_vae_forward.1} parent=63 // pred_fallthru
          _
        // Predicated region
        $region69: #{mog_vae_forward.1} parent=63 // pred_check
          %p564 = pneg %p77
        $region70: #{mog_vae_forward.1} parent=63 // pred_check_branch
          %566 = sbr.rel (%p564) target = $region72
        $region71: #{mog_vae_forward.1} parent=63 // pred_region
          %s567 = smul.u32 32, %s31
          %p568 = scmp.lt.s32.totalorder %s567, 63
          %s569 = scalar_select %p568, %s567, 63
          %s570 = smul.addr %s569, 2
          %s571 = smul.addr %s570, 8
          %s572 = scalar_lea.vmem %s1, %s571
          %s573 = smul.u32 32, %s31
        $region72: #{mog_vae_forward.1} parent=63 // pred_fallthru
          _
      $region64: #{mog_vae_forward.1} parent=5 // pred_fallthru
        _
      %p574 = scmp.le.s32.totalorder 1, %s31
      %p575 = scmp.lt.s32.totalorder %s31, 3
      %p576 = pnand %p574, %p575
      %p577 = pneg %p576
      // Predicated region
      $region73: #{mog_vae_forward.1} parent=5 // pred_check
        _
      $region74: #{mog_vae_forward.1} parent=5 // pred_check_branch
        %579 = sbr.rel (%p576) target = $region76
      $region75: #{mog_vae_forward.1} parent=5 // pred_region
        %s580 = ssub.s32 %s31, 1
        // Predicated region
        $region77: #{mog_vae_forward.1} parent=75 // pred_check
          %p581 = pneg %p104
        $region78: #{mog_vae_forward.1} parent=75 // pred_check_branch
          %583 = sbr.rel (%p581) target = $region80
        $region79: #{mog_vae_forward.1} parent=75 // pred_region
          %585 = dma.done [#allocation3], 4096
        $region80: #{mog_vae_forward.1} parent=75 // pred_fallthru
          _
        // Predicated region
        $region81: #{mog_vae_forward.1} parent=75 // pred_check
          %p586 = pneg %p125
        $region82: #{mog_vae_forward.1} parent=75 // pred_check_branch
          %588 = sbr.rel (%p586) target = $region84
        $region83: #{mog_vae_forward.1} parent=75 // pred_region
          %590 = dma.done [#allocation6], 32
        $region84: #{mog_vae_forward.1} parent=75 // pred_fallthru
          _
        // Predicated region
        $region85: #{mog_vae_forward.1} parent=75 // pred_check
          %p591 = pneg %p167
        $region86: #{mog_vae_forward.1} parent=75 // pred_check_branch
          %593 = sbr.rel (%p591) target = $region88
        $region87: #{mog_vae_forward.1} parent=75 // pred_region
          %595 = dma.done [#allocation6], 32
        $region88: #{mog_vae_forward.1} parent=75 // pred_fallthru
          _
        // Predicated region
        $region89: #{mog_vae_forward.1} parent=75 // pred_check
          %p596 = pneg %p188
        $region90: #{mog_vae_forward.1} parent=75 // pred_check_branch
          %598 = sbr.rel (%p596) target = $region92
        $region91: #{mog_vae_forward.1} parent=75 // pred_region
          %600 = dma.done [#allocation9], 4096
        $region92: #{mog_vae_forward.1} parent=75 // pred_fallthru
          _
        // Predicated region
        $region93: #{mog_vae_forward.1} parent=75 // pred_check
          %p601 = pneg %p209
        $region94: #{mog_vae_forward.1} parent=75 // pred_check_branch
          %603 = sbr.rel (%p601) target = $region96
        $region95: #{mog_vae_forward.1} parent=75 // pred_region
          %605 = dma.done [#allocation9], 32
        $region96: #{mog_vae_forward.1} parent=75 // pred_fallthru
          _
        // Predicated region
        $region97: #{mog_vae_forward.1} parent=75 // pred_check
          %p606 = pneg %p251
        $region98: #{mog_vae_forward.1} parent=75 // pred_check_branch
          %608 = sbr.rel (%p606) target = $region100
        $region99: #{mog_vae_forward.1} parent=75 // pred_region
          %610 = dma.done [#allocation12], 32
        $region100: #{mog_vae_forward.1} parent=75 // pred_fallthru
          _
        // Predicated region
        $region101: #{mog_vae_forward.1} parent=75 // pred_check
          %p611 = pneg %p293
        $region102: #{mog_vae_forward.1} parent=75 // pred_check_branch
          %613 = sbr.rel (%p611) target = $region104
        $region103: #{mog_vae_forward.1} parent=75 // pred_region
          %615 = dma.done [#allocation12], 32
        $region104: #{mog_vae_forward.1} parent=75 // pred_fallthru
          _
        // Predicated region
        $region105: #{mog_vae_forward.1} parent=75 // pred_check
          %p616 = pneg %p314
        $region106: #{mog_vae_forward.1} parent=75 // pred_check_branch
          %618 = sbr.rel (%p616) target = $region108
        $region107: #{mog_vae_forward.1} parent=75 // pred_region
          %620 = dma.done [#allocation15], 4096
        $region108: #{mog_vae_forward.1} parent=75 // pred_fallthru
          _
        // Predicated region
        $region109: #{mog_vae_forward.1} parent=75 // pred_check
          %p621 = pneg %p335
        $region110: #{mog_vae_forward.1} parent=75 // pred_check_branch
          %623 = sbr.rel (%p621) target = $region112
        $region111: #{mog_vae_forward.1} parent=75 // pred_region
          %625 = dma.done [#allocation15], 16
        $region112: #{mog_vae_forward.1} parent=75 // pred_fallthru
          _
        %s626 = smul.u32 32, %s36
        %p627 = scmp.lt.s32.totalorder %s626, 63
        %s628 = scalar_select %p627, %s626, 63
        %s629 = smul.addr %s628, 8
        %s630 = scalar_lea.vmem %s0, %s629
        %p631 = pneg %p57
        %p632 = pneg %p54
        %s633 = smul.u32 32, %s36
        %p634 = scmp.lt.s32.totalorder %s633, 63
        %s635 = scalar_select %p634, %s633, 63
        %s636 = smul.addr %s635, 2
        %s637 = smul.addr %s636, 8
        %s638 = scalar_lea.vmem %s1, %s637
        %p639 = pneg %p83
        %p640 = pneg %p80
        %p641 = pneg %p104
        %p642 = pneg %p101
        %p643 = pneg %p125
        %p644 = pneg %p122
        %p645 = pneg %p146
        %p646 = pneg %p143
        %p647 = pneg %p167
        %p648 = pneg %p164
        %p649 = pneg %p188
        %p650 = pneg %p185
        %p651 = pneg %p209
        %p652 = pneg %p206
        %p653 = pneg %p230
        %p654 = pneg %p227
        %p655 = pneg %p251
        %p656 = pneg %p248
        %p657 = pneg %p272
        %p658 = pneg %p269
        %p659 = pneg %p293
        %p660 = pneg %p290
        %p661 = pneg %p314
        %p662 = pneg %p311
        %p663 = pneg %p335
        %p664 = pneg %p332
        %p665 = pneg %p361
        %p666 = pneg %p358
        %s667 = sand.u32 %s348, 1
        %s668 = scalar_lea.sflag [#allocation4], %s667
        %s669 = sand.u32 %s348, 1
        %s670 = smul.addr %s669, 256
        %s671 = scalar_lea.vmem [#allocation17], %s670
        %p672 = pneg %p387
        %p673 = pneg %p384
        %s674 = smul.u32 32, %s36
        %p675 = scmp.lt.s32.totalorder %s674, 63
        %s676 = scalar_select %p675, %s674, 63
        %s677 = smul.addr %s676, 2
        %s678 = smul.addr %s677, 8
        %s679 = scalar_lea.vmem %s15, %s678
        %p680 = pneg %p413
        %p681 = pneg %p410
        %s682 = smul.u32 32, %s36
        %p683 = scmp.lt.s32.totalorder %s682, 63
        %s684 = scalar_select %p683, %s682, 63
        %s685 = smul.addr %s684, 2
        %s686 = smul.addr %s685, 8
        %s687 = scalar_lea.vmem %s16, %s686
        %s688 = smul.u32 32, %s36
        %p689 = scmp.lt.s32.totalorder %s688, 63
        %s690 = scalar_select %p689, %s688, 63
        %s691 = smul.addr %s690, 8
        %s692 = scalar_lea.vmem %s0, %s691
        %s693 = smul.u32 32, %s36
        %s694 = smul.u32 32, %s36
        %p695 = scmp.lt.s32.totalorder %s694, 63
        %s696 = scalar_select %p695, %s694, 63
        %s697 = smul.addr %s696, 2
        %s698 = smul.addr %s697, 8
        %s699 = scalar_lea.vmem %s1, %s698
        %s700 = smul.u32 32, %s36
        %s701 = smul.u32 32, %s36
        %s702 = smul.u32 32, %s36
        %p703 = scmp.lt.s32.totalorder %s702, 63
        %s704 = scalar_select %p703, %s702, 63
        %s705 = smul.addr %s704, 2
        %s706 = smul.addr %s705, 8
        %s707 = scalar_lea.vmem %s15, %s706
        %s708 = smul.u32 32, %s36
        %s709 = smul.u32 32, %s36
        %p710 = scmp.lt.s32.totalorder %s709, 63
        %s711 = scalar_select %p710, %s709, 63
        %s712 = smul.addr %s711, 2
        %s713 = smul.addr %s712, 8
        %s714 = scalar_lea.vmem %s16, %s713
        %s715 = smul.u32 32, %s36
        %v716 = vld [vmem:[%s692] sm:$0xff]
        %v717 = vld [vmem:[%s692 + $0x8] sm:$0xff]
        %v718 = vld [vmem:[%s692 + $0x10] sm:$0xff]
        %v719 = vld [vmem:[%s692 + $0x18] sm:$0xff]
        %v720 = vld [vmem:[%s692 + $0x20] sm:$0xff]
        %v721 = vld [vmem:[%s692 + $0x28] sm:$0xff]
        %v722 = vld [vmem:[%s692 + $0x30] sm:$0xff]
        %v723 = vld [vmem:[%s692 + $0x38] sm:$0xff]
        %v724 = vld [vmem:[%s692 + $0x40] sm:$0xff]
        %v725 = vld [vmem:[%s692 + $0x48] sm:$0xff]
        %v726 = vld [vmem:[%s692 + $0x50] sm:$0xff]
        %v727 = vld [vmem:[%s692 + $0x58] sm:$0xff]
        %v728 = vld [vmem:[%s692 + $0x60] sm:$0xff]
        %v729 = vld [vmem:[%s692 + $0x68] sm:$0xff]
        %v730 = vld [vmem:[%s692 + $0x70] sm:$0xff]
        %v731 = vld [vmem:[%s692 + $0x78] sm:$0xff]
        %v732 = vld [vmem:[%s692 + $0x80] sm:$0xff]
        %v733 = vld [vmem:[%s692 + $0x88] sm:$0xff]
        %v734 = vld [vmem:[%s692 + $0x90] sm:$0xff]
        %v735 = vld [vmem:[%s692 + $0x98] sm:$0xff]
        %v736 = vld [vmem:[%s692 + $0xa0] sm:$0xff]
        %v737 = vld [vmem:[%s692 + $0xa8] sm:$0xff]
        %v738 = vld [vmem:[%s692 + $0xb0] sm:$0xff]
        %v739 = vld [vmem:[%s692 + $0xb8] sm:$0xff]
        %v740 = vld [vmem:[%s692 + $0xc0] sm:$0xff]
        %v741 = vld [vmem:[%s692 + $0xc8] sm:$0xff]
        %v742 = vld [vmem:[%s692 + $0xd0] sm:$0xff]
        %v743 = vld [vmem:[%s692 + $0xd8] sm:$0xff]
        %v744 = vld [vmem:[%s692 + $0xe0] sm:$0xff]
        %v745 = vld [vmem:[%s692 + $0xe8] sm:$0xff]
        %v746 = vld [vmem:[%s692 + $0xf0] sm:$0xff]
        %v747 = vld [vmem:[%s692 + $0xf8] sm:$0xff]
        %v748 = vld [vmem:[#allocation2] sm:$0xff]
        %v749 = vld [vmem:[#allocation2 + $0x8] sm:$0xff]
        %v750 = vld [vmem:[#allocation2 + $0x10] sm:$0xff]
        %v751 = vld [vmem:[#allocation2 + $0x18] sm:$0xff]
        %v752 = vld [vmem:[#allocation2 + $0x20] sm:$0xff]
        %v753 = vld [vmem:[#allocation2 + $0x28] sm:$0xff]
        %v754 = vld [vmem:[#allocation2 + $0x30] sm:$0xff]
        %v755 = vld [vmem:[#allocation2 + $0x38] sm:$0xff]
        %v756 = vld [vmem:[#allocation2 + $0x40] sm:$0xff]
        %v757 = vld [vmem:[#allocation2 + $0x48] sm:$0xff]
        %v758 = vld [vmem:[#allocation2 + $0x50] sm:$0xff]
        %v759 = vld [vmem:[#allocation2 + $0x58] sm:$0xff]
        %v760 = vld [vmem:[#allocation2 + $0x60] sm:$0xff]
        %v761 = vld [vmem:[#allocation2 + $0x68] sm:$0xff]
        %v762 = vld [vmem:[#allocation2 + $0x70] sm:$0xff]
        %v763 = vld [vmem:[#allocation2 + $0x78] sm:$0xff]
        %v764 = vld [vmem:[#allocation2 + $0x80] sm:$0xff]
        %v765 = vld [vmem:[#allocation2 + $0x88] sm:$0xff]
        %v766 = vld [vmem:[#allocation2 + $0x90] sm:$0xff]
        %v767 = vld [vmem:[#allocation2 + $0x98] sm:$0xff]
        %v768 = vld [vmem:[#allocation2 + $0xa0] sm:$0xff]
        %v769 = vld [vmem:[#allocation2 + $0xa8] sm:$0xff]
        %v770 = vld [vmem:[#allocation2 + $0xb0] sm:$0xff]
        %v771 = vld [vmem:[#allocation2 + $0xb8] sm:$0xff]
        %v772 = vld [vmem:[#allocation2 + $0xc0] sm:$0xff]
        %v773 = vld [vmem:[#allocation2 + $0xc8] sm:$0xff]
        %v774 = vld [vmem:[#allocation2 + $0xd0] sm:$0xff]
        %v775 = vld [vmem:[#allocation2 + $0xd8] sm:$0xff]
        %v776 = vld [vmem:[#allocation2 + $0xe0] sm:$0xff]
        %v777 = vld [vmem:[#allocation2 + $0xe8] sm:$0xff]
        %v778 = vld [vmem:[#allocation2 + $0xf0] sm:$0xff]
        %v779 = vld [vmem:[#allocation2 + $0xf8] sm:$0xff]
        %v780 = vld [vmem:[#allocation5] sm:$0x3]
        %v782 = vperm.slane %v780, 0
        %v783 = vperm.slane %v780, 1
        %786 = vmatpush.msra.mxu0 %v778
        %787 = vmatpush.msra.mxu0 %v776
        %788 = vmatpush.msra.mxu0 %v774
        %789 = vmatpush.msra.mxu0 %v772
        %790 = vmatpush.msra.mxu0 %v770
        %791 = vmatpush.msra.mxu0 %v768
        %792 = vmatpush.msra.mxu0 %v766
        %793 = vmatpush.msra.mxu0 %v764
        %794 = vmatpush.msra.mxu0 %v762
        %795 = vmatpush.msra.mxu0 %v760
        %796 = vmatpush.msra.mxu0 %v758
        %797 = vmatpush.msra.mxu0 %v756
        %798 = vmatpush.msra.mxu0 %v754
        %799 = vmatpush.msra.mxu0 %v752
        %800 = vmatpush.msra.mxu0 %v750
        %801 = vmatpush.msra.mxu0 %v748
        %802 = vmatmul.f32.gmra.mxu0 %v716
        %v803 = vpop.f32.mrf.mxu0
        %v804 = vadd.f32 %v782, %v803
        %805 = vmatmul.f32.gmra.mxu0 %v717
        %v806 = vpop.f32.mrf.mxu0
        %v807 = vadd.f32 %v782, %v806
        %808 = vmatmul.f32.gmra.mxu0 %v718
        %v809 = vpop.f32.mrf.mxu0
        %v810 = vadd.f32 %v782, %v809
        %811 = vmatmul.f32.gmra.mxu0 %v719
        %v812 = vpop.f32.mrf.mxu0
        %v813 = vadd.f32 %v782, %v812
        %814 = vmatmul.f32.gmra.mxu0 %v720
        %v815 = vpop.f32.mrf.mxu0
        %v816 = vadd.f32 %v782, %v815
        %817 = vmatmul.f32.gmra.mxu0 %v721
        %v818 = vpop.f32.mrf.mxu0
        %v819 = vadd.f32 %v782, %v818
        %820 = vmatmul.f32.gmra.mxu0 %v722
        %v821 = vpop.f32.mrf.mxu0
        %v822 = vadd.f32 %v782, %v821
        %823 = vmatmul.f32.gmra.mxu0 %v723
        %v824 = vpop.f32.mrf.mxu0
        %v825 = vadd.f32 %v782, %v824
        %826 = vmatmul.f32.gmra.mxu0 %v724
        %v827 = vpop.f32.mrf.mxu0
        %v828 = vadd.f32 %v782, %v827
        %829 = vmatmul.f32.gmra.mxu0 %v725
        %v830 = vpop.f32.mrf.mxu0
        %v831 = vadd.f32 %v782, %v830
        %832 = vmatmul.f32.gmra.mxu0 %v726
        %v833 = vpop.f32.mrf.mxu0
        %v834 = vadd.f32 %v782, %v833
        %835 = vmatmul.f32.gmra.mxu0 %v727
        %v836 = vpop.f32.mrf.mxu0
        %v837 = vadd.f32 %v782, %v836
        %838 = vmatmul.f32.gmra.mxu0 %v728
        %v839 = vpop.f32.mrf.mxu0
        %v840 = vadd.f32 %v782, %v839
        %841 = vmatmul.f32.gmra.mxu0 %v729
        %v842 = vpop.f32.mrf.mxu0
        %v843 = vadd.f32 %v782, %v842
        %844 = vmatmul.f32.gmra.mxu0 %v730
        %v845 = vpop.f32.mrf.mxu0
        %v846 = vadd.f32 %v782, %v845
        %847 = vmatmul.f32.gmra.mxu0 %v731
        %v848 = vpop.f32.mrf.mxu0
        %v849 = vadd.f32 %v782, %v848
        %850 = vmatmul.f32.gmra.mxu0 %v732
        %v851 = vpop.f32.mrf.mxu0
        %v852 = vadd.f32 %v782, %v851
        %853 = vmatmul.f32.gmra.mxu0 %v733
        %v854 = vpop.f32.mrf.mxu0
        %v855 = vadd.f32 %v782, %v854
        %856 = vmatmul.f32.gmra.mxu0 %v734
        %v857 = vpop.f32.mrf.mxu0
        %v858 = vadd.f32 %v782, %v857
        %859 = vmatmul.f32.gmra.mxu0 %v735
        %v860 = vpop.f32.mrf.mxu0
        %v861 = vadd.f32 %v782, %v860
        %862 = vmatmul.f32.gmra.mxu0 %v736
        %v863 = vpop.f32.mrf.mxu0
        %v864 = vadd.f32 %v782, %v863
        %865 = vmatmul.f32.gmra.mxu0 %v737
        %v866 = vpop.f32.mrf.mxu0
        %v867 = vadd.f32 %v782, %v866
        %868 = vmatmul.f32.gmra.mxu0 %v738
        %v869 = vpop.f32.mrf.mxu0
        %v870 = vadd.f32 %v782, %v869
        %871 = vmatmul.f32.gmra.mxu0 %v739
        %v872 = vpop.f32.mrf.mxu0
        %v873 = vadd.f32 %v782, %v872
        %874 = vmatmul.f32.gmra.mxu0 %v740
        %v875 = vpop.f32.mrf.mxu0
        %v876 = vadd.f32 %v782, %v875
        %877 = vmatmul.f32.gmra.mxu0 %v741
        %v878 = vpop.f32.mrf.mxu0
        %v879 = vadd.f32 %v782, %v878
        %880 = vmatmul.f32.gmra.mxu0 %v742
        %v881 = vpop.f32.mrf.mxu0
        %v882 = vadd.f32 %v782, %v881
        %883 = vmatmul.f32.gmra.mxu0 %v743
        %v884 = vpop.f32.mrf.mxu0
        %v885 = vadd.f32 %v782, %v884
        %886 = vmatmul.f32.gmra.mxu0 %v744
        %v887 = vpop.f32.mrf.mxu0
        %v888 = vadd.f32 %v782, %v887
        %889 = vmatmul.f32.gmra.mxu0 %v745
        %v890 = vpop.f32.mrf.mxu0
        %v891 = vadd.f32 %v782, %v890
        %892 = vmatmul.f32.gmra.mxu0 %v746
        %v893 = vpop.f32.mrf.mxu0
        %v894 = vadd.f32 %v782, %v893
        %895 = vmatmul.f32.gmra.mxu0 %v747
        %v896 = vpop.f32.mrf.mxu0
        %v897 = vadd.f32 %v782, %v896
        %898 = vdwg.mxu0
        %899 = vmatpush.msra.mxu0 %v779
        %900 = vmatpush.msra.mxu0 %v777
        %901 = vmatpush.msra.mxu0 %v775
        %902 = vmatpush.msra.mxu0 %v773
        %903 = vmatpush.msra.mxu0 %v771
        %904 = vmatpush.msra.mxu0 %v769
        %905 = vmatpush.msra.mxu0 %v767
        %906 = vmatpush.msra.mxu0 %v765
        %907 = vmatpush.msra.mxu0 %v763
        %908 = vmatpush.msra.mxu0 %v761
        %909 = vmatpush.msra.mxu0 %v759
        %910 = vmatpush.msra.mxu0 %v757
        %911 = vmatpush.msra.mxu0 %v755
        %912 = vmatpush.msra.mxu0 %v753
        %913 = vmatpush.msra.mxu0 %v751
        %914 = vmatpush.msra.mxu0 %v749
        %915 = vmatmul.f32.gmra.mxu0 %v716
        %v916 = vpop.f32.mrf.mxu0
        %v917 = vadd.f32 %v783, %v916
        %918 = vmatmul.f32.gmra.mxu0 %v717
        %v919 = vpop.f32.mrf.mxu0
        %v920 = vadd.f32 %v783, %v919
        %921 = vmatmul.f32.gmra.mxu0 %v718
        %v922 = vpop.f32.mrf.mxu0
        %v923 = vadd.f32 %v783, %v922
        %924 = vmatmul.f32.gmra.mxu0 %v719
        %v925 = vpop.f32.mrf.mxu0
        %v926 = vadd.f32 %v783, %v925
        %927 = vmatmul.f32.gmra.mxu0 %v720
        %v928 = vpop.f32.mrf.mxu0
        %v929 = vadd.f32 %v783, %v928
        %930 = vmatmul.f32.gmra.mxu0 %v721
        %v931 = vpop.f32.mrf.mxu0
        %v932 = vadd.f32 %v783, %v931
        %933 = vmatmul.f32.gmra.mxu0 %v722
        %v934 = vpop.f32.mrf.mxu0
        %v935 = vadd.f32 %v783, %v934
        %936 = vmatmul.f32.gmra.mxu0 %v723
        %v937 = vpop.f32.mrf.mxu0
        %v938 = vadd.f32 %v783, %v937
        %939 = vmatmul.f32.gmra.mxu0 %v724
        %v940 = vpop.f32.mrf.mxu0
        %v941 = vadd.f32 %v783, %v940
        %942 = vmatmul.f32.gmra.mxu0 %v725
        %v943 = vpop.f32.mrf.mxu0
        %v944 = vadd.f32 %v783, %v943
        %945 = vmatmul.f32.gmra.mxu0 %v726
        %v946 = vpop.f32.mrf.mxu0
        %v947 = vadd.f32 %v783, %v946
        %948 = vmatmul.f32.gmra.mxu0 %v727
        %v949 = vpop.f32.mrf.mxu0
        %v950 = vadd.f32 %v783, %v949
        %951 = vmatmul.f32.gmra.mxu0 %v728
        %v952 = vpop.f32.mrf.mxu0
        %v953 = vadd.f32 %v783, %v952
        %954 = vmatmul.f32.gmra.mxu0 %v729
        %v955 = vpop.f32.mrf.mxu0
        %v956 = vadd.f32 %v783, %v955
        %957 = vmatmul.f32.gmra.mxu0 %v730
        %v958 = vpop.f32.mrf.mxu0
        %v959 = vadd.f32 %v783, %v958
        %960 = vmatmul.f32.gmra.mxu0 %v731
        %v961 = vpop.f32.mrf.mxu0
        %v962 = vadd.f32 %v783, %v961
        %963 = vmatmul.f32.gmra.mxu0 %v732
        %v964 = vpop.f32.mrf.mxu0
        %v965 = vadd.f32 %v783, %v964
        %966 = vmatmul.f32.gmra.mxu0 %v733
        %v967 = vpop.f32.mrf.mxu0
        %v968 = vadd.f32 %v783, %v967
        %969 = vmatmul.f32.gmra.mxu0 %v734
        %v970 = vpop.f32.mrf.mxu0
        %v971 = vadd.f32 %v783, %v970
        %972 = vmatmul.f32.gmra.mxu0 %v735
        %v973 = vpop.f32.mrf.mxu0
        %v974 = vadd.f32 %v783, %v973
        %975 = vmatmul.f32.gmra.mxu0 %v736
        %v976 = vpop.f32.mrf.mxu0
        %v977 = vadd.f32 %v783, %v976
        %978 = vmatmul.f32.gmra.mxu0 %v737
        %v979 = vpop.f32.mrf.mxu0
        %v980 = vadd.f32 %v783, %v979
        %981 = vmatmul.f32.gmra.mxu0 %v738
        %v982 = vpop.f32.mrf.mxu0
        %v983 = vadd.f32 %v783, %v982
        %984 = vmatmul.f32.gmra.mxu0 %v739
        %v985 = vpop.f32.mrf.mxu0
        %v986 = vadd.f32 %v783, %v985
        %987 = vmatmul.f32.gmra.mxu0 %v740
        %v988 = vpop.f32.mrf.mxu0
        %v989 = vadd.f32 %v783, %v988
        %990 = vmatmul.f32.gmra.mxu0 %v741
        %v991 = vpop.f32.mrf.mxu0
        %v992 = vadd.f32 %v783, %v991
        %993 = vmatmul.f32.gmra.mxu0 %v742
        %v994 = vpop.f32.mrf.mxu0
        %v995 = vadd.f32 %v783, %v994
        %996 = vmatmul.f32.gmra.mxu0 %v743
        %v997 = vpop.f32.mrf.mxu0
        %v998 = vadd.f32 %v783, %v997
        %999 = vmatmul.f32.gmra.mxu0 %v744
        %v1000 = vpop.f32.mrf.mxu0
        %v1001 = vadd.f32 %v783, %v1000
        %1002 = vmatmul.f32.gmra.mxu0 %v745
        %v1003 = vpop.f32.mrf.mxu0
        %v1004 = vadd.f32 %v783, %v1003
        %1005 = vmatmul.f32.gmra.mxu0 %v746
        %v1006 = vpop.f32.mrf.mxu0
        %v1007 = vadd.f32 %v783, %v1006
        %1008 = vmatmul.f32.gmra.mxu0 %v747
        %v1009 = vpop.f32.mrf.mxu0
        %v1010 = vadd.f32 %v783, %v1009
        %1011 = vdwg.mxu0
        %vm1012 = vcmp.ge.f32.partialorder %v804, 0.0
        %vm1013 = vcmp.ge.f32.partialorder %v917, 0.0
        %vm1014 = vcmp.ge.f32.partialorder %v807, 0.0
        %vm1015 = vcmp.ge.f32.partialorder %v920, 0.0
        %vm1016 = vcmp.ge.f32.partialorder %v810, 0.0
        %vm1017 = vcmp.ge.f32.partialorder %v923, 0.0
        %vm1018 = vcmp.ge.f32.partialorder %v813, 0.0
        %vm1019 = vcmp.ge.f32.partialorder %v926, 0.0
        %vm1020 = vcmp.ge.f32.partialorder %v816, 0.0
        %vm1021 = vcmp.ge.f32.partialorder %v929, 0.0
        %vm1022 = vcmp.ge.f32.partialorder %v819, 0.0
        %vm1023 = vcmp.ge.f32.partialorder %v932, 0.0
        %vm1024 = vcmp.ge.f32.partialorder %v822, 0.0
        %vm1025 = vcmp.ge.f32.partialorder %v935, 0.0
        %vm1026 = vcmp.ge.f32.partialorder %v825, 0.0
        %vm1027 = vcmp.ge.f32.partialorder %v938, 0.0
        %vm1028 = vcmp.ge.f32.partialorder %v828, 0.0
        %vm1029 = vcmp.ge.f32.partialorder %v941, 0.0
        %vm1030 = vcmp.ge.f32.partialorder %v831, 0.0
        %vm1031 = vcmp.ge.f32.partialorder %v944, 0.0
        %vm1032 = vcmp.ge.f32.partialorder %v834, 0.0
        %vm1033 = vcmp.ge.f32.partialorder %v947, 0.0
        %vm1034 = vcmp.ge.f32.partialorder %v837, 0.0
        %vm1035 = vcmp.ge.f32.partialorder %v950, 0.0
        %vm1036 = vcmp.ge.f32.partialorder %v840, 0.0
        %vm1037 = vcmp.ge.f32.partialorder %v953, 0.0
        %vm1038 = vcmp.ge.f32.partialorder %v843, 0.0
        %vm1039 = vcmp.ge.f32.partialorder %v956, 0.0
        %vm1040 = vcmp.ge.f32.partialorder %v846, 0.0
        %vm1041 = vcmp.ge.f32.partialorder %v959, 0.0
        %vm1042 = vcmp.ge.f32.partialorder %v849, 0.0
        %vm1043 = vcmp.ge.f32.partialorder %v962, 0.0
        %vm1044 = vcmp.ge.f32.partialorder %v852, 0.0
        %vm1045 = vcmp.ge.f32.partialorder %v965, 0.0
        %vm1046 = vcmp.ge.f32.partialorder %v855, 0.0
        %vm1047 = vcmp.ge.f32.partialorder %v968, 0.0
        %vm1048 = vcmp.ge.f32.partialorder %v858, 0.0
        %vm1049 = vcmp.ge.f32.partialorder %v971, 0.0
        %vm1050 = vcmp.ge.f32.partialorder %v861, 0.0
        %vm1051 = vcmp.ge.f32.partialorder %v974, 0.0
        %vm1052 = vcmp.ge.f32.partialorder %v864, 0.0
        %vm1053 = vcmp.ge.f32.partialorder %v977, 0.0
        %vm1054 = vcmp.ge.f32.partialorder %v867, 0.0
        %vm1055 = vcmp.ge.f32.partialorder %v980, 0.0
        %vm1056 = vcmp.ge.f32.partialorder %v870, 0.0
        %vm1057 = vcmp.ge.f32.partialorder %v983, 0.0
        %vm1058 = vcmp.ge.f32.partialorder %v873, 0.0
        %vm1059 = vcmp.ge.f32.partialorder %v986, 0.0
        %vm1060 = vcmp.ge.f32.partialorder %v876, 0.0
        %vm1061 = vcmp.ge.f32.partialorder %v989, 0.0
        %vm1062 = vcmp.ge.f32.partialorder %v879, 0.0
        %vm1063 = vcmp.ge.f32.partialorder %v992, 0.0
        %vm1064 = vcmp.ge.f32.partialorder %v882, 0.0
        %vm1065 = vcmp.ge.f32.partialorder %v995, 0.0
        %vm1066 = vcmp.ge.f32.partialorder %v885, 0.0
        %vm1067 = vcmp.ge.f32.partialorder %v998, 0.0
        %vm1068 = vcmp.ge.f32.partialorder %v888, 0.0
        %vm1069 = vcmp.ge.f32.partialorder %v1001, 0.0
        %vm1070 = vcmp.ge.f32.partialorder %v891, 0.0
        %vm1071 = vcmp.ge.f32.partialorder %v1004, 0.0
        %vm1072 = vcmp.ge.f32.partialorder %v894, 0.0
        %vm1073 = vcmp.ge.f32.partialorder %v1007, 0.0
        %vm1074 = vcmp.ge.f32.partialorder %v897, 0.0
        %vm1075 = vcmp.ge.f32.partialorder %v1010, 0.0
        %v1076 = vmul.f32 %v804, 0.2
        %v1077 = vmul.f32 %v917, 0.2
        %v1078 = vmul.f32 %v807, 0.2
        %v1079 = vmul.f32 %v920, 0.2
        %v1080 = vmul.f32 %v810, 0.2
        %v1081 = vmul.f32 %v923, 0.2
        %v1082 = vmul.f32 %v813, 0.2
        %v1083 = vmul.f32 %v926, 0.2
        %v1084 = vmul.f32 %v816, 0.2
        %v1085 = vmul.f32 %v929, 0.2
        %v1086 = vmul.f32 %v819, 0.2
        %v1087 = vmul.f32 %v932, 0.2
        %v1088 = vmul.f32 %v822, 0.2
        %v1089 = vmul.f32 %v935, 0.2
        %v1090 = vmul.f32 %v825, 0.2
        %v1091 = vmul.f32 %v938, 0.2
        %v1092 = vmul.f32 %v828, 0.2
        %v1093 = vmul.f32 %v941, 0.2
        %v1094 = vmul.f32 %v831, 0.2
        %v1095 = vmul.f32 %v944, 0.2
        %v1096 = vmul.f32 %v834, 0.2
        %v1097 = vmul.f32 %v947, 0.2
        %v1098 = vmul.f32 %v837, 0.2
        %v1099 = vmul.f32 %v950, 0.2
        %v1100 = vmul.f32 %v840, 0.2
        %v1101 = vmul.f32 %v953, 0.2
        %v1102 = vmul.f32 %v843, 0.2
        %v1103 = vmul.f32 %v956, 0.2
        %v1104 = vmul.f32 %v846, 0.2
        %v1105 = vmul.f32 %v959, 0.2
        %v1106 = vmul.f32 %v849, 0.2
        %v1107 = vmul.f32 %v962, 0.2
        %v1108 = vmul.f32 %v852, 0.2
        %v1109 = vmul.f32 %v965, 0.2
        %v1110 = vmul.f32 %v855, 0.2
        %v1111 = vmul.f32 %v968, 0.2
        %v1112 = vmul.f32 %v858, 0.2
        %v1113 = vmul.f32 %v971, 0.2
        %v1114 = vmul.f32 %v861, 0.2
        %v1115 = vmul.f32 %v974, 0.2
        %v1116 = vmul.f32 %v864, 0.2
        %v1117 = vmul.f32 %v977, 0.2
        %v1118 = vmul.f32 %v867, 0.2
        %v1119 = vmul.f32 %v980, 0.2
        %v1120 = vmul.f32 %v870, 0.2
        %v1121 = vmul.f32 %v983, 0.2
        %v1122 = vmul.f32 %v873, 0.2
        %v1123 = vmul.f32 %v986, 0.2
        %v1124 = vmul.f32 %v876, 0.2
        %v1125 = vmul.f32 %v989, 0.2
        %v1126 = vmul.f32 %v879, 0.2
        %v1127 = vmul.f32 %v992, 0.2
        %v1128 = vmul.f32 %v882, 0.2
        %v1129 = vmul.f32 %v995, 0.2
        %v1130 = vmul.f32 %v885, 0.2
        %v1131 = vmul.f32 %v998, 0.2
        %v1132 = vmul.f32 %v888, 0.2
        %v1133 = vmul.f32 %v1001, 0.2
        %v1134 = vmul.f32 %v891, 0.2
        %v1135 = vmul.f32 %v1004, 0.2
        %v1136 = vmul.f32 %v894, 0.2
        %v1137 = vmul.f32 %v1007, 0.2
        %v1138 = vmul.f32 %v897, 0.2
        %v1139 = vmul.f32 %v1010, 0.2
        %v1140 = vsel %vm1012, %v804, %v1076
        %v1141 = vsel %vm1013, %v917, %v1077
        %v1142 = vsel %vm1014, %v807, %v1078
        %v1143 = vsel %vm1015, %v920, %v1079
        %v1144 = vsel %vm1016, %v810, %v1080
        %v1145 = vsel %vm1017, %v923, %v1081
        %v1146 = vsel %vm1018, %v813, %v1082
        %v1147 = vsel %vm1019, %v926, %v1083
        %v1148 = vsel %vm1020, %v816, %v1084
        %v1149 = vsel %vm1021, %v929, %v1085
        %v1150 = vsel %vm1022, %v819, %v1086
        %v1151 = vsel %vm1023, %v932, %v1087
        %v1152 = vsel %vm1024, %v822, %v1088
        %v1153 = vsel %vm1025, %v935, %v1089
        %v1154 = vsel %vm1026, %v825, %v1090
        %v1155 = vsel %vm1027, %v938, %v1091
        %v1156 = vsel %vm1028, %v828, %v1092
        %v1157 = vsel %vm1029, %v941, %v1093
        %v1158 = vsel %vm1030, %v831, %v1094
        %v1159 = vsel %vm1031, %v944, %v1095
        %v1160 = vsel %vm1032, %v834, %v1096
        %v1161 = vsel %vm1033, %v947, %v1097
        %v1162 = vsel %vm1034, %v837, %v1098
        %v1163 = vsel %vm1035, %v950, %v1099
        %v1164 = vsel %vm1036, %v840, %v1100
        %v1165 = vsel %vm1037, %v953, %v1101
        %v1166 = vsel %vm1038, %v843, %v1102
        %v1167 = vsel %vm1039, %v956, %v1103
        %v1168 = vsel %vm1040, %v846, %v1104
        %v1169 = vsel %vm1041, %v959, %v1105
        %v1170 = vsel %vm1042, %v849, %v1106
        %v1171 = vsel %vm1043, %v962, %v1107
        %v1172 = vsel %vm1044, %v852, %v1108
        %v1173 = vsel %vm1045, %v965, %v1109
        %v1174 = vsel %vm1046, %v855, %v1110
        %v1175 = vsel %vm1047, %v968, %v1111
        %v1176 = vsel %vm1048, %v858, %v1112
        %v1177 = vsel %vm1049, %v971, %v1113
        %v1178 = vsel %vm1050, %v861, %v1114
        %v1179 = vsel %vm1051, %v974, %v1115
        %v1180 = vsel %vm1052, %v864, %v1116
        %v1181 = vsel %vm1053, %v977, %v1117
        %v1182 = vsel %vm1054, %v867, %v1118
        %v1183 = vsel %vm1055, %v980, %v1119
        %v1184 = vsel %vm1056, %v870, %v1120
        %v1185 = vsel %vm1057, %v983, %v1121
        %v1186 = vsel %vm1058, %v873, %v1122
        %v1187 = vsel %vm1059, %v986, %v1123
        %v1188 = vsel %vm1060, %v876, %v1124
        %v1189 = vsel %vm1061, %v989, %v1125
        %v1190 = vsel %vm1062, %v879, %v1126
        %v1191 = vsel %vm1063, %v992, %v1127
        %v1192 = vsel %vm1064, %v882, %v1128
        %v1193 = vsel %vm1065, %v995, %v1129
        %v1194 = vsel %vm1066, %v885, %v1130
        %v1195 = vsel %vm1067, %v998, %v1131
        %v1196 = vsel %vm1068, %v888, %v1132
        %v1197 = vsel %vm1069, %v1001, %v1133
        %v1198 = vsel %vm1070, %v891, %v1134
        %v1199 = vsel %vm1071, %v1004, %v1135
        %v1200 = vsel %vm1072, %v894, %v1136
        %v1201 = vsel %vm1073, %v1007, %v1137
        %v1202 = vsel %vm1074, %v897, %v1138
        %v1203 = vsel %vm1075, %v1010, %v1139
        %v1204 = vld [vmem:[%s4] sm:$0xff]
        %v1205 = vld [vmem:[%s4 + $0x8] sm:$0xff]
        %v1206 = vld [vmem:[%s4 + $0x10] sm:$0xff]
        %v1207 = vld [vmem:[%s4 + $0x18] sm:$0xff]
        %v1208 = vld [vmem:[%s4 + $0x20] sm:$0xff]
        %v1209 = vld [vmem:[%s4 + $0x28] sm:$0xff]
        %v1210 = vld [vmem:[%s4 + $0x30] sm:$0xff]
        %v1211 = vld [vmem:[%s4 + $0x38] sm:$0xff]
        %v1212 = vld [vmem:[%s4 + $0x40] sm:$0xff]
        %v1213 = vld [vmem:[%s4 + $0x48] sm:$0xff]
        %v1214 = vld [vmem:[%s4 + $0x50] sm:$0xff]
        %v1215 = vld [vmem:[%s4 + $0x58] sm:$0xff]
        %v1216 = vld [vmem:[%s4 + $0x60] sm:$0xff]
        %v1217 = vld [vmem:[%s4 + $0x68] sm:$0xff]
        %v1218 = vld [vmem:[%s4 + $0x70] sm:$0xff]
        %v1219 = vld [vmem:[%s4 + $0x78] sm:$0xff]
        %v1220 = vld [vmem:[%s4 + $0x80] sm:$0xff]
        %v1221 = vld [vmem:[%s4 + $0x88] sm:$0xff]
        %v1222 = vld [vmem:[%s4 + $0x90] sm:$0xff]
        %v1223 = vld [vmem:[%s4 + $0x98] sm:$0xff]
        %v1224 = vld [vmem:[%s4 + $0xa0] sm:$0xff]
        %v1225 = vld [vmem:[%s4 + $0xa8] sm:$0xff]
        %v1226 = vld [vmem:[%s4 + $0xb0] sm:$0xff]
        %v1227 = vld [vmem:[%s4 + $0xb8] sm:$0xff]
        %v1228 = vld [vmem:[%s4 + $0xc0] sm:$0xff]
        %v1229 = vld [vmem:[%s4 + $0xc8] sm:$0xff]
        %v1230 = vld [vmem:[%s4 + $0xd0] sm:$0xff]
        %v1231 = vld [vmem:[%s4 + $0xd8] sm:$0xff]
        %v1232 = vld [vmem:[%s4 + $0xe0] sm:$0xff]
        %v1233 = vld [vmem:[%s4 + $0xe8] sm:$0xff]
        %v1234 = vld [vmem:[%s4 + $0xf0] sm:$0xff]
        %v1235 = vld [vmem:[%s4 + $0xf8] sm:$0xff]
        %v1236 = vld [vmem:[%s4 + $0x100] sm:$0xff]
        %v1237 = vld [vmem:[%s4 + $0x108] sm:$0xff]
        %v1238 = vld [vmem:[%s4 + $0x110] sm:$0xff]
        %v1239 = vld [vmem:[%s4 + $0x118] sm:$0xff]
        %v1240 = vld [vmem:[%s4 + $0x120] sm:$0xff]
        %v1241 = vld [vmem:[%s4 + $0x128] sm:$0xff]
        %v1242 = vld [vmem:[%s4 + $0x130] sm:$0xff]
        %v1243 = vld [vmem:[%s4 + $0x138] sm:$0xff]
        %v1244 = vld [vmem:[%s4 + $0x140] sm:$0xff]
        %v1245 = vld [vmem:[%s4 + $0x148] sm:$0xff]
        %v1246 = vld [vmem:[%s4 + $0x150] sm:$0xff]
        %v1247 = vld [vmem:[%s4 + $0x158] sm:$0xff]
        %v1248 = vld [vmem:[%s4 + $0x160] sm:$0xff]
        %v1249 = vld [vmem:[%s4 + $0x168] sm:$0xff]
        %v1250 = vld [vmem:[%s4 + $0x170] sm:$0xff]
        %v1251 = vld [vmem:[%s4 + $0x178] sm:$0xff]
        %v1252 = vld [vmem:[%s4 + $0x180] sm:$0xff]
        %v1253 = vld [vmem:[%s4 + $0x188] sm:$0xff]
        %v1254 = vld [vmem:[%s4 + $0x190] sm:$0xff]
        %v1255 = vld [vmem:[%s4 + $0x198] sm:$0xff]
        %v1256 = vld [vmem:[%s4 + $0x1a0] sm:$0xff]
        %v1257 = vld [vmem:[%s4 + $0x1a8] sm:$0xff]
        %v1258 = vld [vmem:[%s4 + $0x1b0] sm:$0xff]
        %v1259 = vld [vmem:[%s4 + $0x1b8] sm:$0xff]
        %v1260 = vld [vmem:[%s4 + $0x1c0] sm:$0xff]
        %v1261 = vld [vmem:[%s4 + $0x1c8] sm:$0xff]
        %v1262 = vld [vmem:[%s4 + $0x1d0] sm:$0xff]
        %v1263 = vld [vmem:[%s4 + $0x1d8] sm:$0xff]
        %v1264 = vld [vmem:[%s4 + $0x1e0] sm:$0xff]
        %v1265 = vld [vmem:[%s4 + $0x1e8] sm:$0xff]
        %v1266 = vld [vmem:[%s4 + $0x1f0] sm:$0xff]
        %v1267 = vld [vmem:[%s4 + $0x1f8] sm:$0xff]
        %v1268 = vld [vmem:[#allocation7] sm:$0x3]
        %v1270 = vperm.slane %v1268, 0
        %v1271 = vperm.slane %v1268, 1
        %1274 = vmatpush.msra.mxu0 %v1234
        %1275 = vmatpush.msra.mxu0 %v1232
        %1276 = vmatpush.msra.mxu0 %v1230
        %1277 = vmatpush.msra.mxu0 %v1228
        %1278 = vmatpush.msra.mxu0 %v1226
        %1279 = vmatpush.msra.mxu0 %v1224
        %1280 = vmatpush.msra.mxu0 %v1222
        %1281 = vmatpush.msra.mxu0 %v1220
        %1282 = vmatpush.msra.mxu0 %v1218
        %1283 = vmatpush.msra.mxu0 %v1216
        %1284 = vmatpush.msra.mxu0 %v1214
        %1285 = vmatpush.msra.mxu0 %v1212
        %1286 = vmatpush.msra.mxu0 %v1210
        %1287 = vmatpush.msra.mxu0 %v1208
        %1288 = vmatpush.msra.mxu0 %v1206
        %1289 = vmatpush.msra.mxu0 %v1204
        %1290 = vmatmul.f32.gmra.mxu0 %v1140
        %v1291 = vpop.f32.mrf.mxu0
        %v1292 = vadd.f32 %v1270, %v1291
        %1293 = vmatmul.f32.gmra.mxu0 %v1142
        %v1294 = vpop.f32.mrf.mxu0
        %v1295 = vadd.f32 %v1270, %v1294
        %1296 = vmatmul.f32.gmra.mxu0 %v1144
        %v1297 = vpop.f32.mrf.mxu0
        %v1298 = vadd.f32 %v1270, %v1297
        %1299 = vmatmul.f32.gmra.mxu0 %v1146
        %v1300 = vpop.f32.mrf.mxu0
        %v1301 = vadd.f32 %v1270, %v1300
        %1302 = vmatmul.f32.gmra.mxu0 %v1148
        %v1303 = vpop.f32.mrf.mxu0
        %v1304 = vadd.f32 %v1270, %v1303
        %1305 = vmatmul.f32.gmra.mxu0 %v1150
        %v1306 = vpop.f32.mrf.mxu0
        %v1307 = vadd.f32 %v1270, %v1306
        %1308 = vmatmul.f32.gmra.mxu0 %v1152
        %v1309 = vpop.f32.mrf.mxu0
        %v1310 = vadd.f32 %v1270, %v1309
        %1311 = vmatmul.f32.gmra.mxu0 %v1154
        %v1312 = vpop.f32.mrf.mxu0
        %v1313 = vadd.f32 %v1270, %v1312
        %1314 = vmatmul.f32.gmra.mxu0 %v1156
        %v1315 = vpop.f32.mrf.mxu0
        %v1316 = vadd.f32 %v1270, %v1315
        %1317 = vmatmul.f32.gmra.mxu0 %v1158
        %v1318 = vpop.f32.mrf.mxu0
        %v1319 = vadd.f32 %v1270, %v1318
        %1320 = vmatmul.f32.gmra.mxu0 %v1160
        %v1321 = vpop.f32.mrf.mxu0
        %v1322 = vadd.f32 %v1270, %v1321
        %1323 = vmatmul.f32.gmra.mxu0 %v1162
        %v1324 = vpop.f32.mrf.mxu0
        %v1325 = vadd.f32 %v1270, %v1324
        %1326 = vmatmul.f32.gmra.mxu0 %v1164
        %v1327 = vpop.f32.mrf.mxu0
        %v1328 = vadd.f32 %v1270, %v1327
        %1329 = vmatmul.f32.gmra.mxu0 %v1166
        %v1330 = vpop.f32.mrf.mxu0
        %v1331 = vadd.f32 %v1270, %v1330
        %1332 = vmatmul.f32.gmra.mxu0 %v1168
        %v1333 = vpop.f32.mrf.mxu0
        %v1334 = vadd.f32 %v1270, %v1333
        %1335 = vmatmul.f32.gmra.mxu0 %v1170
        %v1336 = vpop.f32.mrf.mxu0
        %v1337 = vadd.f32 %v1270, %v1336
        %1338 = vmatmul.f32.gmra.mxu0 %v1172
        %v1339 = vpop.f32.mrf.mxu0
        %v1340 = vadd.f32 %v1270, %v1339
        %1341 = vmatmul.f32.gmra.mxu0 %v1174
        %v1342 = vpop.f32.mrf.mxu0
        %v1343 = vadd.f32 %v1270, %v1342
        %1344 = vmatmul.f32.gmra.mxu0 %v1176
        %v1345 = vpop.f32.mrf.mxu0
        %v1346 = vadd.f32 %v1270, %v1345
        %1347 = vmatmul.f32.gmra.mxu0 %v1178
        %v1348 = vpop.f32.mrf.mxu0
        %v1349 = vadd.f32 %v1270, %v1348
        %1350 = vmatmul.f32.gmra.mxu0 %v1180
        %v1351 = vpop.f32.mrf.mxu0
        %v1352 = vadd.f32 %v1270, %v1351
        %1353 = vmatmul.f32.gmra.mxu0 %v1182
        %v1354 = vpop.f32.mrf.mxu0
        %v1355 = vadd.f32 %v1270, %v1354
        %1356 = vmatmul.f32.gmra.mxu0 %v1184
        %v1357 = vpop.f32.mrf.mxu0
        %v1358 = vadd.f32 %v1270, %v1357
        %1359 = vmatmul.f32.gmra.mxu0 %v1186
        %v1360 = vpop.f32.mrf.mxu0
        %v1361 = vadd.f32 %v1270, %v1360
        %1362 = vmatmul.f32.gmra.mxu0 %v1188
        %v1363 = vpop.f32.mrf.mxu0
        %v1364 = vadd.f32 %v1270, %v1363
        %1365 = vmatmul.f32.gmra.mxu0 %v1190
        %v1366 = vpop.f32.mrf.mxu0
        %v1367 = vadd.f32 %v1270, %v1366
        %1368 = vmatmul.f32.gmra.mxu0 %v1192
        %v1369 = vpop.f32.mrf.mxu0
        %v1370 = vadd.f32 %v1270, %v1369
        %1371 = vmatmul.f32.gmra.mxu0 %v1194
        %v1372 = vpop.f32.mrf.mxu0
        %v1373 = vadd.f32 %v1270, %v1372
        %1374 = vmatmul.f32.gmra.mxu0 %v1196
        %v1375 = vpop.f32.mrf.mxu0
        %v1376 = vadd.f32 %v1270, %v1375
        %1377 = vmatmul.f32.gmra.mxu0 %v1198
        %v1378 = vpop.f32.mrf.mxu0
        %v1379 = vadd.f32 %v1270, %v1378
        %1380 = vmatmul.f32.gmra.mxu0 %v1200
        %v1381 = vpop.f32.mrf.mxu0
        %v1382 = vadd.f32 %v1270, %v1381
        %1383 = vmatmul.f32.gmra.mxu0 %v1202
        %v1384 = vpop.f32.mrf.mxu0
        %v1385 = vadd.f32 %v1270, %v1384
        %1386 = vdwg.mxu0
        %1387 = vmatpush.msra.mxu0 %v1266
        %1388 = vmatpush.msra.mxu0 %v1264
        %1389 = vmatpush.msra.mxu0 %v1262
        %1390 = vmatpush.msra.mxu0 %v1260
        %1391 = vmatpush.msra.mxu0 %v1258
        %1392 = vmatpush.msra.mxu0 %v1256
        %1393 = vmatpush.msra.mxu0 %v1254
        %1394 = vmatpush.msra.mxu0 %v1252
        %1395 = vmatpush.msra.mxu0 %v1250
        %1396 = vmatpush.msra.mxu0 %v1248
        %1397 = vmatpush.msra.mxu0 %v1246
        %1398 = vmatpush.msra.mxu0 %v1244
        %1399 = vmatpush.msra.mxu0 %v1242
        %1400 = vmatpush.msra.mxu0 %v1240
        %1401 = vmatpush.msra.mxu0 %v1238
        %1402 = vmatpush.msra.mxu0 %v1236
        %1403 = vmatmul.f32.gmra.mxu0 %v1141
        %v1404 = vpop.f32.mrf.mxu0
        %v1405 = vadd.f32 %v1292, %v1404
        %1406 = vmatmul.f32.gmra.mxu0 %v1143
        %v1407 = vpop.f32.mrf.mxu0
        %v1408 = vadd.f32 %v1295, %v1407
        %1409 = vmatmul.f32.gmra.mxu0 %v1145
        %v1410 = vpop.f32.mrf.mxu0
        %v1411 = vadd.f32 %v1298, %v1410
        %1412 = vmatmul.f32.gmra.mxu0 %v1147
        %v1413 = vpop.f32.mrf.mxu0
        %v1414 = vadd.f32 %v1301, %v1413
        %1415 = vmatmul.f32.gmra.mxu0 %v1149
        %v1416 = vpop.f32.mrf.mxu0
        %v1417 = vadd.f32 %v1304, %v1416
        %1418 = vmatmul.f32.gmra.mxu0 %v1151
        %v1419 = vpop.f32.mrf.mxu0
        %v1420 = vadd.f32 %v1307, %v1419
        %1421 = vmatmul.f32.gmra.mxu0 %v1153
        %v1422 = vpop.f32.mrf.mxu0
        %v1423 = vadd.f32 %v1310, %v1422
        %1424 = vmatmul.f32.gmra.mxu0 %v1155
        %v1425 = vpop.f32.mrf.mxu0
        %v1426 = vadd.f32 %v1313, %v1425
        %1427 = vmatmul.f32.gmra.mxu0 %v1157
        %v1428 = vpop.f32.mrf.mxu0
        %v1429 = vadd.f32 %v1316, %v1428
        %1430 = vmatmul.f32.gmra.mxu0 %v1159
        %v1431 = vpop.f32.mrf.mxu0
        %v1432 = vadd.f32 %v1319, %v1431
        %1433 = vmatmul.f32.gmra.mxu0 %v1161
        %v1434 = vpop.f32.mrf.mxu0
        %v1435 = vadd.f32 %v1322, %v1434
        %1436 = vmatmul.f32.gmra.mxu0 %v1163
        %v1437 = vpop.f32.mrf.mxu0
        %v1438 = vadd.f32 %v1325, %v1437
        %1439 = vmatmul.f32.gmra.mxu0 %v1165
        %v1440 = vpop.f32.mrf.mxu0
        %v1441 = vadd.f32 %v1328, %v1440
        %1442 = vmatmul.f32.gmra.mxu0 %v1167
        %v1443 = vpop.f32.mrf.mxu0
        %v1444 = vadd.f32 %v1331, %v1443
        %1445 = vmatmul.f32.gmra.mxu0 %v1169
        %v1446 = vpop.f32.mrf.mxu0
        %v1447 = vadd.f32 %v1334, %v1446
        %1448 = vmatmul.f32.gmra.mxu0 %v1171
        %v1449 = vpop.f32.mrf.mxu0
        %v1450 = vadd.f32 %v1337, %v1449
        %1451 = vmatmul.f32.gmra.mxu0 %v1173
        %v1452 = vpop.f32.mrf.mxu0
        %v1453 = vadd.f32 %v1340, %v1452
        %1454 = vmatmul.f32.gmra.mxu0 %v1175
        %v1455 = vpop.f32.mrf.mxu0
        %v1456 = vadd.f32 %v1343, %v1455
        %1457 = vmatmul.f32.gmra.mxu0 %v1177
        %v1458 = vpop.f32.mrf.mxu0
        %v1459 = vadd.f32 %v1346, %v1458
        %1460 = vmatmul.f32.gmra.mxu0 %v1179
        %v1461 = vpop.f32.mrf.mxu0
        %v1462 = vadd.f32 %v1349, %v1461
        %1463 = vmatmul.f32.gmra.mxu0 %v1181
        %v1464 = vpop.f32.mrf.mxu0
        %v1465 = vadd.f32 %v1352, %v1464
        %1466 = vmatmul.f32.gmra.mxu0 %v1183
        %v1467 = vpop.f32.mrf.mxu0
        %v1468 = vadd.f32 %v1355, %v1467
        %1469 = vmatmul.f32.gmra.mxu0 %v1185
        %v1470 = vpop.f32.mrf.mxu0
        %v1471 = vadd.f32 %v1358, %v1470
        %1472 = vmatmul.f32.gmra.mxu0 %v1187
        %v1473 = vpop.f32.mrf.mxu0
        %v1474 = vadd.f32 %v1361, %v1473
        %1475 = vmatmul.f32.gmra.mxu0 %v1189
        %v1476 = vpop.f32.mrf.mxu0
        %v1477 = vadd.f32 %v1364, %v1476
        %1478 = vmatmul.f32.gmra.mxu0 %v1191
        %v1479 = vpop.f32.mrf.mxu0
        %v1480 = vadd.f32 %v1367, %v1479
        %1481 = vmatmul.f32.gmra.mxu0 %v1193
        %v1482 = vpop.f32.mrf.mxu0
        %v1483 = vadd.f32 %v1370, %v1482
        %1484 = vmatmul.f32.gmra.mxu0 %v1195
        %v1485 = vpop.f32.mrf.mxu0
        %v1486 = vadd.f32 %v1373, %v1485
        %1487 = vmatmul.f32.gmra.mxu0 %v1197
        %v1488 = vpop.f32.mrf.mxu0
        %v1489 = vadd.f32 %v1376, %v1488
        %1490 = vmatmul.f32.gmra.mxu0 %v1199
        %v1491 = vpop.f32.mrf.mxu0
        %v1492 = vadd.f32 %v1379, %v1491
        %1493 = vmatmul.f32.gmra.mxu0 %v1201
        %v1494 = vpop.f32.mrf.mxu0
        %v1495 = vadd.f32 %v1382, %v1494
        %1496 = vmatmul.f32.gmra.mxu0 %v1203
        %v1497 = vpop.f32.mrf.mxu0
        %v1498 = vadd.f32 %v1385, %v1497
        %1499 = vdwg.mxu0
        %1500 = vmatpush.msra.mxu0 %v1235
        %1501 = vmatpush.msra.mxu0 %v1233
        %1502 = vmatpush.msra.mxu0 %v1231
        %1503 = vmatpush.msra.mxu0 %v1229
        %1504 = vmatpush.msra.mxu0 %v1227
        %1505 = vmatpush.msra.mxu0 %v1225
        %1506 = vmatpush.msra.mxu0 %v1223
        %1507 = vmatpush.msra.mxu0 %v1221
        %1508 = vmatpush.msra.mxu0 %v1219
        %1509 = vmatpush.msra.mxu0 %v1217
        %1510 = vmatpush.msra.mxu0 %v1215
        %1511 = vmatpush.msra.mxu0 %v1213
        %1512 = vmatpush.msra.mxu0 %v1211
        %1513 = vmatpush.msra.mxu0 %v1209
        %1514 = vmatpush.msra.mxu0 %v1207
        %1515 = vmatpush.msra.mxu0 %v1205
        %1516 = vmatmul.f32.gmra.mxu0 %v1140
        %v1517 = vpop.f32.mrf.mxu0
        %v1518 = vadd.f32 %v1271, %v1517
        %1519 = vmatmul.f32.gmra.mxu0 %v1142
        %v1520 = vpop.f32.mrf.mxu0
        %v1521 = vadd.f32 %v1271, %v1520
        %1522 = vmatmul.f32.gmra.mxu0 %v1144
        %v1523 = vpop.f32.mrf.mxu0
        %v1524 = vadd.f32 %v1271, %v1523
        %1525 = vmatmul.f32.gmra.mxu0 %v1146
        %v1526 = vpop.f32.mrf.mxu0
        %v1527 = vadd.f32 %v1271, %v1526
        %1528 = vmatmul.f32.gmra.mxu0 %v1148
        %v1529 = vpop.f32.mrf.mxu0
        %v1530 = vadd.f32 %v1271, %v1529
        %1531 = vmatmul.f32.gmra.mxu0 %v1150
        %v1532 = vpop.f32.mrf.mxu0
        %v1533 = vadd.f32 %v1271, %v1532
        %1534 = vmatmul.f32.gmra.mxu0 %v1152
        %v1535 = vpop.f32.mrf.mxu0
        %v1536 = vadd.f32 %v1271, %v1535
        %1537 = vmatmul.f32.gmra.mxu0 %v1154
        %v1538 = vpop.f32.mrf.mxu0
        %v1539 = vadd.f32 %v1271, %v1538
        %1540 = vmatmul.f32.gmra.mxu0 %v1156
        %v1541 = vpop.f32.mrf.mxu0
        %v1542 = vadd.f32 %v1271, %v1541
        %1543 = vmatmul.f32.gmra.mxu0 %v1158
        %v1544 = vpop.f32.mrf.mxu0
        %v1545 = vadd.f32 %v1271, %v1544
        %1546 = vmatmul.f32.gmra.mxu0 %v1160
        %v1547 = vpop.f32.mrf.mxu0
        %v1548 = vadd.f32 %v1271, %v1547
        %1549 = vmatmul.f32.gmra.mxu0 %v1162
        %v1550 = vpop.f32.mrf.mxu0
        %v1551 = vadd.f32 %v1271, %v1550
        %1552 = vmatmul.f32.gmra.mxu0 %v1164
        %v1553 = vpop.f32.mrf.mxu0
        %v1554 = vadd.f32 %v1271, %v1553
        %1555 = vmatmul.f32.gmra.mxu0 %v1166
        %v1556 = vpop.f32.mrf.mxu0
        %v1557 = vadd.f32 %v1271, %v1556
        %1558 = vmatmul.f32.gmra.mxu0 %v1168
        %v1559 = vpop.f32.mrf.mxu0
        %v1560 = vadd.f32 %v1271, %v1559
        %1561 = vmatmul.f32.gmra.mxu0 %v1170
        %v1562 = vpop.f32.mrf.mxu0
        %v1563 = vadd.f32 %v1271, %v1562
        %1564 = vmatmul.f32.gmra.mxu0 %v1172
        %v1565 = vpop.f32.mrf.mxu0
        %v1566 = vadd.f32 %v1271, %v1565
        %1567 = vmatmul.f32.gmra.mxu0 %v1174
        %v1568 = vpop.f32.mrf.mxu0
        %v1569 = vadd.f32 %v1271, %v1568
        %1570 = vmatmul.f32.gmra.mxu0 %v1176
        %v1571 = vpop.f32.mrf.mxu0
        %v1572 = vadd.f32 %v1271, %v1571
        %1573 = vmatmul.f32.gmra.mxu0 %v1178
        %v1574 = vpop.f32.mrf.mxu0
        %v1575 = vadd.f32 %v1271, %v1574
        %1576 = vmatmul.f32.gmra.mxu0 %v1180
        %v1577 = vpop.f32.mrf.mxu0
        %v1578 = vadd.f32 %v1271, %v1577
        %1579 = vmatmul.f32.gmra.mxu0 %v1182
        %v1580 = vpop.f32.mrf.mxu0
        %v1581 = vadd.f32 %v1271, %v1580
        %1582 = vmatmul.f32.gmra.mxu0 %v1184
        %v1583 = vpop.f32.mrf.mxu0
        %v1584 = vadd.f32 %v1271, %v1583
        %1585 = vmatmul.f32.gmra.mxu0 %v1186
        %v1586 = vpop.f32.mrf.mxu0
        %v1587 = vadd.f32 %v1271, %v1586
        %1588 = vmatmul.f32.gmra.mxu0 %v1188
        %v1589 = vpop.f32.mrf.mxu0
        %v1590 = vadd.f32 %v1271, %v1589
        %1591 = vmatmul.f32.gmra.mxu0 %v1190
        %v1592 = vpop.f32.mrf.mxu0
        %v1593 = vadd.f32 %v1271, %v1592
        %1594 = vmatmul.f32.gmra.mxu0 %v1192
        %v1595 = vpop.f32.mrf.mxu0
        %v1596 = vadd.f32 %v1271, %v1595
        %1597 = vmatmul.f32.gmra.mxu0 %v1194
        %v1598 = vpop.f32.mrf.mxu0
        %v1599 = vadd.f32 %v1271, %v1598
        %1600 = vmatmul.f32.gmra.mxu0 %v1196
        %v1601 = vpop.f32.mrf.mxu0
        %v1602 = vadd.f32 %v1271, %v1601
        %1603 = vmatmul.f32.gmra.mxu0 %v1198
        %v1604 = vpop.f32.mrf.mxu0
        %v1605 = vadd.f32 %v1271, %v1604
        %1606 = vmatmul.f32.gmra.mxu0 %v1200
        %v1607 = vpop.f32.mrf.mxu0
        %v1608 = vadd.f32 %v1271, %v1607
        %1609 = vmatmul.f32.gmra.mxu0 %v1202
        %v1610 = vpop.f32.mrf.mxu0
        %v1611 = vadd.f32 %v1271, %v1610
        %1612 = vdwg.mxu0
        %1613 = vmatpush.msra.mxu0 %v1267
        %1614 = vmatpush.msra.mxu0 %v1265
        %1615 = vmatpush.msra.mxu0 %v1263
        %1616 = vmatpush.msra.mxu0 %v1261
        %1617 = vmatpush.msra.mxu0 %v1259
        %1618 = vmatpush.msra.mxu0 %v1257
        %1619 = vmatpush.msra.mxu0 %v1255
        %1620 = vmatpush.msra.mxu0 %v1253
        %1621 = vmatpush.msra.mxu0 %v1251
        %1622 = vmatpush.msra.mxu0 %v1249
        %1623 = vmatpush.msra.mxu0 %v1247
        %1624 = vmatpush.msra.mxu0 %v1245
        %1625 = vmatpush.msra.mxu0 %v1243
        %1626 = vmatpush.msra.mxu0 %v1241
        %1627 = vmatpush.msra.mxu0 %v1239
        %1628 = vmatpush.msra.mxu0 %v1237
        %1629 = vmatmul.f32.gmra.mxu0 %v1141
        %v1630 = vpop.f32.mrf.mxu0
        %v1631 = vadd.f32 %v1518, %v1630
        %1632 = vmatmul.f32.gmra.mxu0 %v1143
        %v1633 = vpop.f32.mrf.mxu0
        %v1634 = vadd.f32 %v1521, %v1633
        %1635 = vmatmul.f32.gmra.mxu0 %v1145
        %v1636 = vpop.f32.mrf.mxu0
        %v1637 = vadd.f32 %v1524, %v1636
        %1638 = vmatmul.f32.gmra.mxu0 %v1147
        %v1639 = vpop.f32.mrf.mxu0
        %v1640 = vadd.f32 %v1527, %v1639
        %1641 = vmatmul.f32.gmra.mxu0 %v1149
        %v1642 = vpop.f32.mrf.mxu0
        %v1643 = vadd.f32 %v1530, %v1642
        %1644 = vmatmul.f32.gmra.mxu0 %v1151
        %v1645 = vpop.f32.mrf.mxu0
        %v1646 = vadd.f32 %v1533, %v1645
        %1647 = vmatmul.f32.gmra.mxu0 %v1153
        %v1648 = vpop.f32.mrf.mxu0
        %v1649 = vadd.f32 %v1536, %v1648
        %1650 = vmatmul.f32.gmra.mxu0 %v1155
        %v1651 = vpop.f32.mrf.mxu0
        %v1652 = vadd.f32 %v1539, %v1651
        %1653 = vmatmul.f32.gmra.mxu0 %v1157
        %v1654 = vpop.f32.mrf.mxu0
        %v1655 = vadd.f32 %v1542, %v1654
        %1656 = vmatmul.f32.gmra.mxu0 %v1159
        %v1657 = vpop.f32.mrf.mxu0
        %v1658 = vadd.f32 %v1545, %v1657
        %1659 = vmatmul.f32.gmra.mxu0 %v1161
        %v1660 = vpop.f32.mrf.mxu0
        %v1661 = vadd.f32 %v1548, %v1660
        %1662 = vmatmul.f32.gmra.mxu0 %v1163
        %v1663 = vpop.f32.mrf.mxu0
        %v1664 = vadd.f32 %v1551, %v1663
        %1665 = vmatmul.f32.gmra.mxu0 %v1165
        %v1666 = vpop.f32.mrf.mxu0
        %v1667 = vadd.f32 %v1554, %v1666
        %1668 = vmatmul.f32.gmra.mxu0 %v1167
        %v1669 = vpop.f32.mrf.mxu0
        %v1670 = vadd.f32 %v1557, %v1669
        %1671 = vmatmul.f32.gmra.mxu0 %v1169
        %v1672 = vpop.f32.mrf.mxu0
        %v1673 = vadd.f32 %v1560, %v1672
        %1674 = vmatmul.f32.gmra.mxu0 %v1171
        %v1675 = vpop.f32.mrf.mxu0
        %v1676 = vadd.f32 %v1563, %v1675
        %1677 = vmatmul.f32.gmra.mxu0 %v1173
        %v1678 = vpop.f32.mrf.mxu0
        %v1679 = vadd.f32 %v1566, %v1678
        %1680 = vmatmul.f32.gmra.mxu0 %v1175
        %v1681 = vpop.f32.mrf.mxu0
        %v1682 = vadd.f32 %v1569, %v1681
        %1683 = vmatmul.f32.gmra.mxu0 %v1177
        %v1684 = vpop.f32.mrf.mxu0
        %v1685 = vadd.f32 %v1572, %v1684
        %1686 = vmatmul.f32.gmra.mxu0 %v1179
        %v1687 = vpop.f32.mrf.mxu0
        %v1688 = vadd.f32 %v1575, %v1687
        %1689 = vmatmul.f32.gmra.mxu0 %v1181
        %v1690 = vpop.f32.mrf.mxu0
        %v1691 = vadd.f32 %v1578, %v1690
        %1692 = vmatmul.f32.gmra.mxu0 %v1183
        %v1693 = vpop.f32.mrf.mxu0
        %v1694 = vadd.f32 %v1581, %v1693
        %1695 = vmatmul.f32.gmra.mxu0 %v1185
        %v1696 = vpop.f32.mrf.mxu0
        %v1697 = vadd.f32 %v1584, %v1696
        %1698 = vmatmul.f32.gmra.mxu0 %v1187
        %v1699 = vpop.f32.mrf.mxu0
        %v1700 = vadd.f32 %v1587, %v1699
        %1701 = vmatmul.f32.gmra.mxu0 %v1189
        %v1702 = vpop.f32.mrf.mxu0
        %v1703 = vadd.f32 %v1590, %v1702
        %1704 = vmatmul.f32.gmra.mxu0 %v1191
        %v1705 = vpop.f32.mrf.mxu0
        %v1706 = vadd.f32 %v1593, %v1705
        %1707 = vmatmul.f32.gmra.mxu0 %v1193
        %v1708 = vpop.f32.mrf.mxu0
        %v1709 = vadd.f32 %v1596, %v1708
        %1710 = vmatmul.f32.gmra.mxu0 %v1195
        %v1711 = vpop.f32.mrf.mxu0
        %v1712 = vadd.f32 %v1599, %v1711
        %1713 = vmatmul.f32.gmra.mxu0 %v1197
        %v1714 = vpop.f32.mrf.mxu0
        %v1715 = vadd.f32 %v1602, %v1714
        %1716 = vmatmul.f32.gmra.mxu0 %v1199
        %v1717 = vpop.f32.mrf.mxu0
        %v1718 = vadd.f32 %v1605, %v1717
        %1719 = vmatmul.f32.gmra.mxu0 %v1201
        %v1720 = vpop.f32.mrf.mxu0
        %v1721 = vadd.f32 %v1608, %v1720
        %1722 = vmatmul.f32.gmra.mxu0 %v1203
        %v1723 = vpop.f32.mrf.mxu0
        %v1724 = vadd.f32 %v1611, %v1723
        %1725 = vdwg.mxu0
        %vm1726 = vcmp.ge.f32.partialorder %v1405, 0.0
        %vm1727 = vcmp.ge.f32.partialorder %v1631, 0.0
        %vm1728 = vcmp.ge.f32.partialorder %v1408, 0.0
        %vm1729 = vcmp.ge.f32.partialorder %v1634, 0.0
        %vm1730 = vcmp.ge.f32.partialorder %v1411, 0.0
        %vm1731 = vcmp.ge.f32.partialorder %v1637, 0.0
        %vm1732 = vcmp.ge.f32.partialorder %v1414, 0.0
        %vm1733 = vcmp.ge.f32.partialorder %v1640, 0.0
        %vm1734 = vcmp.ge.f32.partialorder %v1417, 0.0
        %vm1735 = vcmp.ge.f32.partialorder %v1643, 0.0
        %vm1736 = vcmp.ge.f32.partialorder %v1420, 0.0
        %vm1737 = vcmp.ge.f32.partialorder %v1646, 0.0
        %vm1738 = vcmp.ge.f32.partialorder %v1423, 0.0
        %vm1739 = vcmp.ge.f32.partialorder %v1649, 0.0
        %vm1740 = vcmp.ge.f32.partialorder %v1426, 0.0
        %vm1741 = vcmp.ge.f32.partialorder %v1652, 0.0
        %vm1742 = vcmp.ge.f32.partialorder %v1429, 0.0
        %vm1743 = vcmp.ge.f32.partialorder %v1655, 0.0
        %vm1744 = vcmp.ge.f32.partialorder %v1432, 0.0
        %vm1745 = vcmp.ge.f32.partialorder %v1658, 0.0
        %vm1746 = vcmp.ge.f32.partialorder %v1435, 0.0
        %vm1747 = vcmp.ge.f32.partialorder %v1661, 0.0
        %vm1748 = vcmp.ge.f32.partialorder %v1438, 0.0
        %vm1749 = vcmp.ge.f32.partialorder %v1664, 0.0
        %vm1750 = vcmp.ge.f32.partialorder %v1441, 0.0
        %vm1751 = vcmp.ge.f32.partialorder %v1667, 0.0
        %vm1752 = vcmp.ge.f32.partialorder %v1444, 0.0
        %vm1753 = vcmp.ge.f32.partialorder %v1670, 0.0
        %vm1754 = vcmp.ge.f32.partialorder %v1447, 0.0
        %vm1755 = vcmp.ge.f32.partialorder %v1673, 0.0
        %vm1756 = vcmp.ge.f32.partialorder %v1450, 0.0
        %vm1757 = vcmp.ge.f32.partialorder %v1676, 0.0
        %vm1758 = vcmp.ge.f32.partialorder %v1453, 0.0
        %vm1759 = vcmp.ge.f32.partialorder %v1679, 0.0
        %vm1760 = vcmp.ge.f32.partialorder %v1456, 0.0
        %vm1761 = vcmp.ge.f32.partialorder %v1682, 0.0
        %vm1762 = vcmp.ge.f32.partialorder %v1459, 0.0
        %vm1763 = vcmp.ge.f32.partialorder %v1685, 0.0
        %vm1764 = vcmp.ge.f32.partialorder %v1462, 0.0
        %vm1765 = vcmp.ge.f32.partialorder %v1688, 0.0
        %vm1766 = vcmp.ge.f32.partialorder %v1465, 0.0
        %vm1767 = vcmp.ge.f32.partialorder %v1691, 0.0
        %vm1768 = vcmp.ge.f32.partialorder %v1468, 0.0
        %vm1769 = vcmp.ge.f32.partialorder %v1694, 0.0
        %vm1770 = vcmp.ge.f32.partialorder %v1471, 0.0
        %vm1771 = vcmp.ge.f32.partialorder %v1697, 0.0
        %vm1772 = vcmp.ge.f32.partialorder %v1474, 0.0
        %vm1773 = vcmp.ge.f32.partialorder %v1700, 0.0
        %vm1774 = vcmp.ge.f32.partialorder %v1477, 0.0
        %vm1775 = vcmp.ge.f32.partialorder %v1703, 0.0
        %vm1776 = vcmp.ge.f32.partialorder %v1480, 0.0
        %vm1777 = vcmp.ge.f32.partialorder %v1706, 0.0
        %vm1778 = vcmp.ge.f32.partialorder %v1483, 0.0
        %vm1779 = vcmp.ge.f32.partialorder %v1709, 0.0
        %vm1780 = vcmp.ge.f32.partialorder %v1486, 0.0
        %vm1781 = vcmp.ge.f32.partialorder %v1712, 0.0
        %vm1782 = vcmp.ge.f32.partialorder %v1489, 0.0
        %vm1783 = vcmp.ge.f32.partialorder %v1715, 0.0
        %vm1784 = vcmp.ge.f32.partialorder %v1492, 0.0
        %vm1785 = vcmp.ge.f32.partialorder %v1718, 0.0
        %vm1786 = vcmp.ge.f32.partialorder %v1495, 0.0
        %vm1787 = vcmp.ge.f32.partialorder %v1721, 0.0
        %vm1788 = vcmp.ge.f32.partialorder %v1498, 0.0
        %vm1789 = vcmp.ge.f32.partialorder %v1724, 0.0
        %v1790 = vmul.f32 %v1405, 0.2
        %v1791 = vmul.f32 %v1631, 0.2
        %v1792 = vmul.f32 %v1408, 0.2
        %v1793 = vmul.f32 %v1634, 0.2
        %v1794 = vmul.f32 %v1411, 0.2
        %v1795 = vmul.f32 %v1637, 0.2
        %v1796 = vmul.f32 %v1414, 0.2
        %v1797 = vmul.f32 %v1640, 0.2
        %v1798 = vmul.f32 %v1417, 0.2
        %v1799 = vmul.f32 %v1643, 0.2
        %v1800 = vmul.f32 %v1420, 0.2
        %v1801 = vmul.f32 %v1646, 0.2
        %v1802 = vmul.f32 %v1423, 0.2
        %v1803 = vmul.f32 %v1649, 0.2
        %v1804 = vmul.f32 %v1426, 0.2
        %v1805 = vmul.f32 %v1652, 0.2
        %v1806 = vmul.f32 %v1429, 0.2
        %v1807 = vmul.f32 %v1655, 0.2
        %v1808 = vmul.f32 %v1432, 0.2
        %v1809 = vmul.f32 %v1658, 0.2
        %v1810 = vmul.f32 %v1435, 0.2
        %v1811 = vmul.f32 %v1661, 0.2
        %v1812 = vmul.f32 %v1438, 0.2
        %v1813 = vmul.f32 %v1664, 0.2
        %v1814 = vmul.f32 %v1441, 0.2
        %v1815 = vmul.f32 %v1667, 0.2
        %v1816 = vmul.f32 %v1444, 0.2
        %v1817 = vmul.f32 %v1670, 0.2
        %v1818 = vmul.f32 %v1447, 0.2
        %v1819 = vmul.f32 %v1673, 0.2
        %v1820 = vmul.f32 %v1450, 0.2
        %v1821 = vmul.f32 %v1676, 0.2
        %v1822 = vmul.f32 %v1453, 0.2
        %v1823 = vmul.f32 %v1679, 0.2
        %v1824 = vmul.f32 %v1456, 0.2
        %v1825 = vmul.f32 %v1682, 0.2
        %v1826 = vmul.f32 %v1459, 0.2
        %v1827 = vmul.f32 %v1685, 0.2
        %v1828 = vmul.f32 %v1462, 0.2
        %v1829 = vmul.f32 %v1688, 0.2
        %v1830 = vmul.f32 %v1465, 0.2
        %v1831 = vmul.f32 %v1691, 0.2
        %v1832 = vmul.f32 %v1468, 0.2
        %v1833 = vmul.f32 %v1694, 0.2
        %v1834 = vmul.f32 %v1471, 0.2
        %v1835 = vmul.f32 %v1697, 0.2
        %v1836 = vmul.f32 %v1474, 0.2
        %v1837 = vmul.f32 %v1700, 0.2
        %v1838 = vmul.f32 %v1477, 0.2
        %v1839 = vmul.f32 %v1703, 0.2
        %v1840 = vmul.f32 %v1480, 0.2
        %v1841 = vmul.f32 %v1706, 0.2
        %v1842 = vmul.f32 %v1483, 0.2
        %v1843 = vmul.f32 %v1709, 0.2
        %v1844 = vmul.f32 %v1486, 0.2
        %v1845 = vmul.f32 %v1712, 0.2
        %v1846 = vmul.f32 %v1489, 0.2
        %v1847 = vmul.f32 %v1715, 0.2
        %v1848 = vmul.f32 %v1492, 0.2
        %v1849 = vmul.f32 %v1718, 0.2
        %v1850 = vmul.f32 %v1495, 0.2
        %v1851 = vmul.f32 %v1721, 0.2
        %v1852 = vmul.f32 %v1498, 0.2
        %v1853 = vmul.f32 %v1724, 0.2
        %v1854 = vsel %vm1726, %v1405, %v1790
        %v1855 = vsel %vm1727, %v1631, %v1791
        %v1856 = vsel %vm1728, %v1408, %v1792
        %v1857 = vsel %vm1729, %v1634, %v1793
        %v1858 = vsel %vm1730, %v1411, %v1794
        %v1859 = vsel %vm1731, %v1637, %v1795
        %v1860 = vsel %vm1732, %v1414, %v1796
        %v1861 = vsel %vm1733, %v1640, %v1797
        %v1862 = vsel %vm1734, %v1417, %v1798
        %v1863 = vsel %vm1735, %v1643, %v1799
        %v1864 = vsel %vm1736, %v1420, %v1800
        %v1865 = vsel %vm1737, %v1646, %v1801
        %v1866 = vsel %vm1738, %v1423, %v1802
        %v1867 = vsel %vm1739, %v1649, %v1803
        %v1868 = vsel %vm1740, %v1426, %v1804
        %v1869 = vsel %vm1741, %v1652, %v1805
        %v1870 = vsel %vm1742, %v1429, %v1806
        %v1871 = vsel %vm1743, %v1655, %v1807
        %v1872 = vsel %vm1744, %v1432, %v1808
        %v1873 = vsel %vm1745, %v1658, %v1809
        %v1874 = vsel %vm1746, %v1435, %v1810
        %v1875 = vsel %vm1747, %v1661, %v1811
        %v1876 = vsel %vm1748, %v1438, %v1812
        %v1877 = vsel %vm1749, %v1664, %v1813
        %v1878 = vsel %vm1750, %v1441, %v1814
        %v1879 = vsel %vm1751, %v1667, %v1815
        %v1880 = vsel %vm1752, %v1444, %v1816
        %v1881 = vsel %vm1753, %v1670, %v1817
        %v1882 = vsel %vm1754, %v1447, %v1818
        %v1883 = vsel %vm1755, %v1673, %v1819
        %v1884 = vsel %vm1756, %v1450, %v1820
        %v1885 = vsel %vm1757, %v1676, %v1821
        %v1886 = vsel %vm1758, %v1453, %v1822
        %v1887 = vsel %vm1759, %v1679, %v1823
        %v1888 = vsel %vm1760, %v1456, %v1824
        %v1889 = vsel %vm1761, %v1682, %v1825
        %v1890 = vsel %vm1762, %v1459, %v1826
        %v1891 = vsel %vm1763, %v1685, %v1827
        %v1892 = vsel %vm1764, %v1462, %v1828
        %v1893 = vsel %vm1765, %v1688, %v1829
        %v1894 = vsel %vm1766, %v1465, %v1830
        %v1895 = vsel %vm1767, %v1691, %v1831
        %v1896 = vsel %vm1768, %v1468, %v1832
        %v1897 = vsel %vm1769, %v1694, %v1833
        %v1898 = vsel %vm1770, %v1471, %v1834
        %v1899 = vsel %vm1771, %v1697, %v1835
        %v1900 = vsel %vm1772, %v1474, %v1836
        %v1901 = vsel %vm1773, %v1700, %v1837
        %v1902 = vsel %vm1774, %v1477, %v1838
        %v1903 = vsel %vm1775, %v1703, %v1839
        %v1904 = vsel %vm1776, %v1480, %v1840
        %v1905 = vsel %vm1777, %v1706, %v1841
        %v1906 = vsel %vm1778, %v1483, %v1842
        %v1907 = vsel %vm1779, %v1709, %v1843
        %v1908 = vsel %vm1780, %v1486, %v1844
        %v1909 = vsel %vm1781, %v1712, %v1845
        %v1910 = vsel %vm1782, %v1489, %v1846
        %v1911 = vsel %vm1783, %v1715, %v1847
        %v1912 = vsel %vm1784, %v1492, %v1848
        %v1913 = vsel %vm1785, %v1718, %v1849
        %v1914 = vsel %vm1786, %v1495, %v1850
        %v1915 = vsel %vm1787, %v1721, %v1851
        %v1916 = vsel %vm1788, %v1498, %v1852
        %v1917 = vsel %vm1789, %v1724, %v1853
        %v1918 = vld [vmem:[#allocation8] sm:$0xff]
        %v1919 = vld [vmem:[#allocation8 + $0x8] sm:$0xff]
        %v1920 = vld [vmem:[#allocation8 + $0x10] sm:$0xff]
        %v1921 = vld [vmem:[#allocation8 + $0x18] sm:$0xff]
        %v1922 = vld [vmem:[#allocation8 + $0x20] sm:$0xff]
        %v1923 = vld [vmem:[#allocation8 + $0x28] sm:$0xff]
        %v1924 = vld [vmem:[#allocation8 + $0x30] sm:$0xff]
        %v1925 = vld [vmem:[#allocation8 + $0x38] sm:$0xff]
        %v1926 = vld [vmem:[#allocation8 + $0x40] sm:$0xff]
        %v1927 = vld [vmem:[#allocation8 + $0x48] sm:$0xff]
        %v1928 = vld [vmem:[#allocation8 + $0x50] sm:$0xff]
        %v1929 = vld [vmem:[#allocation8 + $0x58] sm:$0xff]
        %v1930 = vld [vmem:[#allocation8 + $0x60] sm:$0xff]
        %v1931 = vld [vmem:[#allocation8 + $0x68] sm:$0xff]
        %v1932 = vld [vmem:[#allocation8 + $0x70] sm:$0xff]
        %v1933 = vld [vmem:[#allocation8 + $0x78] sm:$0xff]
        %v1934 = vld [vmem:[#allocation8 + $0x80] sm:$0xff]
        %v1935 = vld [vmem:[#allocation8 + $0x88] sm:$0xff]
        %v1936 = vld [vmem:[#allocation8 + $0x90] sm:$0xff]
        %v1937 = vld [vmem:[#allocation8 + $0x98] sm:$0xff]
        %v1938 = vld [vmem:[#allocation8 + $0xa0] sm:$0xff]
        %v1939 = vld [vmem:[#allocation8 + $0xa8] sm:$0xff]
        %v1940 = vld [vmem:[#allocation8 + $0xb0] sm:$0xff]
        %v1941 = vld [vmem:[#allocation8 + $0xb8] sm:$0xff]
        %v1942 = vld [vmem:[#allocation8 + $0xc0] sm:$0xff]
        %v1943 = vld [vmem:[#allocation8 + $0xc8] sm:$0xff]
        %v1944 = vld [vmem:[#allocation8 + $0xd0] sm:$0xff]
        %v1945 = vld [vmem:[#allocation8 + $0xd8] sm:$0xff]
        %v1946 = vld [vmem:[#allocation8 + $0xe0] sm:$0xff]
        %v1947 = vld [vmem:[#allocation8 + $0xe8] sm:$0xff]
        %v1948 = vld [vmem:[#allocation8 + $0xf0] sm:$0xff]
        %v1949 = vld [vmem:[#allocation8 + $0xf8] sm:$0xff]
        %v1950 = vld [vmem:[#allocation10] sm:$0x3]
        %v1951 = vld [vmem:[%s699] sm:$0xff]
        %v1952 = vld [vmem:[%s699 + $0x8] sm:$0xff]
        %v1953 = vld [vmem:[%s699 + $0x10] sm:$0xff]
        %v1954 = vld [vmem:[%s699 + $0x18] sm:$0xff]
        %v1955 = vld [vmem:[%s699 + $0x20] sm:$0xff]
        %v1956 = vld [vmem:[%s699 + $0x28] sm:$0xff]
        %v1957 = vld [vmem:[%s699 + $0x30] sm:$0xff]
        %v1958 = vld [vmem:[%s699 + $0x38] sm:$0xff]
        %v1959 = vld [vmem:[%s699 + $0x40] sm:$0xff]
        %v1960 = vld [vmem:[%s699 + $0x48] sm:$0xff]
        %v1961 = vld [vmem:[%s699 + $0x50] sm:$0xff]
        %v1962 = vld [vmem:[%s699 + $0x58] sm:$0xff]
        %v1963 = vld [vmem:[%s699 + $0x60] sm:$0xff]
        %v1964 = vld [vmem:[%s699 + $0x68] sm:$0xff]
        %v1965 = vld [vmem:[%s699 + $0x70] sm:$0xff]
        %v1966 = vld [vmem:[%s699 + $0x78] sm:$0xff]
        %v1967 = vld [vmem:[%s699 + $0x80] sm:$0xff]
        %v1968 = vld [vmem:[%s699 + $0x88] sm:$0xff]
        %v1969 = vld [vmem:[%s699 + $0x90] sm:$0xff]
        %v1970 = vld [vmem:[%s699 + $0x98] sm:$0xff]
        %v1971 = vld [vmem:[%s699 + $0xa0] sm:$0xff]
        %v1972 = vld [vmem:[%s699 + $0xa8] sm:$0xff]
        %v1973 = vld [vmem:[%s699 + $0xb0] sm:$0xff]
        %v1974 = vld [vmem:[%s699 + $0xb8] sm:$0xff]
        %v1975 = vld [vmem:[%s699 + $0xc0] sm:$0xff]
        %v1976 = vld [vmem:[%s699 + $0xc8] sm:$0xff]
        %v1977 = vld [vmem:[%s699 + $0xd0] sm:$0xff]
        %v1978 = vld [vmem:[%s699 + $0xd8] sm:$0xff]
        %v1979 = vld [vmem:[%s699 + $0xe0] sm:$0xff]
        %v1980 = vld [vmem:[%s699 + $0xe8] sm:$0xff]
        %v1981 = vld [vmem:[%s699 + $0xf0] sm:$0xff]
        %v1982 = vld [vmem:[%s699 + $0xf8] sm:$0xff]
        %v1983 = vld [vmem:[%s699 + $0x100] sm:$0xff]
        %v1984 = vld [vmem:[%s699 + $0x108] sm:$0xff]
        %v1985 = vld [vmem:[%s699 + $0x110] sm:$0xff]
        %v1986 = vld [vmem:[%s699 + $0x118] sm:$0xff]
        %v1987 = vld [vmem:[%s699 + $0x120] sm:$0xff]
        %v1988 = vld [vmem:[%s699 + $0x128] sm:$0xff]
        %v1989 = vld [vmem:[%s699 + $0x130] sm:$0xff]
        %v1990 = vld [vmem:[%s699 + $0x138] sm:$0xff]
        %v1991 = vld [vmem:[%s699 + $0x140] sm:$0xff]
        %v1992 = vld [vmem:[%s699 + $0x148] sm:$0xff]
        %v1993 = vld [vmem:[%s699 + $0x150] sm:$0xff]
        %v1994 = vld [vmem:[%s699 + $0x158] sm:$0xff]
        %v1995 = vld [vmem:[%s699 + $0x160] sm:$0xff]
        %v1996 = vld [vmem:[%s699 + $0x168] sm:$0xff]
        %v1997 = vld [vmem:[%s699 + $0x170] sm:$0xff]
        %v1998 = vld [vmem:[%s699 + $0x178] sm:$0xff]
        %v1999 = vld [vmem:[%s699 + $0x180] sm:$0xff]
        %v2000 = vld [vmem:[%s699 + $0x188] sm:$0xff]
        %v2001 = vld [vmem:[%s699 + $0x190] sm:$0xff]
        %v2002 = vld [vmem:[%s699 + $0x198] sm:$0xff]
        %v2003 = vld [vmem:[%s699 + $0x1a0] sm:$0xff]
        %v2004 = vld [vmem:[%s699 + $0x1a8] sm:$0xff]
        %v2005 = vld [vmem:[%s699 + $0x1b0] sm:$0xff]
        %v2006 = vld [vmem:[%s699 + $0x1b8] sm:$0xff]
        %v2007 = vld [vmem:[%s699 + $0x1c0] sm:$0xff]
        %v2008 = vld [vmem:[%s699 + $0x1c8] sm:$0xff]
        %v2009 = vld [vmem:[%s699 + $0x1d0] sm:$0xff]
        %v2010 = vld [vmem:[%s699 + $0x1d8] sm:$0xff]
        %v2011 = vld [vmem:[%s699 + $0x1e0] sm:$0xff]
        %v2012 = vld [vmem:[%s699 + $0x1e8] sm:$0xff]
        %v2013 = vld [vmem:[%s699 + $0x1f0] sm:$0xff]
        %v2014 = vld [vmem:[%s699 + $0x1f8] sm:$0xff]
        %v2016 = vperm.slane %v1950, 0
        %v2017 = vperm.slane %v1950, 1
        %2020 = vmatpush.msra.mxu0 %v1948
        %2021 = vmatpush.msra.mxu0 %v1946
        %2022 = vmatpush.msra.mxu0 %v1944
        %2023 = vmatpush.msra.mxu0 %v1942
        %2024 = vmatpush.msra.mxu0 %v1940
        %2025 = vmatpush.msra.mxu0 %v1938
        %2026 = vmatpush.msra.mxu0 %v1936
        %2027 = vmatpush.msra.mxu0 %v1934
        %2028 = vmatpush.msra.mxu0 %v1932
        %2029 = vmatpush.msra.mxu0 %v1930
        %2030 = vmatpush.msra.mxu0 %v1928
        %2031 = vmatpush.msra.mxu0 %v1926
        %2032 = vmatpush.msra.mxu0 %v1924
        %2033 = vmatpush.msra.mxu0 %v1922
        %2034 = vmatpush.msra.mxu0 %v1920
        %2035 = vmatpush.msra.mxu0 %v1918
        %2036 = vmatmul.f32.gmra.mxu0 %v1854
        %v2037 = vpop.f32.mrf.mxu0
        %v2038 = vadd.f32 %v2016, %v2037
        %2039 = vmatmul.f32.gmra.mxu0 %v1856
        %v2040 = vpop.f32.mrf.mxu0
        %v2041 = vadd.f32 %v2016, %v2040
        %2042 = vmatmul.f32.gmra.mxu0 %v1858
        %v2043 = vpop.f32.mrf.mxu0
        %v2044 = vadd.f32 %v2016, %v2043
        %2045 = vmatmul.f32.gmra.mxu0 %v1860
        %v2046 = vpop.f32.mrf.mxu0
        %v2047 = vadd.f32 %v2016, %v2046
        %2048 = vmatmul.f32.gmra.mxu0 %v1862
        %v2049 = vpop.f32.mrf.mxu0
        %v2050 = vadd.f32 %v2016, %v2049
        %2051 = vmatmul.f32.gmra.mxu0 %v1864
        %v2052 = vpop.f32.mrf.mxu0
        %v2053 = vadd.f32 %v2016, %v2052
        %2054 = vmatmul.f32.gmra.mxu0 %v1866
        %v2055 = vpop.f32.mrf.mxu0
        %v2056 = vadd.f32 %v2016, %v2055
        %2057 = vmatmul.f32.gmra.mxu0 %v1868
        %v2058 = vpop.f32.mrf.mxu0
        %v2059 = vadd.f32 %v2016, %v2058
        %2060 = vmatmul.f32.gmra.mxu0 %v1870
        %v2061 = vpop.f32.mrf.mxu0
        %v2062 = vadd.f32 %v2016, %v2061
        %2063 = vmatmul.f32.gmra.mxu0 %v1872
        %v2064 = vpop.f32.mrf.mxu0
        %v2065 = vadd.f32 %v2016, %v2064
        %2066 = vmatmul.f32.gmra.mxu0 %v1874
        %v2067 = vpop.f32.mrf.mxu0
        %v2068 = vadd.f32 %v2016, %v2067
        %2069 = vmatmul.f32.gmra.mxu0 %v1876
        %v2070 = vpop.f32.mrf.mxu0
        %v2071 = vadd.f32 %v2016, %v2070
        %2072 = vmatmul.f32.gmra.mxu0 %v1878
        %v2073 = vpop.f32.mrf.mxu0
        %v2074 = vadd.f32 %v2016, %v2073
        %2075 = vmatmul.f32.gmra.mxu0 %v1880
        %v2076 = vpop.f32.mrf.mxu0
        %v2077 = vadd.f32 %v2016, %v2076
        %2078 = vmatmul.f32.gmra.mxu0 %v1882
        %v2079 = vpop.f32.mrf.mxu0
        %v2080 = vadd.f32 %v2016, %v2079
        %2081 = vmatmul.f32.gmra.mxu0 %v1884
        %v2082 = vpop.f32.mrf.mxu0
        %v2083 = vadd.f32 %v2016, %v2082
        %2084 = vmatmul.f32.gmra.mxu0 %v1886
        %v2085 = vpop.f32.mrf.mxu0
        %v2086 = vadd.f32 %v2016, %v2085
        %2087 = vmatmul.f32.gmra.mxu0 %v1888
        %v2088 = vpop.f32.mrf.mxu0
        %v2089 = vadd.f32 %v2016, %v2088
        %2090 = vmatmul.f32.gmra.mxu0 %v1890
        %v2091 = vpop.f32.mrf.mxu0
        %v2092 = vadd.f32 %v2016, %v2091
        %2093 = vmatmul.f32.gmra.mxu0 %v1892
        %v2094 = vpop.f32.mrf.mxu0
        %v2095 = vadd.f32 %v2016, %v2094
        %2096 = vmatmul.f32.gmra.mxu0 %v1894
        %v2097 = vpop.f32.mrf.mxu0
        %v2098 = vadd.f32 %v2016, %v2097
        %2099 = vmatmul.f32.gmra.mxu0 %v1896
        %v2100 = vpop.f32.mrf.mxu0
        %v2101 = vadd.f32 %v2016, %v2100
        %2102 = vmatmul.f32.gmra.mxu0 %v1898
        %v2103 = vpop.f32.mrf.mxu0
        %v2104 = vadd.f32 %v2016, %v2103
        %2105 = vmatmul.f32.gmra.mxu0 %v1900
        %v2106 = vpop.f32.mrf.mxu0
        %v2107 = vadd.f32 %v2016, %v2106
        %2108 = vmatmul.f32.gmra.mxu0 %v1902
        %v2109 = vpop.f32.mrf.mxu0
        %v2110 = vadd.f32 %v2016, %v2109
        %2111 = vmatmul.f32.gmra.mxu0 %v1904
        %v2112 = vpop.f32.mrf.mxu0
        %v2113 = vadd.f32 %v2016, %v2112
        %2114 = vmatmul.f32.gmra.mxu0 %v1906
        %v2115 = vpop.f32.mrf.mxu0
        %v2116 = vadd.f32 %v2016, %v2115
        %2117 = vmatmul.f32.gmra.mxu0 %v1908
        %v2118 = vpop.f32.mrf.mxu0
        %v2119 = vadd.f32 %v2016, %v2118
        %2120 = vmatmul.f32.gmra.mxu0 %v1910
        %v2121 = vpop.f32.mrf.mxu0
        %v2122 = vadd.f32 %v2016, %v2121
        %2123 = vmatmul.f32.gmra.mxu0 %v1912
        %v2124 = vpop.f32.mrf.mxu0
        %v2125 = vadd.f32 %v2016, %v2124
        %2126 = vmatmul.f32.gmra.mxu0 %v1914
        %v2127 = vpop.f32.mrf.mxu0
        %v2128 = vadd.f32 %v2016, %v2127
        %2129 = vmatmul.f32.gmra.mxu0 %v1916
        %v2130 = vpop.f32.mrf.mxu0
        %v2131 = vadd.f32 %v2016, %v2130
        %2132 = vdwg.mxu0
        %2133 = vmatpush.msra.mxu0 %v1949
        %2134 = vmatpush.msra.mxu0 %v1947
        %2135 = vmatpush.msra.mxu0 %v1945
        %2136 = vmatpush.msra.mxu0 %v1943
        %2137 = vmatpush.msra.mxu0 %v1941
        %2138 = vmatpush.msra.mxu0 %v1939
        %2139 = vmatpush.msra.mxu0 %v1937
        %2140 = vmatpush.msra.mxu0 %v1935
        %2141 = vmatpush.msra.mxu0 %v1933
        %2142 = vmatpush.msra.mxu0 %v1931
        %2143 = vmatpush.msra.mxu0 %v1929
        %2144 = vmatpush.msra.mxu0 %v1927
        %2145 = vmatpush.msra.mxu0 %v1925
        %2146 = vmatpush.msra.mxu0 %v1923
        %2147 = vmatpush.msra.mxu0 %v1921
        %2148 = vmatpush.msra.mxu0 %v1919
        %2149 = vmatmul.f32.gmra.mxu0 %v1854
        %v2150 = vpop.f32.mrf.mxu0
        %v2151 = vadd.f32 %v2017, %v2150
        %2152 = vmatmul.f32.gmra.mxu0 %v1856
        %v2153 = vpop.f32.mrf.mxu0
        %v2154 = vadd.f32 %v2017, %v2153
        %2155 = vmatmul.f32.gmra.mxu0 %v1858
        %v2156 = vpop.f32.mrf.mxu0
        %v2157 = vadd.f32 %v2017, %v2156
        %2158 = vmatmul.f32.gmra.mxu0 %v1860
        %v2159 = vpop.f32.mrf.mxu0
        %v2160 = vadd.f32 %v2017, %v2159
        %2161 = vmatmul.f32.gmra.mxu0 %v1862
        %v2162 = vpop.f32.mrf.mxu0
        %v2163 = vadd.f32 %v2017, %v2162
        %2164 = vmatmul.f32.gmra.mxu0 %v1864
        %v2165 = vpop.f32.mrf.mxu0
        %v2166 = vadd.f32 %v2017, %v2165
        %2167 = vmatmul.f32.gmra.mxu0 %v1866
        %v2168 = vpop.f32.mrf.mxu0
        %v2169 = vadd.f32 %v2017, %v2168
        %2170 = vmatmul.f32.gmra.mxu0 %v1868
        %v2171 = vpop.f32.mrf.mxu0
        %v2172 = vadd.f32 %v2017, %v2171
        %2173 = vmatmul.f32.gmra.mxu0 %v1870
        %v2174 = vpop.f32.mrf.mxu0
        %v2175 = vadd.f32 %v2017, %v2174
        %2176 = vmatmul.f32.gmra.mxu0 %v1872
        %v2177 = vpop.f32.mrf.mxu0
        %v2178 = vadd.f32 %v2017, %v2177
        %2179 = vmatmul.f32.gmra.mxu0 %v1874
        %v2180 = vpop.f32.mrf.mxu0
        %v2181 = vadd.f32 %v2017, %v2180
        %2182 = vmatmul.f32.gmra.mxu0 %v1876
        %v2183 = vpop.f32.mrf.mxu0
        %v2184 = vadd.f32 %v2017, %v2183
        %2185 = vmatmul.f32.gmra.mxu0 %v1878
        %v2186 = vpop.f32.mrf.mxu0
        %v2187 = vadd.f32 %v2017, %v2186
        %2188 = vmatmul.f32.gmra.mxu0 %v1880
        %v2189 = vpop.f32.mrf.mxu0
        %v2190 = vadd.f32 %v2017, %v2189
        %2191 = vmatmul.f32.gmra.mxu0 %v1882
        %v2192 = vpop.f32.mrf.mxu0
        %v2193 = vadd.f32 %v2017, %v2192
        %2194 = vmatmul.f32.gmra.mxu0 %v1884
        %v2195 = vpop.f32.mrf.mxu0
        %v2196 = vadd.f32 %v2017, %v2195
        %2197 = vmatmul.f32.gmra.mxu0 %v1886
        %v2198 = vpop.f32.mrf.mxu0
        %v2199 = vadd.f32 %v2017, %v2198
        %2200 = vmatmul.f32.gmra.mxu0 %v1888
        %v2201 = vpop.f32.mrf.mxu0
        %v2202 = vadd.f32 %v2017, %v2201
        %2203 = vmatmul.f32.gmra.mxu0 %v1890
        %v2204 = vpop.f32.mrf.mxu0
        %v2205 = vadd.f32 %v2017, %v2204
        %2206 = vmatmul.f32.gmra.mxu0 %v1892
        %v2207 = vpop.f32.mrf.mxu0
        %v2208 = vadd.f32 %v2017, %v2207
        %2209 = vmatmul.f32.gmra.mxu0 %v1894
        %v2210 = vpop.f32.mrf.mxu0
        %v2211 = vadd.f32 %v2017, %v2210
        %2212 = vmatmul.f32.gmra.mxu0 %v1896
        %v2213 = vpop.f32.mrf.mxu0
        %v2214 = vadd.f32 %v2017, %v2213
        %2215 = vmatmul.f32.gmra.mxu0 %v1898
        %v2216 = vpop.f32.mrf.mxu0
        %v2217 = vadd.f32 %v2017, %v2216
        %2218 = vmatmul.f32.gmra.mxu0 %v1900
        %v2219 = vpop.f32.mrf.mxu0
        %v2220 = vadd.f32 %v2017, %v2219
        %2221 = vmatmul.f32.gmra.mxu0 %v1902
        %v2222 = vpop.f32.mrf.mxu0
        %v2223 = vadd.f32 %v2017, %v2222
        %2224 = vmatmul.f32.gmra.mxu0 %v1904
        %v2225 = vpop.f32.mrf.mxu0
        %v2226 = vadd.f32 %v2017, %v2225
        %2227 = vmatmul.f32.gmra.mxu0 %v1906
        %v2228 = vpop.f32.mrf.mxu0
        %v2229 = vadd.f32 %v2017, %v2228
        %2230 = vmatmul.f32.gmra.mxu0 %v1908
        %v2231 = vpop.f32.mrf.mxu0
        %v2232 = vadd.f32 %v2017, %v2231
        %2233 = vmatmul.f32.gmra.mxu0 %v1910
        %v2234 = vpop.f32.mrf.mxu0
        %v2235 = vadd.f32 %v2017, %v2234
        %2236 = vmatmul.f32.gmra.mxu0 %v1912
        %v2237 = vpop.f32.mrf.mxu0
        %v2238 = vadd.f32 %v2017, %v2237
        %2239 = vmatmul.f32.gmra.mxu0 %v1914
        %v2240 = vpop.f32.mrf.mxu0
        %v2241 = vadd.f32 %v2017, %v2240
        %2242 = vmatmul.f32.gmra.mxu0 %v1916
        %v2243 = vpop.f32.mrf.mxu0
        %v2244 = vadd.f32 %v2017, %v2243
        %2245 = vdwg.mxu0
        %v2246 = vmul.f32 %v2151, 0.5
        %v2247 = vmul.f32 %v2154, 0.5
        %v2248 = vmul.f32 %v2157, 0.5
        %v2249 = vmul.f32 %v2160, 0.5
        %v2250 = vmul.f32 %v2163, 0.5
        %v2251 = vmul.f32 %v2166, 0.5
        %v2252 = vmul.f32 %v2169, 0.5
        %v2253 = vmul.f32 %v2172, 0.5
        %v2254 = vmul.f32 %v2175, 0.5
        %v2255 = vmul.f32 %v2178, 0.5
        %v2256 = vmul.f32 %v2181, 0.5
        %v2257 = vmul.f32 %v2184, 0.5
        %v2258 = vmul.f32 %v2187, 0.5
        %v2259 = vmul.f32 %v2190, 0.5
        %v2260 = vmul.f32 %v2193, 0.5
        %v2261 = vmul.f32 %v2196, 0.5
        %v2262 = vmul.f32 %v2199, 0.5
        %v2263 = vmul.f32 %v2202, 0.5
        %v2264 = vmul.f32 %v2205, 0.5
        %v2265 = vmul.f32 %v2208, 0.5
        %v2266 = vmul.f32 %v2211, 0.5
        %v2267 = vmul.f32 %v2214, 0.5
        %v2268 = vmul.f32 %v2217, 0.5
        %v2269 = vmul.f32 %v2220, 0.5
        %v2270 = vmul.f32 %v2223, 0.5
        %v2271 = vmul.f32 %v2226, 0.5
        %v2272 = vmul.f32 %v2229, 0.5
        %v2273 = vmul.f32 %v2232, 0.5
        %v2274 = vmul.f32 %v2235, 0.5
        %v2275 = vmul.f32 %v2238, 0.5
        %v2276 = vmul.f32 %v2241, 0.5
        %v2277 = vmul.f32 %v2244, 0.5
        %v2278 = vmul.f32 %v2246, 1.442695
        %v2279 = vpow.pop %v2278
        %v2280 = vmul.f32 %v2247, 1.442695
        %v2281 = vpow.pop %v2280
        %v2282 = vmul.f32 %v2248, 1.442695
        %v2283 = vpow.pop %v2282
        %v2284 = vmul.f32 %v2249, 1.442695
        %v2285 = vpow.pop %v2284
        %v2286 = vmul.f32 %v2250, 1.442695
        %v2287 = vpow.pop %v2286
        %v2288 = vmul.f32 %v2251, 1.442695
        %v2289 = vpow.pop %v2288
        %v2290 = vmul.f32 %v2252, 1.442695
        %v2291 = vpow.pop %v2290
        %v2292 = vmul.f32 %v2253, 1.442695
        %v2293 = vpow.pop %v2292
        %v2294 = vmul.f32 %v2254, 1.442695
        %v2295 = vpow.pop %v2294
        %v2296 = vmul.f32 %v2255, 1.442695
        %v2297 = vpow.pop %v2296
        %v2298 = vmul.f32 %v2256, 1.442695
        %v2299 = vpow.pop %v2298
        %v2300 = vmul.f32 %v2257, 1.442695
        %v2301 = vpow.pop %v2300
        %v2302 = vmul.f32 %v2258, 1.442695
        %v2303 = vpow.pop %v2302
        %v2304 = vmul.f32 %v2259, 1.442695
        %v2305 = vpow.pop %v2304
        %v2306 = vmul.f32 %v2260, 1.442695
        %v2307 = vpow.pop %v2306
        %v2308 = vmul.f32 %v2261, 1.442695
        %v2309 = vpow.pop %v2308
        %v2310 = vmul.f32 %v2262, 1.442695
        %v2311 = vpow.pop %v2310
        %v2312 = vmul.f32 %v2263, 1.442695
        %v2313 = vpow.pop %v2312
        %v2314 = vmul.f32 %v2264, 1.442695
        %v2315 = vpow.pop %v2314
        %v2316 = vmul.f32 %v2265, 1.442695
        %v2317 = vpow.pop %v2316
        %v2318 = vmul.f32 %v2266, 1.442695
        %v2319 = vpow.pop %v2318
        %v2320 = vmul.f32 %v2267, 1.442695
        %v2321 = vpow.pop %v2320
        %v2322 = vmul.f32 %v2268, 1.442695
        %v2323 = vpow.pop %v2322
        %v2324 = vmul.f32 %v2269, 1.442695
        %v2325 = vpow.pop %v2324
        %v2326 = vmul.f32 %v2270, 1.442695
        %v2327 = vpow.pop %v2326
        %v2328 = vmul.f32 %v2271, 1.442695
        %v2329 = vpow.pop %v2328
        %v2330 = vmul.f32 %v2272, 1.442695
        %v2331 = vpow.pop %v2330
        %v2332 = vmul.f32 %v2273, 1.442695
        %v2333 = vpow.pop %v2332
        %v2334 = vmul.f32 %v2274, 1.442695
        %v2335 = vpow.pop %v2334
        %v2336 = vmul.f32 %v2275, 1.442695
        %v2337 = vpow.pop %v2336
        %v2338 = vmul.f32 %v2276, 1.442695
        %v2339 = vpow.pop %v2338
        %v2340 = vmul.f32 %v2277, 1.442695
        %v2341 = vpow.pop %v2340
        %v2342 = vmul.f32 %v2279, %v1951
        %v2343 = vmul.f32 %v2281, %v1953
        %v2344 = vmul.f32 %v2283, %v1955
        %v2345 = vmul.f32 %v2285, %v1957
        %v2346 = vmul.f32 %v2287, %v1959
        %v2347 = vmul.f32 %v2289, %v1961
        %v2348 = vmul.f32 %v2291, %v1963
        %v2349 = vmul.f32 %v2293, %v1965
        %v2350 = vmul.f32 %v2295, %v1967
        %v2351 = vmul.f32 %v2297, %v1969
        %v2352 = vmul.f32 %v2299, %v1971
        %v2353 = vmul.f32 %v2301, %v1973
        %v2354 = vmul.f32 %v2303, %v1975
        %v2355 = vmul.f32 %v2305, %v1977
        %v2356 = vmul.f32 %v2307, %v1979
        %v2357 = vmul.f32 %v2309, %v1981
        %v2358 = vmul.f32 %v2311, %v1983
        %v2359 = vmul.f32 %v2313, %v1985
        %v2360 = vmul.f32 %v2315, %v1987
        %v2361 = vmul.f32 %v2317, %v1989
        %v2362 = vmul.f32 %v2319, %v1991
        %v2363 = vmul.f32 %v2321, %v1993
        %v2364 = vmul.f32 %v2323, %v1995
        %v2365 = vmul.f32 %v2325, %v1997
        %v2366 = vmul.f32 %v2327, %v1999
        %v2367 = vmul.f32 %v2329, %v2001
        %v2368 = vmul.f32 %v2331, %v2003
        %v2369 = vmul.f32 %v2333, %v2005
        %v2370 = vmul.f32 %v2335, %v2007
        %v2371 = vmul.f32 %v2337, %v2009
        %v2372 = vmul.f32 %v2339, %v2011
        %v2373 = vmul.f32 %v2341, %v2013
        %v2374 = vadd.f32 %v2038, %v2342
        %v2375 = vadd.f32 %v2041, %v2343
        %v2376 = vadd.f32 %v2044, %v2344
        %v2377 = vadd.f32 %v2047, %v2345
        %v2378 = vadd.f32 %v2050, %v2346
        %v2379 = vadd.f32 %v2053, %v2347
        %v2380 = vadd.f32 %v2056, %v2348
        %v2381 = vadd.f32 %v2059, %v2349
        %v2382 = vadd.f32 %v2062, %v2350
        %v2383 = vadd.f32 %v2065, %v2351
        %v2384 = vadd.f32 %v2068, %v2352
        %v2385 = vadd.f32 %v2071, %v2353
        %v2386 = vadd.f32 %v2074, %v2354
        %v2387 = vadd.f32 %v2077, %v2355
        %v2388 = vadd.f32 %v2080, %v2356
        %v2389 = vadd.f32 %v2083, %v2357
        %v2390 = vadd.f32 %v2086, %v2358
        %v2391 = vadd.f32 %v2089, %v2359
        %v2392 = vadd.f32 %v2092, %v2360
        %v2393 = vadd.f32 %v2095, %v2361
        %v2394 = vadd.f32 %v2098, %v2362
        %v2395 = vadd.f32 %v2101, %v2363
        %v2396 = vadd.f32 %v2104, %v2364
        %v2397 = vadd.f32 %v2107, %v2365
        %v2398 = vadd.f32 %v2110, %v2366
        %v2399 = vadd.f32 %v2113, %v2367
        %v2400 = vadd.f32 %v2116, %v2368
        %v2401 = vadd.f32 %v2119, %v2369
        %v2402 = vadd.f32 %v2122, %v2370
        %v2403 = vadd.f32 %v2125, %v2371
        %v2404 = vadd.f32 %v2128, %v2372
        %v2405 = vadd.f32 %v2131, %v2373
        %2406 = vst [vmem:[%s707] sm:$0xff] %v2038
        %2407 = vst [vmem:[%s707 + $0x10] sm:$0xff] %v2041
        %2408 = vst [vmem:[%s707 + $0x20] sm:$0xff] %v2044
        %2409 = vst [vmem:[%s707 + $0x30] sm:$0xff] %v2047
        %2410 = vst [vmem:[%s707 + $0x40] sm:$0xff] %v2050
        %2411 = vst [vmem:[%s707 + $0x50] sm:$0xff] %v2053
        %2412 = vst [vmem:[%s707 + $0x60] sm:$0xff] %v2056
        %2413 = vst [vmem:[%s707 + $0x70] sm:$0xff] %v2059
        %2414 = vst [vmem:[%s707 + $0x80] sm:$0xff] %v2062
        %2415 = vst [vmem:[%s707 + $0x90] sm:$0xff] %v2065
        %2416 = vst [vmem:[%s707 + $0xa0] sm:$0xff] %v2068
        %2417 = vst [vmem:[%s707 + $0xb0] sm:$0xff] %v2071
        %2418 = vst [vmem:[%s707 + $0xc0] sm:$0xff] %v2074
        %2419 = vst [vmem:[%s707 + $0xd0] sm:$0xff] %v2077
        %2420 = vst [vmem:[%s707 + $0xe0] sm:$0xff] %v2080
        %2421 = vst [vmem:[%s707 + $0xf0] sm:$0xff] %v2083
        %2422 = vst [vmem:[%s707 + $0x100] sm:$0xff] %v2086
        %2423 = vst [vmem:[%s707 + $0x110] sm:$0xff] %v2089
        %2424 = vst [vmem:[%s707 + $0x120] sm:$0xff] %v2092
        %2425 = vst [vmem:[%s707 + $0x130] sm:$0xff] %v2095
        %2426 = vst [vmem:[%s707 + $0x140] sm:$0xff] %v2098
        %2427 = vst [vmem:[%s707 + $0x150] sm:$0xff] %v2101
        %2428 = vst [vmem:[%s707 + $0x160] sm:$0xff] %v2104
        %2429 = vst [vmem:[%s707 + $0x170] sm:$0xff] %v2107
        %2430 = vst [vmem:[%s707 + $0x180] sm:$0xff] %v2110
        %2431 = vst [vmem:[%s707 + $0x190] sm:$0xff] %v2113
        %2432 = vst [vmem:[%s707 + $0x1a0] sm:$0xff] %v2116
        %2433 = vst [vmem:[%s707 + $0x1b0] sm:$0xff] %v2119
        %2434 = vst [vmem:[%s707 + $0x1c0] sm:$0xff] %v2122
        %2435 = vst [vmem:[%s707 + $0x1d0] sm:$0xff] %v2125
        %2436 = vst [vmem:[%s707 + $0x1e0] sm:$0xff] %v2128
        %2437 = vst [vmem:[%s707 + $0x1f0] sm:$0xff] %v2131
        %2438 = vst [vmem:[%s714] sm:$0xff] %v2151
        %2439 = vst [vmem:[%s714 + $0x10] sm:$0xff] %v2154
        %2440 = vst [vmem:[%s714 + $0x20] sm:$0xff] %v2157
        %2441 = vst [vmem:[%s714 + $0x30] sm:$0xff] %v2160
        %2442 = vst [vmem:[%s714 + $0x40] sm:$0xff] %v2163
        %2443 = vst [vmem:[%s714 + $0x50] sm:$0xff] %v2166
        %2444 = vst [vmem:[%s714 + $0x60] sm:$0xff] %v2169
        %2445 = vst [vmem:[%s714 + $0x70] sm:$0xff] %v2172
        %2446 = vst [vmem:[%s714 + $0x80] sm:$0xff] %v2175
        %2447 = vst [vmem:[%s714 + $0x90] sm:$0xff] %v2178
        %2448 = vst [vmem:[%s714 + $0xa0] sm:$0xff] %v2181
        %2449 = vst [vmem:[%s714 + $0xb0] sm:$0xff] %v2184
        %2450 = vst [vmem:[%s714 + $0xc0] sm:$0xff] %v2187
        %2451 = vst [vmem:[%s714 + $0xd0] sm:$0xff] %v2190
        %2452 = vst [vmem:[%s714 + $0xe0] sm:$0xff] %v2193
        %2453 = vst [vmem:[%s714 + $0xf0] sm:$0xff] %v2196
        %2454 = vst [vmem:[%s714 + $0x100] sm:$0xff] %v2199
        %2455 = vst [vmem:[%s714 + $0x110] sm:$0xff] %v2202
        %2456 = vst [vmem:[%s714 + $0x120] sm:$0xff] %v2205
        %2457 = vst [vmem:[%s714 + $0x130] sm:$0xff] %v2208
        %2458 = vst [vmem:[%s714 + $0x140] sm:$0xff] %v2211
        %2459 = vst [vmem:[%s714 + $0x150] sm:$0xff] %v2214
        %2460 = vst [vmem:[%s714 + $0x160] sm:$0xff] %v2217
        %2461 = vst [vmem:[%s714 + $0x170] sm:$0xff] %v2220
        %2462 = vst [vmem:[%s714 + $0x180] sm:$0xff] %v2223
        %2463 = vst [vmem:[%s714 + $0x190] sm:$0xff] %v2226
        %2464 = vst [vmem:[%s714 + $0x1a0] sm:$0xff] %v2229
        %2465 = vst [vmem:[%s714 + $0x1b0] sm:$0xff] %v2232
        %2466 = vst [vmem:[%s714 + $0x1c0] sm:$0xff] %v2235
        %2467 = vst [vmem:[%s714 + $0x1d0] sm:$0xff] %v2238
        %2468 = vst [vmem:[%s714 + $0x1e0] sm:$0xff] %v2241
        %2469 = vst [vmem:[%s714 + $0x1f0] sm:$0xff] %v2244
        %2470 = vmatpush.msra.mxu0 %v1948
        %2471 = vmatpush.msra.mxu0 %v1946
        %2472 = vmatpush.msra.mxu0 %v1944
        %2473 = vmatpush.msra.mxu0 %v1942
        %2474 = vmatpush.msra.mxu0 %v1940
        %2475 = vmatpush.msra.mxu0 %v1938
        %2476 = vmatpush.msra.mxu0 %v1936
        %2477 = vmatpush.msra.mxu0 %v1934
        %2478 = vmatpush.msra.mxu0 %v1932
        %2479 = vmatpush.msra.mxu0 %v1930
        %2480 = vmatpush.msra.mxu0 %v1928
        %2481 = vmatpush.msra.mxu0 %v1926
        %2482 = vmatpush.msra.mxu0 %v1924
        %2483 = vmatpush.msra.mxu0 %v1922
        %2484 = vmatpush.msra.mxu0 %v1920
        %2485 = vmatpush.msra.mxu0 %v1918
        %2486 = vmatmul.f32.gmra.mxu0 %v1855
        %v2487 = vpop.f32.mrf.mxu0
        %v2488 = vadd.f32 %v2016, %v2487
        %2489 = vmatmul.f32.gmra.mxu0 %v1857
        %v2490 = vpop.f32.mrf.mxu0
        %v2491 = vadd.f32 %v2016, %v2490
        %2492 = vmatmul.f32.gmra.mxu0 %v1859
        %v2493 = vpop.f32.mrf.mxu0
        %v2494 = vadd.f32 %v2016, %v2493
        %2495 = vmatmul.f32.gmra.mxu0 %v1861
        %v2496 = vpop.f32.mrf.mxu0
        %v2497 = vadd.f32 %v2016, %v2496
        %2498 = vmatmul.f32.gmra.mxu0 %v1863
        %v2499 = vpop.f32.mrf.mxu0
        %v2500 = vadd.f32 %v2016, %v2499
        %2501 = vmatmul.f32.gmra.mxu0 %v1865
        %v2502 = vpop.f32.mrf.mxu0
        %v2503 = vadd.f32 %v2016, %v2502
        %2504 = vmatmul.f32.gmra.mxu0 %v1867
        %v2505 = vpop.f32.mrf.mxu0
        %v2506 = vadd.f32 %v2016, %v2505
        %2507 = vmatmul.f32.gmra.mxu0 %v1869
        %v2508 = vpop.f32.mrf.mxu0
        %v2509 = vadd.f32 %v2016, %v2508
        %2510 = vmatmul.f32.gmra.mxu0 %v1871
        %v2511 = vpop.f32.mrf.mxu0
        %v2512 = vadd.f32 %v2016, %v2511
        %2513 = vmatmul.f32.gmra.mxu0 %v1873
        %v2514 = vpop.f32.mrf.mxu0
        %v2515 = vadd.f32 %v2016, %v2514
        %2516 = vmatmul.f32.gmra.mxu0 %v1875
        %v2517 = vpop.f32.mrf.mxu0
        %v2518 = vadd.f32 %v2016, %v2517
        %2519 = vmatmul.f32.gmra.mxu0 %v1877
        %v2520 = vpop.f32.mrf.mxu0
        %v2521 = vadd.f32 %v2016, %v2520
        %2522 = vmatmul.f32.gmra.mxu0 %v1879
        %v2523 = vpop.f32.mrf.mxu0
        %v2524 = vadd.f32 %v2016, %v2523
        %2525 = vmatmul.f32.gmra.mxu0 %v1881
        %v2526 = vpop.f32.mrf.mxu0
        %v2527 = vadd.f32 %v2016, %v2526
        %2528 = vmatmul.f32.gmra.mxu0 %v1883
        %v2529 = vpop.f32.mrf.mxu0
        %v2530 = vadd.f32 %v2016, %v2529
        %2531 = vmatmul.f32.gmra.mxu0 %v1885
        %v2532 = vpop.f32.mrf.mxu0
        %v2533 = vadd.f32 %v2016, %v2532
        %2534 = vmatmul.f32.gmra.mxu0 %v1887
        %v2535 = vpop.f32.mrf.mxu0
        %v2536 = vadd.f32 %v2016, %v2535
        %2537 = vmatmul.f32.gmra.mxu0 %v1889
        %v2538 = vpop.f32.mrf.mxu0
        %v2539 = vadd.f32 %v2016, %v2538
        %2540 = vmatmul.f32.gmra.mxu0 %v1891
        %v2541 = vpop.f32.mrf.mxu0
        %v2542 = vadd.f32 %v2016, %v2541
        %2543 = vmatmul.f32.gmra.mxu0 %v1893
        %v2544 = vpop.f32.mrf.mxu0
        %v2545 = vadd.f32 %v2016, %v2544
        %2546 = vmatmul.f32.gmra.mxu0 %v1895
        %v2547 = vpop.f32.mrf.mxu0
        %v2548 = vadd.f32 %v2016, %v2547
        %2549 = vmatmul.f32.gmra.mxu0 %v1897
        %v2550 = vpop.f32.mrf.mxu0
        %v2551 = vadd.f32 %v2016, %v2550
        %2552 = vmatmul.f32.gmra.mxu0 %v1899
        %v2553 = vpop.f32.mrf.mxu0
        %v2554 = vadd.f32 %v2016, %v2553
        %2555 = vmatmul.f32.gmra.mxu0 %v1901
        %v2556 = vpop.f32.mrf.mxu0
        %v2557 = vadd.f32 %v2016, %v2556
        %2558 = vmatmul.f32.gmra.mxu0 %v1903
        %v2559 = vpop.f32.mrf.mxu0
        %v2560 = vadd.f32 %v2016, %v2559
        %2561 = vmatmul.f32.gmra.mxu0 %v1905
        %v2562 = vpop.f32.mrf.mxu0
        %v2563 = vadd.f32 %v2016, %v2562
        %2564 = vmatmul.f32.gmra.mxu0 %v1907
        %v2565 = vpop.f32.mrf.mxu0
        %v2566 = vadd.f32 %v2016, %v2565
        %2567 = vmatmul.f32.gmra.mxu0 %v1909
        %v2568 = vpop.f32.mrf.mxu0
        %v2569 = vadd.f32 %v2016, %v2568
        %2570 = vmatmul.f32.gmra.mxu0 %v1911
        %v2571 = vpop.f32.mrf.mxu0
        %v2572 = vadd.f32 %v2016, %v2571
        %2573 = vmatmul.f32.gmra.mxu0 %v1913
        %v2574 = vpop.f32.mrf.mxu0
        %v2575 = vadd.f32 %v2016, %v2574
        %2576 = vmatmul.f32.gmra.mxu0 %v1915
        %v2577 = vpop.f32.mrf.mxu0
        %v2578 = vadd.f32 %v2016, %v2577
        %2579 = vmatmul.f32.gmra.mxu0 %v1917
        %v2580 = vpop.f32.mrf.mxu0
        %v2581 = vadd.f32 %v2016, %v2580
        %2582 = vdwg.mxu0
        %2583 = vmatpush.msra.mxu0 %v1949
        %2584 = vmatpush.msra.mxu0 %v1947
        %2585 = vmatpush.msra.mxu0 %v1945
        %2586 = vmatpush.msra.mxu0 %v1943
        %2587 = vmatpush.msra.mxu0 %v1941
        %2588 = vmatpush.msra.mxu0 %v1939
        %2589 = vmatpush.msra.mxu0 %v1937
        %2590 = vmatpush.msra.mxu0 %v1935
        %2591 = vmatpush.msra.mxu0 %v1933
        %2592 = vmatpush.msra.mxu0 %v1931
        %2593 = vmatpush.msra.mxu0 %v1929
        %2594 = vmatpush.msra.mxu0 %v1927
        %2595 = vmatpush.msra.mxu0 %v1925
        %2596 = vmatpush.msra.mxu0 %v1923
        %2597 = vmatpush.msra.mxu0 %v1921
        %2598 = vmatpush.msra.mxu0 %v1919
        %2599 = vmatmul.f32.gmra.mxu0 %v1855
        %v2600 = vpop.f32.mrf.mxu0
        %v2601 = vadd.f32 %v2017, %v2600
        %2602 = vmatmul.f32.gmra.mxu0 %v1857
        %v2603 = vpop.f32.mrf.mxu0
        %v2604 = vadd.f32 %v2017, %v2603
        %2605 = vmatmul.f32.gmra.mxu0 %v1859
        %v2606 = vpop.f32.mrf.mxu0
        %v2607 = vadd.f32 %v2017, %v2606
        %2608 = vmatmul.f32.gmra.mxu0 %v1861
        %v2609 = vpop.f32.mrf.mxu0
        %v2610 = vadd.f32 %v2017, %v2609
        %2611 = vmatmul.f32.gmra.mxu0 %v1863
        %v2612 = vpop.f32.mrf.mxu0
        %v2613 = vadd.f32 %v2017, %v2612
        %2614 = vmatmul.f32.gmra.mxu0 %v1865
        %v2615 = vpop.f32.mrf.mxu0
        %v2616 = vadd.f32 %v2017, %v2615
        %2617 = vmatmul.f32.gmra.mxu0 %v1867
        %v2618 = vpop.f32.mrf.mxu0
        %v2619 = vadd.f32 %v2017, %v2618
        %2620 = vmatmul.f32.gmra.mxu0 %v1869
        %v2621 = vpop.f32.mrf.mxu0
        %v2622 = vadd.f32 %v2017, %v2621
        %2623 = vmatmul.f32.gmra.mxu0 %v1871
        %v2624 = vpop.f32.mrf.mxu0
        %v2625 = vadd.f32 %v2017, %v2624
        %2626 = vmatmul.f32.gmra.mxu0 %v1873
        %v2627 = vpop.f32.mrf.mxu0
        %v2628 = vadd.f32 %v2017, %v2627
        %2629 = vmatmul.f32.gmra.mxu0 %v1875
        %v2630 = vpop.f32.mrf.mxu0
        %v2631 = vadd.f32 %v2017, %v2630
        %2632 = vmatmul.f32.gmra.mxu0 %v1877
        %v2633 = vpop.f32.mrf.mxu0
        %v2634 = vadd.f32 %v2017, %v2633
        %2635 = vmatmul.f32.gmra.mxu0 %v1879
        %v2636 = vpop.f32.mrf.mxu0
        %v2637 = vadd.f32 %v2017, %v2636
        %2638 = vmatmul.f32.gmra.mxu0 %v1881
        %v2639 = vpop.f32.mrf.mxu0
        %v2640 = vadd.f32 %v2017, %v2639
        %2641 = vmatmul.f32.gmra.mxu0 %v1883
        %v2642 = vpop.f32.mrf.mxu0
        %v2643 = vadd.f32 %v2017, %v2642
        %2644 = vmatmul.f32.gmra.mxu0 %v1885
        %v2645 = vpop.f32.mrf.mxu0
        %v2646 = vadd.f32 %v2017, %v2645
        %2647 = vmatmul.f32.gmra.mxu0 %v1887
        %v2648 = vpop.f32.mrf.mxu0
        %v2649 = vadd.f32 %v2017, %v2648
        %2650 = vmatmul.f32.gmra.mxu0 %v1889
        %v2651 = vpop.f32.mrf.mxu0
        %v2652 = vadd.f32 %v2017, %v2651
        %2653 = vmatmul.f32.gmra.mxu0 %v1891
        %v2654 = vpop.f32.mrf.mxu0
        %v2655 = vadd.f32 %v2017, %v2654
        %2656 = vmatmul.f32.gmra.mxu0 %v1893
        %v2657 = vpop.f32.mrf.mxu0
        %v2658 = vadd.f32 %v2017, %v2657
        %2659 = vmatmul.f32.gmra.mxu0 %v1895
        %v2660 = vpop.f32.mrf.mxu0
        %v2661 = vadd.f32 %v2017, %v2660
        %2662 = vmatmul.f32.gmra.mxu0 %v1897
        %v2663 = vpop.f32.mrf.mxu0
        %v2664 = vadd.f32 %v2017, %v2663
        %2665 = vmatmul.f32.gmra.mxu0 %v1899
        %v2666 = vpop.f32.mrf.mxu0
        %v2667 = vadd.f32 %v2017, %v2666
        %2668 = vmatmul.f32.gmra.mxu0 %v1901
        %v2669 = vpop.f32.mrf.mxu0
        %v2670 = vadd.f32 %v2017, %v2669
        %2671 = vmatmul.f32.gmra.mxu0 %v1903
        %v2672 = vpop.f32.mrf.mxu0
        %v2673 = vadd.f32 %v2017, %v2672
        %2674 = vmatmul.f32.gmra.mxu0 %v1905
        %v2675 = vpop.f32.mrf.mxu0
        %v2676 = vadd.f32 %v2017, %v2675
        %2677 = vmatmul.f32.gmra.mxu0 %v1907
        %v2678 = vpop.f32.mrf.mxu0
        %v2679 = vadd.f32 %v2017, %v2678
        %2680 = vmatmul.f32.gmra.mxu0 %v1909
        %v2681 = vpop.f32.mrf.mxu0
        %v2682 = vadd.f32 %v2017, %v2681
        %2683 = vmatmul.f32.gmra.mxu0 %v1911
        %v2684 = vpop.f32.mrf.mxu0
        %v2685 = vadd.f32 %v2017, %v2684
        %2686 = vmatmul.f32.gmra.mxu0 %v1913
        %v2687 = vpop.f32.mrf.mxu0
        %v2688 = vadd.f32 %v2017, %v2687
        %2689 = vmatmul.f32.gmra.mxu0 %v1915
        %v2690 = vpop.f32.mrf.mxu0
        %v2691 = vadd.f32 %v2017, %v2690
        %2692 = vmatmul.f32.gmra.mxu0 %v1917
        %v2693 = vpop.f32.mrf.mxu0
        %v2694 = vadd.f32 %v2017, %v2693
        %2695 = vdwg.mxu0
        %v2696 = vmul.f32 %v2601, 0.5
        %v2697 = vmul.f32 %v2604, 0.5
        %v2698 = vmul.f32 %v2607, 0.5
        %v2699 = vmul.f32 %v2610, 0.5
        %v2700 = vmul.f32 %v2613, 0.5
        %v2701 = vmul.f32 %v2616, 0.5
        %v2702 = vmul.f32 %v2619, 0.5
        %v2703 = vmul.f32 %v2622, 0.5
        %v2704 = vmul.f32 %v2625, 0.5
        %v2705 = vmul.f32 %v2628, 0.5
        %v2706 = vmul.f32 %v2631, 0.5
        %v2707 = vmul.f32 %v2634, 0.5
        %v2708 = vmul.f32 %v2637, 0.5
        %v2709 = vmul.f32 %v2640, 0.5
        %v2710 = vmul.f32 %v2643, 0.5
        %v2711 = vmul.f32 %v2646, 0.5
        %v2712 = vmul.f32 %v2649, 0.5
        %v2713 = vmul.f32 %v2652, 0.5
        %v2714 = vmul.f32 %v2655, 0.5
        %v2715 = vmul.f32 %v2658, 0.5
        %v2716 = vmul.f32 %v2661, 0.5
        %v2717 = vmul.f32 %v2664, 0.5
        %v2718 = vmul.f32 %v2667, 0.5
        %v2719 = vmul.f32 %v2670, 0.5
        %v2720 = vmul.f32 %v2673, 0.5
        %v2721 = vmul.f32 %v2676, 0.5
        %v2722 = vmul.f32 %v2679, 0.5
        %v2723 = vmul.f32 %v2682, 0.5
        %v2724 = vmul.f32 %v2685, 0.5
        %v2725 = vmul.f32 %v2688, 0.5
        %v2726 = vmul.f32 %v2691, 0.5
        %v2727 = vmul.f32 %v2694, 0.5
        %v2728 = vmul.f32 %v2696, 1.442695
        %v2729 = vpow.pop %v2728
        %v2730 = vmul.f32 %v2697, 1.442695
        %v2731 = vpow.pop %v2730
        %v2732 = vmul.f32 %v2698, 1.442695
        %v2733 = vpow.pop %v2732
        %v2734 = vmul.f32 %v2699, 1.442695
        %v2735 = vpow.pop %v2734
        %v2736 = vmul.f32 %v2700, 1.442695
        %v2737 = vpow.pop %v2736
        %v2738 = vmul.f32 %v2701, 1.442695
        %v2739 = vpow.pop %v2738
        %v2740 = vmul.f32 %v2702, 1.442695
        %v2741 = vpow.pop %v2740
        %v2742 = vmul.f32 %v2703, 1.442695
        %v2743 = vpow.pop %v2742
        %v2744 = vmul.f32 %v2704, 1.442695
        %v2745 = vpow.pop %v2744
        %v2746 = vmul.f32 %v2705, 1.442695
        %v2747 = vpow.pop %v2746
        %v2748 = vmul.f32 %v2706, 1.442695
        %v2749 = vpow.pop %v2748
        %v2750 = vmul.f32 %v2707, 1.442695
        %v2751 = vpow.pop %v2750
        %v2752 = vmul.f32 %v2708, 1.442695
        %v2753 = vpow.pop %v2752
        %v2754 = vmul.f32 %v2709, 1.442695
        %v2755 = vpow.pop %v2754
        %v2756 = vmul.f32 %v2710, 1.442695
        %v2757 = vpow.pop %v2756
        %v2758 = vmul.f32 %v2711, 1.442695
        %v2759 = vpow.pop %v2758
        %v2760 = vmul.f32 %v2712, 1.442695
        %v2761 = vpow.pop %v2760
        %v2762 = vmul.f32 %v2713, 1.442695
        %v2763 = vpow.pop %v2762
        %v2764 = vmul.f32 %v2714, 1.442695
        %v2765 = vpow.pop %v2764
        %v2766 = vmul.f32 %v2715, 1.442695
        %v2767 = vpow.pop %v2766
        %v2768 = vmul.f32 %v2716, 1.442695
        %v2769 = vpow.pop %v2768
        %v2770 = vmul.f32 %v2717, 1.442695
        %v2771 = vpow.pop %v2770
        %v2772 = vmul.f32 %v2718, 1.442695
        %v2773 = vpow.pop %v2772
        %v2774 = vmul.f32 %v2719, 1.442695
        %v2775 = vpow.pop %v2774
        %v2776 = vmul.f32 %v2720, 1.442695
        %v2777 = vpow.pop %v2776
        %v2778 = vmul.f32 %v2721, 1.442695
        %v2779 = vpow.pop %v2778
        %v2780 = vmul.f32 %v2722, 1.442695
        %v2781 = vpow.pop %v2780
        %v2782 = vmul.f32 %v2723, 1.442695
        %v2783 = vpow.pop %v2782
        %v2784 = vmul.f32 %v2724, 1.442695
        %v2785 = vpow.pop %v2784
        %v2786 = vmul.f32 %v2725, 1.442695
        %v2787 = vpow.pop %v2786
        %v2788 = vmul.f32 %v2726, 1.442695
        %v2789 = vpow.pop %v2788
        %v2790 = vmul.f32 %v2727, 1.442695
        %v2791 = vpow.pop %v2790
        %v2792 = vmul.f32 %v2729, %v1952
        %v2793 = vmul.f32 %v2731, %v1954
        %v2794 = vmul.f32 %v2733, %v1956
        %v2795 = vmul.f32 %v2735, %v1958
        %v2796 = vmul.f32 %v2737, %v1960
        %v2797 = vmul.f32 %v2739, %v1962
        %v2798 = vmul.f32 %v2741, %v1964
        %v2799 = vmul.f32 %v2743, %v1966
        %v2800 = vmul.f32 %v2745, %v1968
        %v2801 = vmul.f32 %v2747, %v1970
        %v2802 = vmul.f32 %v2749, %v1972
        %v2803 = vmul.f32 %v2751, %v1974
        %v2804 = vmul.f32 %v2753, %v1976
        %v2805 = vmul.f32 %v2755, %v1978
        %v2806 = vmul.f32 %v2757, %v1980
        %v2807 = vmul.f32 %v2759, %v1982
        %v2808 = vmul.f32 %v2761, %v1984
        %v2809 = vmul.f32 %v2763, %v1986
        %v2810 = vmul.f32 %v2765, %v1988
        %v2811 = vmul.f32 %v2767, %v1990
        %v2812 = vmul.f32 %v2769, %v1992
        %v2813 = vmul.f32 %v2771, %v1994
        %v2814 = vmul.f32 %v2773, %v1996
        %v2815 = vmul.f32 %v2775, %v1998
        %v2816 = vmul.f32 %v2777, %v2000
        %v2817 = vmul.f32 %v2779, %v2002
        %v2818 = vmul.f32 %v2781, %v2004
        %v2819 = vmul.f32 %v2783, %v2006
        %v2820 = vmul.f32 %v2785, %v2008
        %v2821 = vmul.f32 %v2787, %v2010
        %v2822 = vmul.f32 %v2789, %v2012
        %v2823 = vmul.f32 %v2791, %v2014
        %v2824 = vadd.f32 %v2488, %v2792
        %v2825 = vadd.f32 %v2491, %v2793
        %v2826 = vadd.f32 %v2494, %v2794
        %v2827 = vadd.f32 %v2497, %v2795
        %v2828 = vadd.f32 %v2500, %v2796
        %v2829 = vadd.f32 %v2503, %v2797
        %v2830 = vadd.f32 %v2506, %v2798
        %v2831 = vadd.f32 %v2509, %v2799
        %v2832 = vadd.f32 %v2512, %v2800
        %v2833 = vadd.f32 %v2515, %v2801
        %v2834 = vadd.f32 %v2518, %v2802
        %v2835 = vadd.f32 %v2521, %v2803
        %v2836 = vadd.f32 %v2524, %v2804
        %v2837 = vadd.f32 %v2527, %v2805
        %v2838 = vadd.f32 %v2530, %v2806
        %v2839 = vadd.f32 %v2533, %v2807
        %v2840 = vadd.f32 %v2536, %v2808
        %v2841 = vadd.f32 %v2539, %v2809
        %v2842 = vadd.f32 %v2542, %v2810
        %v2843 = vadd.f32 %v2545, %v2811
        %v2844 = vadd.f32 %v2548, %v2812
        %v2845 = vadd.f32 %v2551, %v2813
        %v2846 = vadd.f32 %v2554, %v2814
        %v2847 = vadd.f32 %v2557, %v2815
        %v2848 = vadd.f32 %v2560, %v2816
        %v2849 = vadd.f32 %v2563, %v2817
        %v2850 = vadd.f32 %v2566, %v2818
        %v2851 = vadd.f32 %v2569, %v2819
        %v2852 = vadd.f32 %v2572, %v2820
        %v2853 = vadd.f32 %v2575, %v2821
        %v2854 = vadd.f32 %v2578, %v2822
        %v2855 = vadd.f32 %v2581, %v2823
        %2856 = vst [vmem:[%s707 + $0x8] sm:$0xff] %v2488
        %2857 = vst [vmem:[%s707 + $0x18] sm:$0xff] %v2491
        %2858 = vst [vmem:[%s707 + $0x28] sm:$0xff] %v2494
        %2859 = vst [vmem:[%s707 + $0x38] sm:$0xff] %v2497
        %2860 = vst [vmem:[%s707 + $0x48] sm:$0xff] %v2500
        %2861 = vst [vmem:[%s707 + $0x58] sm:$0xff] %v2503
        %2862 = vst [vmem:[%s707 + $0x68] sm:$0xff] %v2506
        %2863 = vst [vmem:[%s707 + $0x78] sm:$0xff] %v2509
        %2864 = vst [vmem:[%s707 + $0x88] sm:$0xff] %v2512
        %2865 = vst [vmem:[%s707 + $0x98] sm:$0xff] %v2515
        %2866 = vst [vmem:[%s707 + $0xa8] sm:$0xff] %v2518
        %2867 = vst [vmem:[%s707 + $0xb8] sm:$0xff] %v2521
        %2868 = vst [vmem:[%s707 + $0xc8] sm:$0xff] %v2524
        %2869 = vst [vmem:[%s707 + $0xd8] sm:$0xff] %v2527
        %2870 = vst [vmem:[%s707 + $0xe8] sm:$0xff] %v2530
        %2871 = vst [vmem:[%s707 + $0xf8] sm:$0xff] %v2533
        %2872 = vst [vmem:[%s707 + $0x108] sm:$0xff] %v2536
        %2873 = vst [vmem:[%s707 + $0x118] sm:$0xff] %v2539
        %2874 = vst [vmem:[%s707 + $0x128] sm:$0xff] %v2542
        %2875 = vst [vmem:[%s707 + $0x138] sm:$0xff] %v2545
        %2876 = vst [vmem:[%s707 + $0x148] sm:$0xff] %v2548
        %2877 = vst [vmem:[%s707 + $0x158] sm:$0xff] %v2551
        %2878 = vst [vmem:[%s707 + $0x168] sm:$0xff] %v2554
        %2879 = vst [vmem:[%s707 + $0x178] sm:$0xff] %v2557
        %2880 = vst [vmem:[%s707 + $0x188] sm:$0xff] %v2560
        %2881 = vst [vmem:[%s707 + $0x198] sm:$0xff] %v2563
        %2882 = vst [vmem:[%s707 + $0x1a8] sm:$0xff] %v2566
        %2883 = vst [vmem:[%s707 + $0x1b8] sm:$0xff] %v2569
        %2884 = vst [vmem:[%s707 + $0x1c8] sm:$0xff] %v2572
        %2885 = vst [vmem:[%s707 + $0x1d8] sm:$0xff] %v2575
        %2886 = vst [vmem:[%s707 + $0x1e8] sm:$0xff] %v2578
        %2887 = vst [vmem:[%s707 + $0x1f8] sm:$0xff] %v2581
        %2888 = vst [vmem:[%s714 + $0x8] sm:$0xff] %v2601
        %2889 = vst [vmem:[%s714 + $0x18] sm:$0xff] %v2604
        %2890 = vst [vmem:[%s714 + $0x28] sm:$0xff] %v2607
        %2891 = vst [vmem:[%s714 + $0x38] sm:$0xff] %v2610
        %2892 = vst [vmem:[%s714 + $0x48] sm:$0xff] %v2613
        %2893 = vst [vmem:[%s714 + $0x58] sm:$0xff] %v2616
        %2894 = vst [vmem:[%s714 + $0x68] sm:$0xff] %v2619
        %2895 = vst [vmem:[%s714 + $0x78] sm:$0xff] %v2622
        %2896 = vst [vmem:[%s714 + $0x88] sm:$0xff] %v2625
        %2897 = vst [vmem:[%s714 + $0x98] sm:$0xff] %v2628
        %2898 = vst [vmem:[%s714 + $0xa8] sm:$0xff] %v2631
        %2899 = vst [vmem:[%s714 + $0xb8] sm:$0xff] %v2634
        %2900 = vst [vmem:[%s714 + $0xc8] sm:$0xff] %v2637
        %2901 = vst [vmem:[%s714 + $0xd8] sm:$0xff] %v2640
        %2902 = vst [vmem:[%s714 + $0xe8] sm:$0xff] %v2643
        %2903 = vst [vmem:[%s714 + $0xf8] sm:$0xff] %v2646
        %2904 = vst [vmem:[%s714 + $0x108] sm:$0xff] %v2649
        %2905 = vst [vmem:[%s714 + $0x118] sm:$0xff] %v2652
        %2906 = vst [vmem:[%s714 + $0x128] sm:$0xff] %v2655
        %2907 = vst [vmem:[%s714 + $0x138] sm:$0xff] %v2658
        %2908 = vst [vmem:[%s714 + $0x148] sm:$0xff] %v2661
        %2909 = vst [vmem:[%s714 + $0x158] sm:$0xff] %v2664
        %2910 = vst [vmem:[%s714 + $0x168] sm:$0xff] %v2667
        %2911 = vst [vmem:[%s714 + $0x178] sm:$0xff] %v2670
        %2912 = vst [vmem:[%s714 + $0x188] sm:$0xff] %v2673
        %2913 = vst [vmem:[%s714 + $0x198] sm:$0xff] %v2676
        %2914 = vst [vmem:[%s714 + $0x1a8] sm:$0xff] %v2679
        %2915 = vst [vmem:[%s714 + $0x1b8] sm:$0xff] %v2682
        %2916 = vst [vmem:[%s714 + $0x1c8] sm:$0xff] %v2685
        %2917 = vst [vmem:[%s714 + $0x1d8] sm:$0xff] %v2688
        %2918 = vst [vmem:[%s714 + $0x1e8] sm:$0xff] %v2691
        %2919 = vst [vmem:[%s714 + $0x1f8] sm:$0xff] %v2694
        %v2920 = vld [vmem:[%s8] sm:$0xff]
        %v2921 = vld [vmem:[%s8 + $0x8] sm:$0xff]
        %v2922 = vld [vmem:[%s8 + $0x10] sm:$0xff]
        %v2923 = vld [vmem:[%s8 + $0x18] sm:$0xff]
        %v2924 = vld [vmem:[%s8 + $0x20] sm:$0xff]
        %v2925 = vld [vmem:[%s8 + $0x28] sm:$0xff]
        %v2926 = vld [vmem:[%s8 + $0x30] sm:$0xff]
        %v2927 = vld [vmem:[%s8 + $0x38] sm:$0xff]
        %v2928 = vld [vmem:[%s8 + $0x40] sm:$0xff]
        %v2929 = vld [vmem:[%s8 + $0x48] sm:$0xff]
        %v2930 = vld [vmem:[%s8 + $0x50] sm:$0xff]
        %v2931 = vld [vmem:[%s8 + $0x58] sm:$0xff]
        %v2932 = vld [vmem:[%s8 + $0x60] sm:$0xff]
        %v2933 = vld [vmem:[%s8 + $0x68] sm:$0xff]
        %v2934 = vld [vmem:[%s8 + $0x70] sm:$0xff]
        %v2935 = vld [vmem:[%s8 + $0x78] sm:$0xff]
        %v2936 = vld [vmem:[%s8 + $0x80] sm:$0xff]
        %v2937 = vld [vmem:[%s8 + $0x88] sm:$0xff]
        %v2938 = vld [vmem:[%s8 + $0x90] sm:$0xff]
        %v2939 = vld [vmem:[%s8 + $0x98] sm:$0xff]
        %v2940 = vld [vmem:[%s8 + $0xa0] sm:$0xff]
        %v2941 = vld [vmem:[%s8 + $0xa8] sm:$0xff]
        %v2942 = vld [vmem:[%s8 + $0xb0] sm:$0xff]
        %v2943 = vld [vmem:[%s8 + $0xb8] sm:$0xff]
        %v2944 = vld [vmem:[%s8 + $0xc0] sm:$0xff]
        %v2945 = vld [vmem:[%s8 + $0xc8] sm:$0xff]
        %v2946 = vld [vmem:[%s8 + $0xd0] sm:$0xff]
        %v2947 = vld [vmem:[%s8 + $0xd8] sm:$0xff]
        %v2948 = vld [vmem:[%s8 + $0xe0] sm:$0xff]
        %v2949 = vld [vmem:[%s8 + $0xe8] sm:$0xff]
        %v2950 = vld [vmem:[%s8 + $0xf0] sm:$0xff]
        %v2951 = vld [vmem:[%s8 + $0xf8] sm:$0xff]
        %v2952 = vld [vmem:[%s8 + $0x100] sm:$0xff]
        %v2953 = vld [vmem:[%s8 + $0x108] sm:$0xff]
        %v2954 = vld [vmem:[%s8 + $0x110] sm:$0xff]
        %v2955 = vld [vmem:[%s8 + $0x118] sm:$0xff]
        %v2956 = vld [vmem:[%s8 + $0x120] sm:$0xff]
        %v2957 = vld [vmem:[%s8 + $0x128] sm:$0xff]
        %v2958 = vld [vmem:[%s8 + $0x130] sm:$0xff]
        %v2959 = vld [vmem:[%s8 + $0x138] sm:$0xff]
        %v2960 = vld [vmem:[%s8 + $0x140] sm:$0xff]
        %v2961 = vld [vmem:[%s8 + $0x148] sm:$0xff]
        %v2962 = vld [vmem:[%s8 + $0x150] sm:$0xff]
        %v2963 = vld [vmem:[%s8 + $0x158] sm:$0xff]
        %v2964 = vld [vmem:[%s8 + $0x160] sm:$0xff]
        %v2965 = vld [vmem:[%s8 + $0x168] sm:$0xff]
        %v2966 = vld [vmem:[%s8 + $0x170] sm:$0xff]
        %v2967 = vld [vmem:[%s8 + $0x178] sm:$0xff]
        %v2968 = vld [vmem:[%s8 + $0x180] sm:$0xff]
        %v2969 = vld [vmem:[%s8 + $0x188] sm:$0xff]
        %v2970 = vld [vmem:[%s8 + $0x190] sm:$0xff]
        %v2971 = vld [vmem:[%s8 + $0x198] sm:$0xff]
        %v2972 = vld [vmem:[%s8 + $0x1a0] sm:$0xff]
        %v2973 = vld [vmem:[%s8 + $0x1a8] sm:$0xff]
        %v2974 = vld [vmem:[%s8 + $0x1b0] sm:$0xff]
        %v2975 = vld [vmem:[%s8 + $0x1b8] sm:$0xff]
        %v2976 = vld [vmem:[%s8 + $0x1c0] sm:$0xff]
        %v2977 = vld [vmem:[%s8 + $0x1c8] sm:$0xff]
        %v2978 = vld [vmem:[%s8 + $0x1d0] sm:$0xff]
        %v2979 = vld [vmem:[%s8 + $0x1d8] sm:$0xff]
        %v2980 = vld [vmem:[%s8 + $0x1e0] sm:$0xff]
        %v2981 = vld [vmem:[%s8 + $0x1e8] sm:$0xff]
        %v2982 = vld [vmem:[%s8 + $0x1f0] sm:$0xff]
        %v2983 = vld [vmem:[%s8 + $0x1f8] sm:$0xff]
        %v2984 = vld [vmem:[#allocation11] sm:$0x3]
        %v2986 = vperm.slane %v2984, 0
        %v2987 = vperm.slane %v2984, 1
        %2990 = vmatpush.msra.mxu0 %v2950
        %2991 = vmatpush.msra.mxu0 %v2948
        %2992 = vmatpush.msra.mxu0 %v2946
        %2993 = vmatpush.msra.mxu0 %v2944
        %2994 = vmatpush.msra.mxu0 %v2942
        %2995 = vmatpush.msra.mxu0 %v2940
        %2996 = vmatpush.msra.mxu0 %v2938
        %2997 = vmatpush.msra.mxu0 %v2936
        %2998 = vmatpush.msra.mxu0 %v2934
        %2999 = vmatpush.msra.mxu0 %v2932
        %3000 = vmatpush.msra.mxu0 %v2930
        %3001 = vmatpush.msra.mxu0 %v2928
        %3002 = vmatpush.msra.mxu0 %v2926
        %3003 = vmatpush.msra.mxu0 %v2924
        %3004 = vmatpush.msra.mxu0 %v2922
        %3005 = vmatpush.msra.mxu0 %v2920
        %3006 = vmatmul.f32.gmra.mxu0 %v2374
        %v3007 = vpop.f32.mrf.mxu0
        %v3008 = vadd.f32 %v2986, %v3007
        %3009 = vmatmul.f32.gmra.mxu0 %v2375
        %v3010 = vpop.f32.mrf.mxu0
        %v3011 = vadd.f32 %v2986, %v3010
        %3012 = vmatmul.f32.gmra.mxu0 %v2376
        %v3013 = vpop.f32.mrf.mxu0
        %v3014 = vadd.f32 %v2986, %v3013
        %3015 = vmatmul.f32.gmra.mxu0 %v2377
        %v3016 = vpop.f32.mrf.mxu0
        %v3017 = vadd.f32 %v2986, %v3016
        %3018 = vmatmul.f32.gmra.mxu0 %v2378
        %v3019 = vpop.f32.mrf.mxu0
        %v3020 = vadd.f32 %v2986, %v3019
        %3021 = vmatmul.f32.gmra.mxu0 %v2379
        %v3022 = vpop.f32.mrf.mxu0
        %v3023 = vadd.f32 %v2986, %v3022
        %3024 = vmatmul.f32.gmra.mxu0 %v2380
        %v3025 = vpop.f32.mrf.mxu0
        %v3026 = vadd.f32 %v2986, %v3025
        %3027 = vmatmul.f32.gmra.mxu0 %v2381
        %v3028 = vpop.f32.mrf.mxu0
        %v3029 = vadd.f32 %v2986, %v3028
        %3030 = vmatmul.f32.gmra.mxu0 %v2382
        %v3031 = vpop.f32.mrf.mxu0
        %v3032 = vadd.f32 %v2986, %v3031
        %3033 = vmatmul.f32.gmra.mxu0 %v2383
        %v3034 = vpop.f32.mrf.mxu0
        %v3035 = vadd.f32 %v2986, %v3034
        %3036 = vmatmul.f32.gmra.mxu0 %v2384
        %v3037 = vpop.f32.mrf.mxu0
        %v3038 = vadd.f32 %v2986, %v3037
        %3039 = vmatmul.f32.gmra.mxu0 %v2385
        %v3040 = vpop.f32.mrf.mxu0
        %v3041 = vadd.f32 %v2986, %v3040
        %3042 = vmatmul.f32.gmra.mxu0 %v2386
        %v3043 = vpop.f32.mrf.mxu0
        %v3044 = vadd.f32 %v2986, %v3043
        %3045 = vmatmul.f32.gmra.mxu0 %v2387
        %v3046 = vpop.f32.mrf.mxu0
        %v3047 = vadd.f32 %v2986, %v3046
        %3048 = vmatmul.f32.gmra.mxu0 %v2388
        %v3049 = vpop.f32.mrf.mxu0
        %v3050 = vadd.f32 %v2986, %v3049
        %3051 = vmatmul.f32.gmra.mxu0 %v2389
        %v3052 = vpop.f32.mrf.mxu0
        %v3053 = vadd.f32 %v2986, %v3052
        %3054 = vmatmul.f32.gmra.mxu0 %v2390
        %v3055 = vpop.f32.mrf.mxu0
        %v3056 = vadd.f32 %v2986, %v3055
        %3057 = vmatmul.f32.gmra.mxu0 %v2391
        %v3058 = vpop.f32.mrf.mxu0
        %v3059 = vadd.f32 %v2986, %v3058
        %3060 = vmatmul.f32.gmra.mxu0 %v2392
        %v3061 = vpop.f32.mrf.mxu0
        %v3062 = vadd.f32 %v2986, %v3061
        %3063 = vmatmul.f32.gmra.mxu0 %v2393
        %v3064 = vpop.f32.mrf.mxu0
        %v3065 = vadd.f32 %v2986, %v3064
        %3066 = vmatmul.f32.gmra.mxu0 %v2394
        %v3067 = vpop.f32.mrf.mxu0
        %v3068 = vadd.f32 %v2986, %v3067
        %3069 = vmatmul.f32.gmra.mxu0 %v2395
        %v3070 = vpop.f32.mrf.mxu0
        %v3071 = vadd.f32 %v2986, %v3070
        %3072 = vmatmul.f32.gmra.mxu0 %v2396
        %v3073 = vpop.f32.mrf.mxu0
        %v3074 = vadd.f32 %v2986, %v3073
        %3075 = vmatmul.f32.gmra.mxu0 %v2397
        %v3076 = vpop.f32.mrf.mxu0
        %v3077 = vadd.f32 %v2986, %v3076
        %3078 = vmatmul.f32.gmra.mxu0 %v2398
        %v3079 = vpop.f32.mrf.mxu0
        %v3080 = vadd.f32 %v2986, %v3079
        %3081 = vmatmul.f32.gmra.mxu0 %v2399
        %v3082 = vpop.f32.mrf.mxu0
        %v3083 = vadd.f32 %v2986, %v3082
        %3084 = vmatmul.f32.gmra.mxu0 %v2400
        %v3085 = vpop.f32.mrf.mxu0
        %v3086 = vadd.f32 %v2986, %v3085
        %3087 = vmatmul.f32.gmra.mxu0 %v2401
        %v3088 = vpop.f32.mrf.mxu0
        %v3089 = vadd.f32 %v2986, %v3088
        %3090 = vmatmul.f32.gmra.mxu0 %v2402
        %v3091 = vpop.f32.mrf.mxu0
        %v3092 = vadd.f32 %v2986, %v3091
        %3093 = vmatmul.f32.gmra.mxu0 %v2403
        %v3094 = vpop.f32.mrf.mxu0
        %v3095 = vadd.f32 %v2986, %v3094
        %3096 = vmatmul.f32.gmra.mxu0 %v2404
        %v3097 = vpop.f32.mrf.mxu0
        %v3098 = vadd.f32 %v2986, %v3097
        %3099 = vmatmul.f32.gmra.mxu0 %v2405
        %v3100 = vpop.f32.mrf.mxu0
        %v3101 = vadd.f32 %v2986, %v3100
        %3102 = vdwg.mxu0
        %3103 = vmatpush.msra.mxu0 %v2982
        %3104 = vmatpush.msra.mxu0 %v2980
        %3105 = vmatpush.msra.mxu0 %v2978
        %3106 = vmatpush.msra.mxu0 %v2976
        %3107 = vmatpush.msra.mxu0 %v2974
        %3108 = vmatpush.msra.mxu0 %v2972
        %3109 = vmatpush.msra.mxu0 %v2970
        %3110 = vmatpush.msra.mxu0 %v2968
        %3111 = vmatpush.msra.mxu0 %v2966
        %3112 = vmatpush.msra.mxu0 %v2964
        %3113 = vmatpush.msra.mxu0 %v2962
        %3114 = vmatpush.msra.mxu0 %v2960
        %3115 = vmatpush.msra.mxu0 %v2958
        %3116 = vmatpush.msra.mxu0 %v2956
        %3117 = vmatpush.msra.mxu0 %v2954
        %3118 = vmatpush.msra.mxu0 %v2952
        %3119 = vmatmul.f32.gmra.mxu0 %v2824
        %v3120 = vpop.f32.mrf.mxu0
        %v3121 = vadd.f32 %v3008, %v3120
        %3122 = vmatmul.f32.gmra.mxu0 %v2825
        %v3123 = vpop.f32.mrf.mxu0
        %v3124 = vadd.f32 %v3011, %v3123
        %3125 = vmatmul.f32.gmra.mxu0 %v2826
        %v3126 = vpop.f32.mrf.mxu0
        %v3127 = vadd.f32 %v3014, %v3126
        %3128 = vmatmul.f32.gmra.mxu0 %v2827
        %v3129 = vpop.f32.mrf.mxu0
        %v3130 = vadd.f32 %v3017, %v3129
        %3131 = vmatmul.f32.gmra.mxu0 %v2828
        %v3132 = vpop.f32.mrf.mxu0
        %v3133 = vadd.f32 %v3020, %v3132
        %3134 = vmatmul.f32.gmra.mxu0 %v2829
        %v3135 = vpop.f32.mrf.mxu0
        %v3136 = vadd.f32 %v3023, %v3135
        %3137 = vmatmul.f32.gmra.mxu0 %v2830
        %v3138 = vpop.f32.mrf.mxu0
        %v3139 = vadd.f32 %v3026, %v3138
        %3140 = vmatmul.f32.gmra.mxu0 %v2831
        %v3141 = vpop.f32.mrf.mxu0
        %v3142 = vadd.f32 %v3029, %v3141
        %3143 = vmatmul.f32.gmra.mxu0 %v2832
        %v3144 = vpop.f32.mrf.mxu0
        %v3145 = vadd.f32 %v3032, %v3144
        %3146 = vmatmul.f32.gmra.mxu0 %v2833
        %v3147 = vpop.f32.mrf.mxu0
        %v3148 = vadd.f32 %v3035, %v3147
        %3149 = vmatmul.f32.gmra.mxu0 %v2834
        %v3150 = vpop.f32.mrf.mxu0
        %v3151 = vadd.f32 %v3038, %v3150
        %3152 = vmatmul.f32.gmra.mxu0 %v2835
        %v3153 = vpop.f32.mrf.mxu0
        %v3154 = vadd.f32 %v3041, %v3153
        %3155 = vmatmul.f32.gmra.mxu0 %v2836
        %v3156 = vpop.f32.mrf.mxu0
        %v3157 = vadd.f32 %v3044, %v3156
        %3158 = vmatmul.f32.gmra.mxu0 %v2837
        %v3159 = vpop.f32.mrf.mxu0
        %v3160 = vadd.f32 %v3047, %v3159
        %3161 = vmatmul.f32.gmra.mxu0 %v2838
        %v3162 = vpop.f32.mrf.mxu0
        %v3163 = vadd.f32 %v3050, %v3162
        %3164 = vmatmul.f32.gmra.mxu0 %v2839
        %v3165 = vpop.f32.mrf.mxu0
        %v3166 = vadd.f32 %v3053, %v3165
        %3167 = vmatmul.f32.gmra.mxu0 %v2840
        %v3168 = vpop.f32.mrf.mxu0
        %v3169 = vadd.f32 %v3056, %v3168
        %3170 = vmatmul.f32.gmra.mxu0 %v2841
        %v3171 = vpop.f32.mrf.mxu0
        %v3172 = vadd.f32 %v3059, %v3171
        %3173 = vmatmul.f32.gmra.mxu0 %v2842
        %v3174 = vpop.f32.mrf.mxu0
        %v3175 = vadd.f32 %v3062, %v3174
        %3176 = vmatmul.f32.gmra.mxu0 %v2843
        %v3177 = vpop.f32.mrf.mxu0
        %v3178 = vadd.f32 %v3065, %v3177
        %3179 = vmatmul.f32.gmra.mxu0 %v2844
        %v3180 = vpop.f32.mrf.mxu0
        %v3181 = vadd.f32 %v3068, %v3180
        %3182 = vmatmul.f32.gmra.mxu0 %v2845
        %v3183 = vpop.f32.mrf.mxu0
        %v3184 = vadd.f32 %v3071, %v3183
        %3185 = vmatmul.f32.gmra.mxu0 %v2846
        %v3186 = vpop.f32.mrf.mxu0
        %v3187 = vadd.f32 %v3074, %v3186
        %3188 = vmatmul.f32.gmra.mxu0 %v2847
        %v3189 = vpop.f32.mrf.mxu0
        %v3190 = vadd.f32 %v3077, %v3189
        %3191 = vmatmul.f32.gmra.mxu0 %v2848
        %v3192 = vpop.f32.mrf.mxu0
        %v3193 = vadd.f32 %v3080, %v3192
        %3194 = vmatmul.f32.gmra.mxu0 %v2849
        %v3195 = vpop.f32.mrf.mxu0
        %v3196 = vadd.f32 %v3083, %v3195
        %3197 = vmatmul.f32.gmra.mxu0 %v2850
        %v3198 = vpop.f32.mrf.mxu0
        %v3199 = vadd.f32 %v3086, %v3198
        %3200 = vmatmul.f32.gmra.mxu0 %v2851
        %v3201 = vpop.f32.mrf.mxu0
        %v3202 = vadd.f32 %v3089, %v3201
        %3203 = vmatmul.f32.gmra.mxu0 %v2852
        %v3204 = vpop.f32.mrf.mxu0
        %v3205 = vadd.f32 %v3092, %v3204
        %3206 = vmatmul.f32.gmra.mxu0 %v2853
        %v3207 = vpop.f32.mrf.mxu0
        %v3208 = vadd.f32 %v3095, %v3207
        %3209 = vmatmul.f32.gmra.mxu0 %v2854
        %v3210 = vpop.f32.mrf.mxu0
        %v3211 = vadd.f32 %v3098, %v3210
        %3212 = vmatmul.f32.gmra.mxu0 %v2855
        %v3213 = vpop.f32.mrf.mxu0
        %v3214 = vadd.f32 %v3101, %v3213
        %3215 = vdwg.mxu0
        %3216 = vmatpush.msra.mxu0 %v2951
        %3217 = vmatpush.msra.mxu0 %v2949
        %3218 = vmatpush.msra.mxu0 %v2947
        %3219 = vmatpush.msra.mxu0 %v2945
        %3220 = vmatpush.msra.mxu0 %v2943
        %3221 = vmatpush.msra.mxu0 %v2941
        %3222 = vmatpush.msra.mxu0 %v2939
        %3223 = vmatpush.msra.mxu0 %v2937
        %3224 = vmatpush.msra.mxu0 %v2935
        %3225 = vmatpush.msra.mxu0 %v2933
        %3226 = vmatpush.msra.mxu0 %v2931
        %3227 = vmatpush.msra.mxu0 %v2929
        %3228 = vmatpush.msra.mxu0 %v2927
        %3229 = vmatpush.msra.mxu0 %v2925
        %3230 = vmatpush.msra.mxu0 %v2923
        %3231 = vmatpush.msra.mxu0 %v2921
        %3232 = vmatmul.f32.gmra.mxu0 %v2374
        %v3233 = vpop.f32.mrf.mxu0
        %v3234 = vadd.f32 %v2987, %v3233
        %3235 = vmatmul.f32.gmra.mxu0 %v2375
        %v3236 = vpop.f32.mrf.mxu0
        %v3237 = vadd.f32 %v2987, %v3236
        %3238 = vmatmul.f32.gmra.mxu0 %v2376
        %v3239 = vpop.f32.mrf.mxu0
        %v3240 = vadd.f32 %v2987, %v3239
        %3241 = vmatmul.f32.gmra.mxu0 %v2377
        %v3242 = vpop.f32.mrf.mxu0
        %v3243 = vadd.f32 %v2987, %v3242
        %3244 = vmatmul.f32.gmra.mxu0 %v2378
        %v3245 = vpop.f32.mrf.mxu0
        %v3246 = vadd.f32 %v2987, %v3245
        %3247 = vmatmul.f32.gmra.mxu0 %v2379
        %v3248 = vpop.f32.mrf.mxu0
        %v3249 = vadd.f32 %v2987, %v3248
        %3250 = vmatmul.f32.gmra.mxu0 %v2380
        %v3251 = vpop.f32.mrf.mxu0
        %v3252 = vadd.f32 %v2987, %v3251
        %3253 = vmatmul.f32.gmra.mxu0 %v2381
        %v3254 = vpop.f32.mrf.mxu0
        %v3255 = vadd.f32 %v2987, %v3254
        %3256 = vmatmul.f32.gmra.mxu0 %v2382
        %v3257 = vpop.f32.mrf.mxu0
        %v3258 = vadd.f32 %v2987, %v3257
        %3259 = vmatmul.f32.gmra.mxu0 %v2383
        %v3260 = vpop.f32.mrf.mxu0
        %v3261 = vadd.f32 %v2987, %v3260
        %3262 = vmatmul.f32.gmra.mxu0 %v2384
        %v3263 = vpop.f32.mrf.mxu0
        %v3264 = vadd.f32 %v2987, %v3263
        %3265 = vmatmul.f32.gmra.mxu0 %v2385
        %v3266 = vpop.f32.mrf.mxu0
        %v3267 = vadd.f32 %v2987, %v3266
        %3268 = vmatmul.f32.gmra.mxu0 %v2386
        %v3269 = vpop.f32.mrf.mxu0
        %v3270 = vadd.f32 %v2987, %v3269
        %3271 = vmatmul.f32.gmra.mxu0 %v2387
        %v3272 = vpop.f32.mrf.mxu0
        %v3273 = vadd.f32 %v2987, %v3272
        %3274 = vmatmul.f32.gmra.mxu0 %v2388
        %v3275 = vpop.f32.mrf.mxu0
        %v3276 = vadd.f32 %v2987, %v3275
        %3277 = vmatmul.f32.gmra.mxu0 %v2389
        %v3278 = vpop.f32.mrf.mxu0
        %v3279 = vadd.f32 %v2987, %v3278
        %3280 = vmatmul.f32.gmra.mxu0 %v2390
        %v3281 = vpop.f32.mrf.mxu0
        %v3282 = vadd.f32 %v2987, %v3281
        %3283 = vmatmul.f32.gmra.mxu0 %v2391
        %v3284 = vpop.f32.mrf.mxu0
        %v3285 = vadd.f32 %v2987, %v3284
        %3286 = vmatmul.f32.gmra.mxu0 %v2392
        %v3287 = vpop.f32.mrf.mxu0
        %v3288 = vadd.f32 %v2987, %v3287
        %3289 = vmatmul.f32.gmra.mxu0 %v2393
        %v3290 = vpop.f32.mrf.mxu0
        %v3291 = vadd.f32 %v2987, %v3290
        %3292 = vmatmul.f32.gmra.mxu0 %v2394
        %v3293 = vpop.f32.mrf.mxu0
        %v3294 = vadd.f32 %v2987, %v3293
        %3295 = vmatmul.f32.gmra.mxu0 %v2395
        %v3296 = vpop.f32.mrf.mxu0
        %v3297 = vadd.f32 %v2987, %v3296
        %3298 = vmatmul.f32.gmra.mxu0 %v2396
        %v3299 = vpop.f32.mrf.mxu0
        %v3300 = vadd.f32 %v2987, %v3299
        %3301 = vmatmul.f32.gmra.mxu0 %v2397
        %v3302 = vpop.f32.mrf.mxu0
        %v3303 = vadd.f32 %v2987, %v3302
        %3304 = vmatmul.f32.gmra.mxu0 %v2398
        %v3305 = vpop.f32.mrf.mxu0
        %v3306 = vadd.f32 %v2987, %v3305
        %3307 = vmatmul.f32.gmra.mxu0 %v2399
        %v3308 = vpop.f32.mrf.mxu0
        %v3309 = vadd.f32 %v2987, %v3308
        %3310 = vmatmul.f32.gmra.mxu0 %v2400
        %v3311 = vpop.f32.mrf.mxu0
        %v3312 = vadd.f32 %v2987, %v3311
        %3313 = vmatmul.f32.gmra.mxu0 %v2401
        %v3314 = vpop.f32.mrf.mxu0
        %v3315 = vadd.f32 %v2987, %v3314
        %3316 = vmatmul.f32.gmra.mxu0 %v2402
        %v3317 = vpop.f32.mrf.mxu0
        %v3318 = vadd.f32 %v2987, %v3317
        %3319 = vmatmul.f32.gmra.mxu0 %v2403
        %v3320 = vpop.f32.mrf.mxu0
        %v3321 = vadd.f32 %v2987, %v3320
        %3322 = vmatmul.f32.gmra.mxu0 %v2404
        %v3323 = vpop.f32.mrf.mxu0
        %v3324 = vadd.f32 %v2987, %v3323
        %3325 = vmatmul.f32.gmra.mxu0 %v2405
        %v3326 = vpop.f32.mrf.mxu0
        %v3327 = vadd.f32 %v2987, %v3326
        %3328 = vdwg.mxu0
        %3329 = vmatpush.msra.mxu0 %v2983
        %3330 = vmatpush.msra.mxu0 %v2981
        %3331 = vmatpush.msra.mxu0 %v2979
        %3332 = vmatpush.msra.mxu0 %v2977
        %3333 = vmatpush.msra.mxu0 %v2975
        %3334 = vmatpush.msra.mxu0 %v2973
        %3335 = vmatpush.msra.mxu0 %v2971
        %3336 = vmatpush.msra.mxu0 %v2969
        %3337 = vmatpush.msra.mxu0 %v2967
        %3338 = vmatpush.msra.mxu0 %v2965
        %3339 = vmatpush.msra.mxu0 %v2963
        %3340 = vmatpush.msra.mxu0 %v2961
        %3341 = vmatpush.msra.mxu0 %v2959
        %3342 = vmatpush.msra.mxu0 %v2957
        %3343 = vmatpush.msra.mxu0 %v2955
        %3344 = vmatpush.msra.mxu0 %v2953
        %3345 = vmatmul.f32.gmra.mxu0 %v2824
        %v3346 = vpop.f32.mrf.mxu0
        %v3347 = vadd.f32 %v3234, %v3346
        %3348 = vmatmul.f32.gmra.mxu0 %v2825
        %v3349 = vpop.f32.mrf.mxu0
        %v3350 = vadd.f32 %v3237, %v3349
        %3351 = vmatmul.f32.gmra.mxu0 %v2826
        %v3352 = vpop.f32.mrf.mxu0
        %v3353 = vadd.f32 %v3240, %v3352
        %3354 = vmatmul.f32.gmra.mxu0 %v2827
        %v3355 = vpop.f32.mrf.mxu0
        %v3356 = vadd.f32 %v3243, %v3355
        %3357 = vmatmul.f32.gmra.mxu0 %v2828
        %v3358 = vpop.f32.mrf.mxu0
        %v3359 = vadd.f32 %v3246, %v3358
        %3360 = vmatmul.f32.gmra.mxu0 %v2829
        %v3361 = vpop.f32.mrf.mxu0
        %v3362 = vadd.f32 %v3249, %v3361
        %3363 = vmatmul.f32.gmra.mxu0 %v2830
        %v3364 = vpop.f32.mrf.mxu0
        %v3365 = vadd.f32 %v3252, %v3364
        %3366 = vmatmul.f32.gmra.mxu0 %v2831
        %v3367 = vpop.f32.mrf.mxu0
        %v3368 = vadd.f32 %v3255, %v3367
        %3369 = vmatmul.f32.gmra.mxu0 %v2832
        %v3370 = vpop.f32.mrf.mxu0
        %v3371 = vadd.f32 %v3258, %v3370
        %3372 = vmatmul.f32.gmra.mxu0 %v2833
        %v3373 = vpop.f32.mrf.mxu0
        %v3374 = vadd.f32 %v3261, %v3373
        %3375 = vmatmul.f32.gmra.mxu0 %v2834
        %v3376 = vpop.f32.mrf.mxu0
        %v3377 = vadd.f32 %v3264, %v3376
        %3378 = vmatmul.f32.gmra.mxu0 %v2835
        %v3379 = vpop.f32.mrf.mxu0
        %v3380 = vadd.f32 %v3267, %v3379
        %3381 = vmatmul.f32.gmra.mxu0 %v2836
        %v3382 = vpop.f32.mrf.mxu0
        %v3383 = vadd.f32 %v3270, %v3382
        %3384 = vmatmul.f32.gmra.mxu0 %v2837
        %v3385 = vpop.f32.mrf.mxu0
        %v3386 = vadd.f32 %v3273, %v3385
        %3387 = vmatmul.f32.gmra.mxu0 %v2838
        %v3388 = vpop.f32.mrf.mxu0
        %v3389 = vadd.f32 %v3276, %v3388
        %3390 = vmatmul.f32.gmra.mxu0 %v2839
        %v3391 = vpop.f32.mrf.mxu0
        %v3392 = vadd.f32 %v3279, %v3391
        %3393 = vmatmul.f32.gmra.mxu0 %v2840
        %v3394 = vpop.f32.mrf.mxu0
        %v3395 = vadd.f32 %v3282, %v3394
        %3396 = vmatmul.f32.gmra.mxu0 %v2841
        %v3397 = vpop.f32.mrf.mxu0
        %v3398 = vadd.f32 %v3285, %v3397
        %3399 = vmatmul.f32.gmra.mxu0 %v2842
        %v3400 = vpop.f32.mrf.mxu0
        %v3401 = vadd.f32 %v3288, %v3400
        %3402 = vmatmul.f32.gmra.mxu0 %v2843
        %v3403 = vpop.f32.mrf.mxu0
        %v3404 = vadd.f32 %v3291, %v3403
        %3405 = vmatmul.f32.gmra.mxu0 %v2844
        %v3406 = vpop.f32.mrf.mxu0
        %v3407 = vadd.f32 %v3294, %v3406
        %3408 = vmatmul.f32.gmra.mxu0 %v2845
        %v3409 = vpop.f32.mrf.mxu0
        %v3410 = vadd.f32 %v3297, %v3409
        %3411 = vmatmul.f32.gmra.mxu0 %v2846
        %v3412 = vpop.f32.mrf.mxu0
        %v3413 = vadd.f32 %v3300, %v3412
        %3414 = vmatmul.f32.gmra.mxu0 %v2847
        %v3415 = vpop.f32.mrf.mxu0
        %v3416 = vadd.f32 %v3303, %v3415
        %3417 = vmatmul.f32.gmra.mxu0 %v2848
        %v3418 = vpop.f32.mrf.mxu0
        %v3419 = vadd.f32 %v3306, %v3418
        %3420 = vmatmul.f32.gmra.mxu0 %v2849
        %v3421 = vpop.f32.mrf.mxu0
        %v3422 = vadd.f32 %v3309, %v3421
        %3423 = vmatmul.f32.gmra.mxu0 %v2850
        %v3424 = vpop.f32.mrf.mxu0
        %v3425 = vadd.f32 %v3312, %v3424
        %3426 = vmatmul.f32.gmra.mxu0 %v2851
        %v3427 = vpop.f32.mrf.mxu0
        %v3428 = vadd.f32 %v3315, %v3427
        %3429 = vmatmul.f32.gmra.mxu0 %v2852
        %v3430 = vpop.f32.mrf.mxu0
        %v3431 = vadd.f32 %v3318, %v3430
        %3432 = vmatmul.f32.gmra.mxu0 %v2853
        %v3433 = vpop.f32.mrf.mxu0
        %v3434 = vadd.f32 %v3321, %v3433
        %3435 = vmatmul.f32.gmra.mxu0 %v2854
        %v3436 = vpop.f32.mrf.mxu0
        %v3437 = vadd.f32 %v3324, %v3436
        %3438 = vmatmul.f32.gmra.mxu0 %v2855
        %v3439 = vpop.f32.mrf.mxu0
        %v3440 = vadd.f32 %v3327, %v3439
        %3441 = vdwg.mxu0
        %vm3442 = vcmp.ge.f32.partialorder %v3121, 0.0
        %vm3443 = vcmp.ge.f32.partialorder %v3347, 0.0
        %vm3444 = vcmp.ge.f32.partialorder %v3124, 0.0
        %vm3445 = vcmp.ge.f32.partialorder %v3350, 0.0
        %vm3446 = vcmp.ge.f32.partialorder %v3127, 0.0
        %vm3447 = vcmp.ge.f32.partialorder %v3353, 0.0
        %vm3448 = vcmp.ge.f32.partialorder %v3130, 0.0
        %vm3449 = vcmp.ge.f32.partialorder %v3356, 0.0
        %vm3450 = vcmp.ge.f32.partialorder %v3133, 0.0
        %vm3451 = vcmp.ge.f32.partialorder %v3359, 0.0
        %vm3452 = vcmp.ge.f32.partialorder %v3136, 0.0
        %vm3453 = vcmp.ge.f32.partialorder %v3362, 0.0
        %vm3454 = vcmp.ge.f32.partialorder %v3139, 0.0
        %vm3455 = vcmp.ge.f32.partialorder %v3365, 0.0
        %vm3456 = vcmp.ge.f32.partialorder %v3142, 0.0
        %vm3457 = vcmp.ge.f32.partialorder %v3368, 0.0
        %vm3458 = vcmp.ge.f32.partialorder %v3145, 0.0
        %vm3459 = vcmp.ge.f32.partialorder %v3371, 0.0
        %vm3460 = vcmp.ge.f32.partialorder %v3148, 0.0
        %vm3461 = vcmp.ge.f32.partialorder %v3374, 0.0
        %vm3462 = vcmp.ge.f32.partialorder %v3151, 0.0
        %vm3463 = vcmp.ge.f32.partialorder %v3377, 0.0
        %vm3464 = vcmp.ge.f32.partialorder %v3154, 0.0
        %vm3465 = vcmp.ge.f32.partialorder %v3380, 0.0
        %vm3466 = vcmp.ge.f32.partialorder %v3157, 0.0
        %vm3467 = vcmp.ge.f32.partialorder %v3383, 0.0
        %vm3468 = vcmp.ge.f32.partialorder %v3160, 0.0
        %vm3469 = vcmp.ge.f32.partialorder %v3386, 0.0
        %vm3470 = vcmp.ge.f32.partialorder %v3163, 0.0
        %vm3471 = vcmp.ge.f32.partialorder %v3389, 0.0
        %vm3472 = vcmp.ge.f32.partialorder %v3166, 0.0
        %vm3473 = vcmp.ge.f32.partialorder %v3392, 0.0
        %vm3474 = vcmp.ge.f32.partialorder %v3169, 0.0
        %vm3475 = vcmp.ge.f32.partialorder %v3395, 0.0
        %vm3476 = vcmp.ge.f32.partialorder %v3172, 0.0
        %vm3477 = vcmp.ge.f32.partialorder %v3398, 0.0
        %vm3478 = vcmp.ge.f32.partialorder %v3175, 0.0
        %vm3479 = vcmp.ge.f32.partialorder %v3401, 0.0
        %vm3480 = vcmp.ge.f32.partialorder %v3178, 0.0
        %vm3481 = vcmp.ge.f32.partialorder %v3404, 0.0
        %vm3482 = vcmp.ge.f32.partialorder %v3181, 0.0
        %vm3483 = vcmp.ge.f32.partialorder %v3407, 0.0
        %vm3484 = vcmp.ge.f32.partialorder %v3184, 0.0
        %vm3485 = vcmp.ge.f32.partialorder %v3410, 0.0
        %vm3486 = vcmp.ge.f32.partialorder %v3187, 0.0
        %vm3487 = vcmp.ge.f32.partialorder %v3413, 0.0
        %vm3488 = vcmp.ge.f32.partialorder %v3190, 0.0
        %vm3489 = vcmp.ge.f32.partialorder %v3416, 0.0
        %vm3490 = vcmp.ge.f32.partialorder %v3193, 0.0
        %vm3491 = vcmp.ge.f32.partialorder %v3419, 0.0
        %vm3492 = vcmp.ge.f32.partialorder %v3196, 0.0
        %vm3493 = vcmp.ge.f32.partialorder %v3422, 0.0
        %vm3494 = vcmp.ge.f32.partialorder %v3199, 0.0
        %vm3495 = vcmp.ge.f32.partialorder %v3425, 0.0
        %vm3496 = vcmp.ge.f32.partialorder %v3202, 0.0
        %vm3497 = vcmp.ge.f32.partialorder %v3428, 0.0
        %vm3498 = vcmp.ge.f32.partialorder %v3205, 0.0
        %vm3499 = vcmp.ge.f32.partialorder %v3431, 0.0
        %vm3500 = vcmp.ge.f32.partialorder %v3208, 0.0
        %vm3501 = vcmp.ge.f32.partialorder %v3434, 0.0
        %vm3502 = vcmp.ge.f32.partialorder %v3211, 0.0
        %vm3503 = vcmp.ge.f32.partialorder %v3437, 0.0
        %vm3504 = vcmp.ge.f32.partialorder %v3214, 0.0
        %vm3505 = vcmp.ge.f32.partialorder %v3440, 0.0
        %v3506 = vmul.f32 %v3121, 0.2
        %v3507 = vmul.f32 %v3347, 0.2
        %v3508 = vmul.f32 %v3124, 0.2
        %v3509 = vmul.f32 %v3350, 0.2
        %v3510 = vmul.f32 %v3127, 0.2
        %v3511 = vmul.f32 %v3353, 0.2
        %v3512 = vmul.f32 %v3130, 0.2
        %v3513 = vmul.f32 %v3356, 0.2
        %v3514 = vmul.f32 %v3133, 0.2
        %v3515 = vmul.f32 %v3359, 0.2
        %v3516 = vmul.f32 %v3136, 0.2
        %v3517 = vmul.f32 %v3362, 0.2
        %v3518 = vmul.f32 %v3139, 0.2
        %v3519 = vmul.f32 %v3365, 0.2
        %v3520 = vmul.f32 %v3142, 0.2
        %v3521 = vmul.f32 %v3368, 0.2
        %v3522 = vmul.f32 %v3145, 0.2
        %v3523 = vmul.f32 %v3371, 0.2
        %v3524 = vmul.f32 %v3148, 0.2
        %v3525 = vmul.f32 %v3374, 0.2
        %v3526 = vmul.f32 %v3151, 0.2
        %v3527 = vmul.f32 %v3377, 0.2
        %v3528 = vmul.f32 %v3154, 0.2
        %v3529 = vmul.f32 %v3380, 0.2
        %v3530 = vmul.f32 %v3157, 0.2
        %v3531 = vmul.f32 %v3383, 0.2
        %v3532 = vmul.f32 %v3160, 0.2
        %v3533 = vmul.f32 %v3386, 0.2
        %v3534 = vmul.f32 %v3163, 0.2
        %v3535 = vmul.f32 %v3389, 0.2
        %v3536 = vmul.f32 %v3166, 0.2
        %v3537 = vmul.f32 %v3392, 0.2
        %v3538 = vmul.f32 %v3169, 0.2
        %v3539 = vmul.f32 %v3395, 0.2
        %v3540 = vmul.f32 %v3172, 0.2
        %v3541 = vmul.f32 %v3398, 0.2
        %v3542 = vmul.f32 %v3175, 0.2
        %v3543 = vmul.f32 %v3401, 0.2
        %v3544 = vmul.f32 %v3178, 0.2
        %v3545 = vmul.f32 %v3404, 0.2
        %v3546 = vmul.f32 %v3181, 0.2
        %v3547 = vmul.f32 %v3407, 0.2
        %v3548 = vmul.f32 %v3184, 0.2
        %v3549 = vmul.f32 %v3410, 0.2
        %v3550 = vmul.f32 %v3187, 0.2
        %v3551 = vmul.f32 %v3413, 0.2
        %v3552 = vmul.f32 %v3190, 0.2
        %v3553 = vmul.f32 %v3416, 0.2
        %v3554 = vmul.f32 %v3193, 0.2
        %v3555 = vmul.f32 %v3419, 0.2
        %v3556 = vmul.f32 %v3196, 0.2
        %v3557 = vmul.f32 %v3422, 0.2
        %v3558 = vmul.f32 %v3199, 0.2
        %v3559 = vmul.f32 %v3425, 0.2
        %v3560 = vmul.f32 %v3202, 0.2
        %v3561 = vmul.f32 %v3428, 0.2
        %v3562 = vmul.f32 %v3205, 0.2
        %v3563 = vmul.f32 %v3431, 0.2
        %v3564 = vmul.f32 %v3208, 0.2
        %v3565 = vmul.f32 %v3434, 0.2
        %v3566 = vmul.f32 %v3211, 0.2
        %v3567 = vmul.f32 %v3437, 0.2
        %v3568 = vmul.f32 %v3214, 0.2
        %v3569 = vmul.f32 %v3440, 0.2
        %v3570 = vsel %vm3442, %v3121, %v3506
        %v3571 = vsel %vm3443, %v3347, %v3507
        %v3572 = vsel %vm3444, %v3124, %v3508
        %v3573 = vsel %vm3445, %v3350, %v3509
        %v3574 = vsel %vm3446, %v3127, %v3510
        %v3575 = vsel %vm3447, %v3353, %v3511
        %v3576 = vsel %vm3448, %v3130, %v3512
        %v3577 = vsel %vm3449, %v3356, %v3513
        %v3578 = vsel %vm3450, %v3133, %v3514
        %v3579 = vsel %vm3451, %v3359, %v3515
        %v3580 = vsel %vm3452, %v3136, %v3516
        %v3581 = vsel %vm3453, %v3362, %v3517
        %v3582 = vsel %vm3454, %v3139, %v3518
        %v3583 = vsel %vm3455, %v3365, %v3519
        %v3584 = vsel %vm3456, %v3142, %v3520
        %v3585 = vsel %vm3457, %v3368, %v3521
        %v3586 = vsel %vm3458, %v3145, %v3522
        %v3587 = vsel %vm3459, %v3371, %v3523
        %v3588 = vsel %vm3460, %v3148, %v3524
        %v3589 = vsel %vm3461, %v3374, %v3525
        %v3590 = vsel %vm3462, %v3151, %v3526
        %v3591 = vsel %vm3463, %v3377, %v3527
        %v3592 = vsel %vm3464, %v3154, %v3528
        %v3593 = vsel %vm3465, %v3380, %v3529
        %v3594 = vsel %vm3466, %v3157, %v3530
        %v3595 = vsel %vm3467, %v3383, %v3531
        %v3596 = vsel %vm3468, %v3160, %v3532
        %v3597 = vsel %vm3469, %v3386, %v3533
        %v3598 = vsel %vm3470, %v3163, %v3534
        %v3599 = vsel %vm3471, %v3389, %v3535
        %v3600 = vsel %vm3472, %v3166, %v3536
        %v3601 = vsel %vm3473, %v3392, %v3537
        %v3602 = vsel %vm3474, %v3169, %v3538
        %v3603 = vsel %vm3475, %v3395, %v3539
        %v3604 = vsel %vm3476, %v3172, %v3540
        %v3605 = vsel %vm3477, %v3398, %v3541
        %v3606 = vsel %vm3478, %v3175, %v3542
        %v3607 = vsel %vm3479, %v3401, %v3543
        %v3608 = vsel %vm3480, %v3178, %v3544
        %v3609 = vsel %vm3481, %v3404, %v3545
        %v3610 = vsel %vm3482, %v3181, %v3546
        %v3611 = vsel %vm3483, %v3407, %v3547
        %v3612 = vsel %vm3484, %v3184, %v3548
        %v3613 = vsel %vm3485, %v3410, %v3549
        %v3614 = vsel %vm3486, %v3187, %v3550
        %v3615 = vsel %vm3487, %v3413, %v3551
        %v3616 = vsel %vm3488, %v3190, %v3552
        %v3617 = vsel %vm3489, %v3416, %v3553
        %v3618 = vsel %vm3490, %v3193, %v3554
        %v3619 = vsel %vm3491, %v3419, %v3555
        %v3620 = vsel %vm3492, %v3196, %v3556
        %v3621 = vsel %vm3493, %v3422, %v3557
        %v3622 = vsel %vm3494, %v3199, %v3558
        %v3623 = vsel %vm3495, %v3425, %v3559
        %v3624 = vsel %vm3496, %v3202, %v3560
        %v3625 = vsel %vm3497, %v3428, %v3561
        %v3626 = vsel %vm3498, %v3205, %v3562
        %v3627 = vsel %vm3499, %v3431, %v3563
        %v3628 = vsel %vm3500, %v3208, %v3564
        %v3629 = vsel %vm3501, %v3434, %v3565
        %v3630 = vsel %vm3502, %v3211, %v3566
        %v3631 = vsel %vm3503, %v3437, %v3567
        %v3632 = vsel %vm3504, %v3214, %v3568
        %v3633 = vsel %vm3505, %v3440, %v3569
        %v3634 = vld [vmem:[%s10] sm:$0xff]
        %v3635 = vld [vmem:[%s10 + $0x8] sm:$0xff]
        %v3636 = vld [vmem:[%s10 + $0x10] sm:$0xff]
        %v3637 = vld [vmem:[%s10 + $0x18] sm:$0xff]
        %v3638 = vld [vmem:[%s10 + $0x20] sm:$0xff]
        %v3639 = vld [vmem:[%s10 + $0x28] sm:$0xff]
        %v3640 = vld [vmem:[%s10 + $0x30] sm:$0xff]
        %v3641 = vld [vmem:[%s10 + $0x38] sm:$0xff]
        %v3642 = vld [vmem:[%s10 + $0x40] sm:$0xff]
        %v3643 = vld [vmem:[%s10 + $0x48] sm:$0xff]
        %v3644 = vld [vmem:[%s10 + $0x50] sm:$0xff]
        %v3645 = vld [vmem:[%s10 + $0x58] sm:$0xff]
        %v3646 = vld [vmem:[%s10 + $0x60] sm:$0xff]
        %v3647 = vld [vmem:[%s10 + $0x68] sm:$0xff]
        %v3648 = vld [vmem:[%s10 + $0x70] sm:$0xff]
        %v3649 = vld [vmem:[%s10 + $0x78] sm:$0xff]
        %v3650 = vld [vmem:[%s10 + $0x80] sm:$0xff]
        %v3651 = vld [vmem:[%s10 + $0x88] sm:$0xff]
        %v3652 = vld [vmem:[%s10 + $0x90] sm:$0xff]
        %v3653 = vld [vmem:[%s10 + $0x98] sm:$0xff]
        %v3654 = vld [vmem:[%s10 + $0xa0] sm:$0xff]
        %v3655 = vld [vmem:[%s10 + $0xa8] sm:$0xff]
        %v3656 = vld [vmem:[%s10 + $0xb0] sm:$0xff]
        %v3657 = vld [vmem:[%s10 + $0xb8] sm:$0xff]
        %v3658 = vld [vmem:[%s10 + $0xc0] sm:$0xff]
        %v3659 = vld [vmem:[%s10 + $0xc8] sm:$0xff]
        %v3660 = vld [vmem:[%s10 + $0xd0] sm:$0xff]
        %v3661 = vld [vmem:[%s10 + $0xd8] sm:$0xff]
        %v3662 = vld [vmem:[%s10 + $0xe0] sm:$0xff]
        %v3663 = vld [vmem:[%s10 + $0xe8] sm:$0xff]
        %v3664 = vld [vmem:[%s10 + $0xf0] sm:$0xff]
        %v3665 = vld [vmem:[%s10 + $0xf8] sm:$0xff]
        %v3666 = vld [vmem:[%s10 + $0x100] sm:$0xff]
        %v3667 = vld [vmem:[%s10 + $0x108] sm:$0xff]
        %v3668 = vld [vmem:[%s10 + $0x110] sm:$0xff]
        %v3669 = vld [vmem:[%s10 + $0x118] sm:$0xff]
        %v3670 = vld [vmem:[%s10 + $0x120] sm:$0xff]
        %v3671 = vld [vmem:[%s10 + $0x128] sm:$0xff]
        %v3672 = vld [vmem:[%s10 + $0x130] sm:$0xff]
        %v3673 = vld [vmem:[%s10 + $0x138] sm:$0xff]
        %v3674 = vld [vmem:[%s10 + $0x140] sm:$0xff]
        %v3675 = vld [vmem:[%s10 + $0x148] sm:$0xff]
        %v3676 = vld [vmem:[%s10 + $0x150] sm:$0xff]
        %v3677 = vld [vmem:[%s10 + $0x158] sm:$0xff]
        %v3678 = vld [vmem:[%s10 + $0x160] sm:$0xff]
        %v3679 = vld [vmem:[%s10 + $0x168] sm:$0xff]
        %v3680 = vld [vmem:[%s10 + $0x170] sm:$0xff]
        %v3681 = vld [vmem:[%s10 + $0x178] sm:$0xff]
        %v3682 = vld [vmem:[%s10 + $0x180] sm:$0xff]
        %v3683 = vld [vmem:[%s10 + $0x188] sm:$0xff]
        %v3684 = vld [vmem:[%s10 + $0x190] sm:$0xff]
        %v3685 = vld [vmem:[%s10 + $0x198] sm:$0xff]
        %v3686 = vld [vmem:[%s10 + $0x1a0] sm:$0xff]
        %v3687 = vld [vmem:[%s10 + $0x1a8] sm:$0xff]
        %v3688 = vld [vmem:[%s10 + $0x1b0] sm:$0xff]
        %v3689 = vld [vmem:[%s10 + $0x1b8] sm:$0xff]
        %v3690 = vld [vmem:[%s10 + $0x1c0] sm:$0xff]
        %v3691 = vld [vmem:[%s10 + $0x1c8] sm:$0xff]
        %v3692 = vld [vmem:[%s10 + $0x1d0] sm:$0xff]
        %v3693 = vld [vmem:[%s10 + $0x1d8] sm:$0xff]
        %v3694 = vld [vmem:[%s10 + $0x1e0] sm:$0xff]
        %v3695 = vld [vmem:[%s10 + $0x1e8] sm:$0xff]
        %v3696 = vld [vmem:[%s10 + $0x1f0] sm:$0xff]
        %v3697 = vld [vmem:[%s10 + $0x1f8] sm:$0xff]
        %v3698 = vld [vmem:[#allocation13] sm:$0x3]
        %v3700 = vperm.slane %v3698, 0
        %v3701 = vperm.slane %v3698, 1
        %3704 = vmatpush.msra.mxu0 %v3664
        %3705 = vmatpush.msra.mxu0 %v3662
        %3706 = vmatpush.msra.mxu0 %v3660
        %3707 = vmatpush.msra.mxu0 %v3658
        %3708 = vmatpush.msra.mxu0 %v3656
        %3709 = vmatpush.msra.mxu0 %v3654
        %3710 = vmatpush.msra.mxu0 %v3652
        %3711 = vmatpush.msra.mxu0 %v3650
        %3712 = vmatpush.msra.mxu0 %v3648
        %3713 = vmatpush.msra.mxu0 %v3646
        %3714 = vmatpush.msra.mxu0 %v3644
        %3715 = vmatpush.msra.mxu0 %v3642
        %3716 = vmatpush.msra.mxu0 %v3640
        %3717 = vmatpush.msra.mxu0 %v3638
        %3718 = vmatpush.msra.mxu0 %v3636
        %3719 = vmatpush.msra.mxu0 %v3634
        %3720 = vmatmul.f32.gmra.mxu0 %v3570
        %v3721 = vpop.f32.mrf.mxu0
        %v3722 = vadd.f32 %v3700, %v3721
        %3723 = vmatmul.f32.gmra.mxu0 %v3572
        %v3724 = vpop.f32.mrf.mxu0
        %v3725 = vadd.f32 %v3700, %v3724
        %3726 = vmatmul.f32.gmra.mxu0 %v3574
        %v3727 = vpop.f32.mrf.mxu0
        %v3728 = vadd.f32 %v3700, %v3727
        %3729 = vmatmul.f32.gmra.mxu0 %v3576
        %v3730 = vpop.f32.mrf.mxu0
        %v3731 = vadd.f32 %v3700, %v3730
        %3732 = vmatmul.f32.gmra.mxu0 %v3578
        %v3733 = vpop.f32.mrf.mxu0
        %v3734 = vadd.f32 %v3700, %v3733
        %3735 = vmatmul.f32.gmra.mxu0 %v3580
        %v3736 = vpop.f32.mrf.mxu0
        %v3737 = vadd.f32 %v3700, %v3736
        %3738 = vmatmul.f32.gmra.mxu0 %v3582
        %v3739 = vpop.f32.mrf.mxu0
        %v3740 = vadd.f32 %v3700, %v3739
        %3741 = vmatmul.f32.gmra.mxu0 %v3584
        %v3742 = vpop.f32.mrf.mxu0
        %v3743 = vadd.f32 %v3700, %v3742
        %3744 = vmatmul.f32.gmra.mxu0 %v3586
        %v3745 = vpop.f32.mrf.mxu0
        %v3746 = vadd.f32 %v3700, %v3745
        %3747 = vmatmul.f32.gmra.mxu0 %v3588
        %v3748 = vpop.f32.mrf.mxu0
        %v3749 = vadd.f32 %v3700, %v3748
        %3750 = vmatmul.f32.gmra.mxu0 %v3590
        %v3751 = vpop.f32.mrf.mxu0
        %v3752 = vadd.f32 %v3700, %v3751
        %3753 = vmatmul.f32.gmra.mxu0 %v3592
        %v3754 = vpop.f32.mrf.mxu0
        %v3755 = vadd.f32 %v3700, %v3754
        %3756 = vmatmul.f32.gmra.mxu0 %v3594
        %v3757 = vpop.f32.mrf.mxu0
        %v3758 = vadd.f32 %v3700, %v3757
        %3759 = vmatmul.f32.gmra.mxu0 %v3596
        %v3760 = vpop.f32.mrf.mxu0
        %v3761 = vadd.f32 %v3700, %v3760
        %3762 = vmatmul.f32.gmra.mxu0 %v3598
        %v3763 = vpop.f32.mrf.mxu0
        %v3764 = vadd.f32 %v3700, %v3763
        %3765 = vmatmul.f32.gmra.mxu0 %v3600
        %v3766 = vpop.f32.mrf.mxu0
        %v3767 = vadd.f32 %v3700, %v3766
        %3768 = vmatmul.f32.gmra.mxu0 %v3602
        %v3769 = vpop.f32.mrf.mxu0
        %v3770 = vadd.f32 %v3700, %v3769
        %3771 = vmatmul.f32.gmra.mxu0 %v3604
        %v3772 = vpop.f32.mrf.mxu0
        %v3773 = vadd.f32 %v3700, %v3772
        %3774 = vmatmul.f32.gmra.mxu0 %v3606
        %v3775 = vpop.f32.mrf.mxu0
        %v3776 = vadd.f32 %v3700, %v3775
        %3777 = vmatmul.f32.gmra.mxu0 %v3608
        %v3778 = vpop.f32.mrf.mxu0
        %v3779 = vadd.f32 %v3700, %v3778
        %3780 = vmatmul.f32.gmra.mxu0 %v3610
        %v3781 = vpop.f32.mrf.mxu0
        %v3782 = vadd.f32 %v3700, %v3781
        %3783 = vmatmul.f32.gmra.mxu0 %v3612
        %v3784 = vpop.f32.mrf.mxu0
        %v3785 = vadd.f32 %v3700, %v3784
        %3786 = vmatmul.f32.gmra.mxu0 %v3614
        %v3787 = vpop.f32.mrf.mxu0
        %v3788 = vadd.f32 %v3700, %v3787
        %3789 = vmatmul.f32.gmra.mxu0 %v3616
        %v3790 = vpop.f32.mrf.mxu0
        %v3791 = vadd.f32 %v3700, %v3790
        %3792 = vmatmul.f32.gmra.mxu0 %v3618
        %v3793 = vpop.f32.mrf.mxu0
        %v3794 = vadd.f32 %v3700, %v3793
        %3795 = vmatmul.f32.gmra.mxu0 %v3620
        %v3796 = vpop.f32.mrf.mxu0
        %v3797 = vadd.f32 %v3700, %v3796
        %3798 = vmatmul.f32.gmra.mxu0 %v3622
        %v3799 = vpop.f32.mrf.mxu0
        %v3800 = vadd.f32 %v3700, %v3799
        %3801 = vmatmul.f32.gmra.mxu0 %v3624
        %v3802 = vpop.f32.mrf.mxu0
        %v3803 = vadd.f32 %v3700, %v3802
        %3804 = vmatmul.f32.gmra.mxu0 %v3626
        %v3805 = vpop.f32.mrf.mxu0
        %v3806 = vadd.f32 %v3700, %v3805
        %3807 = vmatmul.f32.gmra.mxu0 %v3628
        %v3808 = vpop.f32.mrf.mxu0
        %v3809 = vadd.f32 %v3700, %v3808
        %3810 = vmatmul.f32.gmra.mxu0 %v3630
        %v3811 = vpop.f32.mrf.mxu0
        %v3812 = vadd.f32 %v3700, %v3811
        %3813 = vmatmul.f32.gmra.mxu0 %v3632
        %v3814 = vpop.f32.mrf.mxu0
        %v3815 = vadd.f32 %v3700, %v3814
        %3816 = vdwg.mxu0
        %3817 = vmatpush.msra.mxu0 %v3696
        %3818 = vmatpush.msra.mxu0 %v3694
        %3819 = vmatpush.msra.mxu0 %v3692
        %3820 = vmatpush.msra.mxu0 %v3690
        %3821 = vmatpush.msra.mxu0 %v3688
        %3822 = vmatpush.msra.mxu0 %v3686
        %3823 = vmatpush.msra.mxu0 %v3684
        %3824 = vmatpush.msra.mxu0 %v3682
        %3825 = vmatpush.msra.mxu0 %v3680
        %3826 = vmatpush.msra.mxu0 %v3678
        %3827 = vmatpush.msra.mxu0 %v3676
        %3828 = vmatpush.msra.mxu0 %v3674
        %3829 = vmatpush.msra.mxu0 %v3672
        %3830 = vmatpush.msra.mxu0 %v3670
        %3831 = vmatpush.msra.mxu0 %v3668
        %3832 = vmatpush.msra.mxu0 %v3666
        %3833 = vmatmul.f32.gmra.mxu0 %v3571
        %v3834 = vpop.f32.mrf.mxu0
        %v3835 = vadd.f32 %v3722, %v3834
        %3836 = vmatmul.f32.gmra.mxu0 %v3573
        %v3837 = vpop.f32.mrf.mxu0
        %v3838 = vadd.f32 %v3725, %v3837
        %3839 = vmatmul.f32.gmra.mxu0 %v3575
        %v3840 = vpop.f32.mrf.mxu0
        %v3841 = vadd.f32 %v3728, %v3840
        %3842 = vmatmul.f32.gmra.mxu0 %v3577
        %v3843 = vpop.f32.mrf.mxu0
        %v3844 = vadd.f32 %v3731, %v3843
        %3845 = vmatmul.f32.gmra.mxu0 %v3579
        %v3846 = vpop.f32.mrf.mxu0
        %v3847 = vadd.f32 %v3734, %v3846
        %3848 = vmatmul.f32.gmra.mxu0 %v3581
        %v3849 = vpop.f32.mrf.mxu0
        %v3850 = vadd.f32 %v3737, %v3849
        %3851 = vmatmul.f32.gmra.mxu0 %v3583
        %v3852 = vpop.f32.mrf.mxu0
        %v3853 = vadd.f32 %v3740, %v3852
        %3854 = vmatmul.f32.gmra.mxu0 %v3585
        %v3855 = vpop.f32.mrf.mxu0
        %v3856 = vadd.f32 %v3743, %v3855
        %3857 = vmatmul.f32.gmra.mxu0 %v3587
        %v3858 = vpop.f32.mrf.mxu0
        %v3859 = vadd.f32 %v3746, %v3858
        %3860 = vmatmul.f32.gmra.mxu0 %v3589
        %v3861 = vpop.f32.mrf.mxu0
        %v3862 = vadd.f32 %v3749, %v3861
        %3863 = vmatmul.f32.gmra.mxu0 %v3591
        %v3864 = vpop.f32.mrf.mxu0
        %v3865 = vadd.f32 %v3752, %v3864
        %3866 = vmatmul.f32.gmra.mxu0 %v3593
        %v3867 = vpop.f32.mrf.mxu0
        %v3868 = vadd.f32 %v3755, %v3867
        %3869 = vmatmul.f32.gmra.mxu0 %v3595
        %v3870 = vpop.f32.mrf.mxu0
        %v3871 = vadd.f32 %v3758, %v3870
        %3872 = vmatmul.f32.gmra.mxu0 %v3597
        %v3873 = vpop.f32.mrf.mxu0
        %v3874 = vadd.f32 %v3761, %v3873
        %3875 = vmatmul.f32.gmra.mxu0 %v3599
        %v3876 = vpop.f32.mrf.mxu0
        %v3877 = vadd.f32 %v3764, %v3876
        %3878 = vmatmul.f32.gmra.mxu0 %v3601
        %v3879 = vpop.f32.mrf.mxu0
        %v3880 = vadd.f32 %v3767, %v3879
        %3881 = vmatmul.f32.gmra.mxu0 %v3603
        %v3882 = vpop.f32.mrf.mxu0
        %v3883 = vadd.f32 %v3770, %v3882
        %3884 = vmatmul.f32.gmra.mxu0 %v3605
        %v3885 = vpop.f32.mrf.mxu0
        %v3886 = vadd.f32 %v3773, %v3885
        %3887 = vmatmul.f32.gmra.mxu0 %v3607
        %v3888 = vpop.f32.mrf.mxu0
        %v3889 = vadd.f32 %v3776, %v3888
        %3890 = vmatmul.f32.gmra.mxu0 %v3609
        %v3891 = vpop.f32.mrf.mxu0
        %v3892 = vadd.f32 %v3779, %v3891
        %3893 = vmatmul.f32.gmra.mxu0 %v3611
        %v3894 = vpop.f32.mrf.mxu0
        %v3895 = vadd.f32 %v3782, %v3894
        %3896 = vmatmul.f32.gmra.mxu0 %v3613
        %v3897 = vpop.f32.mrf.mxu0
        %v3898 = vadd.f32 %v3785, %v3897
        %3899 = vmatmul.f32.gmra.mxu0 %v3615
        %v3900 = vpop.f32.mrf.mxu0
        %v3901 = vadd.f32 %v3788, %v3900
        %3902 = vmatmul.f32.gmra.mxu0 %v3617
        %v3903 = vpop.f32.mrf.mxu0
        %v3904 = vadd.f32 %v3791, %v3903
        %3905 = vmatmul.f32.gmra.mxu0 %v3619
        %v3906 = vpop.f32.mrf.mxu0
        %v3907 = vadd.f32 %v3794, %v3906
        %3908 = vmatmul.f32.gmra.mxu0 %v3621
        %v3909 = vpop.f32.mrf.mxu0
        %v3910 = vadd.f32 %v3797, %v3909
        %3911 = vmatmul.f32.gmra.mxu0 %v3623
        %v3912 = vpop.f32.mrf.mxu0
        %v3913 = vadd.f32 %v3800, %v3912
        %3914 = vmatmul.f32.gmra.mxu0 %v3625
        %v3915 = vpop.f32.mrf.mxu0
        %v3916 = vadd.f32 %v3803, %v3915
        %3917 = vmatmul.f32.gmra.mxu0 %v3627
        %v3918 = vpop.f32.mrf.mxu0
        %v3919 = vadd.f32 %v3806, %v3918
        %3920 = vmatmul.f32.gmra.mxu0 %v3629
        %v3921 = vpop.f32.mrf.mxu0
        %v3922 = vadd.f32 %v3809, %v3921
        %3923 = vmatmul.f32.gmra.mxu0 %v3631
        %v3924 = vpop.f32.mrf.mxu0
        %v3925 = vadd.f32 %v3812, %v3924
        %3926 = vmatmul.f32.gmra.mxu0 %v3633
        %v3927 = vpop.f32.mrf.mxu0
        %v3928 = vadd.f32 %v3815, %v3927
        %3929 = vdwg.mxu0
        %3930 = vmatpush.msra.mxu0 %v3665
        %3931 = vmatpush.msra.mxu0 %v3663
        %3932 = vmatpush.msra.mxu0 %v3661
        %3933 = vmatpush.msra.mxu0 %v3659
        %3934 = vmatpush.msra.mxu0 %v3657
        %3935 = vmatpush.msra.mxu0 %v3655
        %3936 = vmatpush.msra.mxu0 %v3653
        %3937 = vmatpush.msra.mxu0 %v3651
        %3938 = vmatpush.msra.mxu0 %v3649
        %3939 = vmatpush.msra.mxu0 %v3647
        %3940 = vmatpush.msra.mxu0 %v3645
        %3941 = vmatpush.msra.mxu0 %v3643
        %3942 = vmatpush.msra.mxu0 %v3641
        %3943 = vmatpush.msra.mxu0 %v3639
        %3944 = vmatpush.msra.mxu0 %v3637
        %3945 = vmatpush.msra.mxu0 %v3635
        %3946 = vmatmul.f32.gmra.mxu0 %v3570
        %v3947 = vpop.f32.mrf.mxu0
        %v3948 = vadd.f32 %v3701, %v3947
        %3949 = vmatmul.f32.gmra.mxu0 %v3572
        %v3950 = vpop.f32.mrf.mxu0
        %v3951 = vadd.f32 %v3701, %v3950
        %3952 = vmatmul.f32.gmra.mxu0 %v3574
        %v3953 = vpop.f32.mrf.mxu0
        %v3954 = vadd.f32 %v3701, %v3953
        %3955 = vmatmul.f32.gmra.mxu0 %v3576
        %v3956 = vpop.f32.mrf.mxu0
        %v3957 = vadd.f32 %v3701, %v3956
        %3958 = vmatmul.f32.gmra.mxu0 %v3578
        %v3959 = vpop.f32.mrf.mxu0
        %v3960 = vadd.f32 %v3701, %v3959
        %3961 = vmatmul.f32.gmra.mxu0 %v3580
        %v3962 = vpop.f32.mrf.mxu0
        %v3963 = vadd.f32 %v3701, %v3962
        %3964 = vmatmul.f32.gmra.mxu0 %v3582
        %v3965 = vpop.f32.mrf.mxu0
        %v3966 = vadd.f32 %v3701, %v3965
        %3967 = vmatmul.f32.gmra.mxu0 %v3584
        %v3968 = vpop.f32.mrf.mxu0
        %v3969 = vadd.f32 %v3701, %v3968
        %3970 = vmatmul.f32.gmra.mxu0 %v3586
        %v3971 = vpop.f32.mrf.mxu0
        %v3972 = vadd.f32 %v3701, %v3971
        %3973 = vmatmul.f32.gmra.mxu0 %v3588
        %v3974 = vpop.f32.mrf.mxu0
        %v3975 = vadd.f32 %v3701, %v3974
        %3976 = vmatmul.f32.gmra.mxu0 %v3590
        %v3977 = vpop.f32.mrf.mxu0
        %v3978 = vadd.f32 %v3701, %v3977
        %3979 = vmatmul.f32.gmra.mxu0 %v3592
        %v3980 = vpop.f32.mrf.mxu0
        %v3981 = vadd.f32 %v3701, %v3980
        %3982 = vmatmul.f32.gmra.mxu0 %v3594
        %v3983 = vpop.f32.mrf.mxu0
        %v3984 = vadd.f32 %v3701, %v3983
        %3985 = vmatmul.f32.gmra.mxu0 %v3596
        %v3986 = vpop.f32.mrf.mxu0
        %v3987 = vadd.f32 %v3701, %v3986
        %3988 = vmatmul.f32.gmra.mxu0 %v3598
        %v3989 = vpop.f32.mrf.mxu0
        %v3990 = vadd.f32 %v3701, %v3989
        %3991 = vmatmul.f32.gmra.mxu0 %v3600
        %v3992 = vpop.f32.mrf.mxu0
        %v3993 = vadd.f32 %v3701, %v3992
        %3994 = vmatmul.f32.gmra.mxu0 %v3602
        %v3995 = vpop.f32.mrf.mxu0
        %v3996 = vadd.f32 %v3701, %v3995
        %3997 = vmatmul.f32.gmra.mxu0 %v3604
        %v3998 = vpop.f32.mrf.mxu0
        %v3999 = vadd.f32 %v3701, %v3998
        %4000 = vmatmul.f32.gmra.mxu0 %v3606
        %v4001 = vpop.f32.mrf.mxu0
        %v4002 = vadd.f32 %v3701, %v4001
        %4003 = vmatmul.f32.gmra.mxu0 %v3608
        %v4004 = vpop.f32.mrf.mxu0
        %v4005 = vadd.f32 %v3701, %v4004
        %4006 = vmatmul.f32.gmra.mxu0 %v3610
        %v4007 = vpop.f32.mrf.mxu0
        %v4008 = vadd.f32 %v3701, %v4007
        %4009 = vmatmul.f32.gmra.mxu0 %v3612
        %v4010 = vpop.f32.mrf.mxu0
        %v4011 = vadd.f32 %v3701, %v4010
        %4012 = vmatmul.f32.gmra.mxu0 %v3614
        %v4013 = vpop.f32.mrf.mxu0
        %v4014 = vadd.f32 %v3701, %v4013
        %4015 = vmatmul.f32.gmra.mxu0 %v3616
        %v4016 = vpop.f32.mrf.mxu0
        %v4017 = vadd.f32 %v3701, %v4016
        %4018 = vmatmul.f32.gmra.mxu0 %v3618
        %v4019 = vpop.f32.mrf.mxu0
        %v4020 = vadd.f32 %v3701, %v4019
        %4021 = vmatmul.f32.gmra.mxu0 %v3620
        %v4022 = vpop.f32.mrf.mxu0
        %v4023 = vadd.f32 %v3701, %v4022
        %4024 = vmatmul.f32.gmra.mxu0 %v3622
        %v4025 = vpop.f32.mrf.mxu0
        %v4026 = vadd.f32 %v3701, %v4025
        %4027 = vmatmul.f32.gmra.mxu0 %v3624
        %v4028 = vpop.f32.mrf.mxu0
        %v4029 = vadd.f32 %v3701, %v4028
        %4030 = vmatmul.f32.gmra.mxu0 %v3626
        %v4031 = vpop.f32.mrf.mxu0
        %v4032 = vadd.f32 %v3701, %v4031
        %4033 = vmatmul.f32.gmra.mxu0 %v3628
        %v4034 = vpop.f32.mrf.mxu0
        %v4035 = vadd.f32 %v3701, %v4034
        %4036 = vmatmul.f32.gmra.mxu0 %v3630
        %v4037 = vpop.f32.mrf.mxu0
        %v4038 = vadd.f32 %v3701, %v4037
        %4039 = vmatmul.f32.gmra.mxu0 %v3632
        %v4040 = vpop.f32.mrf.mxu0
        %v4041 = vadd.f32 %v3701, %v4040
        %4042 = vdwg.mxu0
        %4043 = vmatpush.msra.mxu0 %v3697
        %4044 = vmatpush.msra.mxu0 %v3695
        %4045 = vmatpush.msra.mxu0 %v3693
        %4046 = vmatpush.msra.mxu0 %v3691
        %4047 = vmatpush.msra.mxu0 %v3689
        %4048 = vmatpush.msra.mxu0 %v3687
        %4049 = vmatpush.msra.mxu0 %v3685
        %4050 = vmatpush.msra.mxu0 %v3683
        %4051 = vmatpush.msra.mxu0 %v3681
        %4052 = vmatpush.msra.mxu0 %v3679
        %4053 = vmatpush.msra.mxu0 %v3677
        %4054 = vmatpush.msra.mxu0 %v3675
        %4055 = vmatpush.msra.mxu0 %v3673
        %4056 = vmatpush.msra.mxu0 %v3671
        %4057 = vmatpush.msra.mxu0 %v3669
        %4058 = vmatpush.msra.mxu0 %v3667
        %4059 = vmatmul.f32.gmra.mxu0 %v3571
        %v4060 = vpop.f32.mrf.mxu0
        %v4061 = vadd.f32 %v3948, %v4060
        %4062 = vmatmul.f32.gmra.mxu0 %v3573
        %v4063 = vpop.f32.mrf.mxu0
        %v4064 = vadd.f32 %v3951, %v4063
        %4065 = vmatmul.f32.gmra.mxu0 %v3575
        %v4066 = vpop.f32.mrf.mxu0
        %v4067 = vadd.f32 %v3954, %v4066
        %4068 = vmatmul.f32.gmra.mxu0 %v3577
        %v4069 = vpop.f32.mrf.mxu0
        %v4070 = vadd.f32 %v3957, %v4069
        %4071 = vmatmul.f32.gmra.mxu0 %v3579
        %v4072 = vpop.f32.mrf.mxu0
        %v4073 = vadd.f32 %v3960, %v4072
        %4074 = vmatmul.f32.gmra.mxu0 %v3581
        %v4075 = vpop.f32.mrf.mxu0
        %v4076 = vadd.f32 %v3963, %v4075
        %4077 = vmatmul.f32.gmra.mxu0 %v3583
        %v4078 = vpop.f32.mrf.mxu0
        %v4079 = vadd.f32 %v3966, %v4078
        %4080 = vmatmul.f32.gmra.mxu0 %v3585
        %v4081 = vpop.f32.mrf.mxu0
        %v4082 = vadd.f32 %v3969, %v4081
        %4083 = vmatmul.f32.gmra.mxu0 %v3587
        %v4084 = vpop.f32.mrf.mxu0
        %v4085 = vadd.f32 %v3972, %v4084
        %4086 = vmatmul.f32.gmra.mxu0 %v3589
        %v4087 = vpop.f32.mrf.mxu0
        %v4088 = vadd.f32 %v3975, %v4087
        %4089 = vmatmul.f32.gmra.mxu0 %v3591
        %v4090 = vpop.f32.mrf.mxu0
        %v4091 = vadd.f32 %v3978, %v4090
        %4092 = vmatmul.f32.gmra.mxu0 %v3593
        %v4093 = vpop.f32.mrf.mxu0
        %v4094 = vadd.f32 %v3981, %v4093
        %4095 = vmatmul.f32.gmra.mxu0 %v3595
        %v4096 = vpop.f32.mrf.mxu0
        %v4097 = vadd.f32 %v3984, %v4096
        %4098 = vmatmul.f32.gmra.mxu0 %v3597
        %v4099 = vpop.f32.mrf.mxu0
        %v4100 = vadd.f32 %v3987, %v4099
        %4101 = vmatmul.f32.gmra.mxu0 %v3599
        %v4102 = vpop.f32.mrf.mxu0
        %v4103 = vadd.f32 %v3990, %v4102
        %4104 = vmatmul.f32.gmra.mxu0 %v3601
        %v4105 = vpop.f32.mrf.mxu0
        %v4106 = vadd.f32 %v3993, %v4105
        %4107 = vmatmul.f32.gmra.mxu0 %v3603
        %v4108 = vpop.f32.mrf.mxu0
        %v4109 = vadd.f32 %v3996, %v4108
        %4110 = vmatmul.f32.gmra.mxu0 %v3605
        %v4111 = vpop.f32.mrf.mxu0
        %v4112 = vadd.f32 %v3999, %v4111
        %4113 = vmatmul.f32.gmra.mxu0 %v3607
        %v4114 = vpop.f32.mrf.mxu0
        %v4115 = vadd.f32 %v4002, %v4114
        %4116 = vmatmul.f32.gmra.mxu0 %v3609
        %v4117 = vpop.f32.mrf.mxu0
        %v4118 = vadd.f32 %v4005, %v4117
        %4119 = vmatmul.f32.gmra.mxu0 %v3611
        %v4120 = vpop.f32.mrf.mxu0
        %v4121 = vadd.f32 %v4008, %v4120
        %4122 = vmatmul.f32.gmra.mxu0 %v3613
        %v4123 = vpop.f32.mrf.mxu0
        %v4124 = vadd.f32 %v4011, %v4123
        %4125 = vmatmul.f32.gmra.mxu0 %v3615
        %v4126 = vpop.f32.mrf.mxu0
        %v4127 = vadd.f32 %v4014, %v4126
        %4128 = vmatmul.f32.gmra.mxu0 %v3617
        %v4129 = vpop.f32.mrf.mxu0
        %v4130 = vadd.f32 %v4017, %v4129
        %4131 = vmatmul.f32.gmra.mxu0 %v3619
        %v4132 = vpop.f32.mrf.mxu0
        %v4133 = vadd.f32 %v4020, %v4132
        %4134 = vmatmul.f32.gmra.mxu0 %v3621
        %v4135 = vpop.f32.mrf.mxu0
        %v4136 = vadd.f32 %v4023, %v4135
        %4137 = vmatmul.f32.gmra.mxu0 %v3623
        %v4138 = vpop.f32.mrf.mxu0
        %v4139 = vadd.f32 %v4026, %v4138
        %4140 = vmatmul.f32.gmra.mxu0 %v3625
        %v4141 = vpop.f32.mrf.mxu0
        %v4142 = vadd.f32 %v4029, %v4141
        %4143 = vmatmul.f32.gmra.mxu0 %v3627
        %v4144 = vpop.f32.mrf.mxu0
        %v4145 = vadd.f32 %v4032, %v4144
        %4146 = vmatmul.f32.gmra.mxu0 %v3629
        %v4147 = vpop.f32.mrf.mxu0
        %v4148 = vadd.f32 %v4035, %v4147
        %4149 = vmatmul.f32.gmra.mxu0 %v3631
        %v4150 = vpop.f32.mrf.mxu0
        %v4151 = vadd.f32 %v4038, %v4150
        %4152 = vmatmul.f32.gmra.mxu0 %v3633
        %v4153 = vpop.f32.mrf.mxu0
        %v4154 = vadd.f32 %v4041, %v4153
        %4155 = vdwg.mxu0
        %vm4156 = vcmp.ge.f32.partialorder %v3835, 0.0
        %vm4157 = vcmp.ge.f32.partialorder %v4061, 0.0
        %vm4158 = vcmp.ge.f32.partialorder %v3838, 0.0
        %vm4159 = vcmp.ge.f32.partialorder %v4064, 0.0
        %vm4160 = vcmp.ge.f32.partialorder %v3841, 0.0
        %vm4161 = vcmp.ge.f32.partialorder %v4067, 0.0
        %vm4162 = vcmp.ge.f32.partialorder %v3844, 0.0
        %vm4163 = vcmp.ge.f32.partialorder %v4070, 0.0
        %vm4164 = vcmp.ge.f32.partialorder %v3847, 0.0
        %vm4165 = vcmp.ge.f32.partialorder %v4073, 0.0
        %vm4166 = vcmp.ge.f32.partialorder %v3850, 0.0
        %vm4167 = vcmp.ge.f32.partialorder %v4076, 0.0
        %vm4168 = vcmp.ge.f32.partialorder %v3853, 0.0
        %vm4169 = vcmp.ge.f32.partialorder %v4079, 0.0
        %vm4170 = vcmp.ge.f32.partialorder %v3856, 0.0
        %vm4171 = vcmp.ge.f32.partialorder %v4082, 0.0
        %vm4172 = vcmp.ge.f32.partialorder %v3859, 0.0
        %vm4173 = vcmp.ge.f32.partialorder %v4085, 0.0
        %vm4174 = vcmp.ge.f32.partialorder %v3862, 0.0
        %vm4175 = vcmp.ge.f32.partialorder %v4088, 0.0
        %vm4176 = vcmp.ge.f32.partialorder %v3865, 0.0
        %vm4177 = vcmp.ge.f32.partialorder %v4091, 0.0
        %vm4178 = vcmp.ge.f32.partialorder %v3868, 0.0
        %vm4179 = vcmp.ge.f32.partialorder %v4094, 0.0
        %vm4180 = vcmp.ge.f32.partialorder %v3871, 0.0
        %vm4181 = vcmp.ge.f32.partialorder %v4097, 0.0
        %vm4182 = vcmp.ge.f32.partialorder %v3874, 0.0
        %vm4183 = vcmp.ge.f32.partialorder %v4100, 0.0
        %vm4184 = vcmp.ge.f32.partialorder %v3877, 0.0
        %vm4185 = vcmp.ge.f32.partialorder %v4103, 0.0
        %vm4186 = vcmp.ge.f32.partialorder %v3880, 0.0
        %vm4187 = vcmp.ge.f32.partialorder %v4106, 0.0
        %vm4188 = vcmp.ge.f32.partialorder %v3883, 0.0
        %vm4189 = vcmp.ge.f32.partialorder %v4109, 0.0
        %vm4190 = vcmp.ge.f32.partialorder %v3886, 0.0
        %vm4191 = vcmp.ge.f32.partialorder %v4112, 0.0
        %vm4192 = vcmp.ge.f32.partialorder %v3889, 0.0
        %vm4193 = vcmp.ge.f32.partialorder %v4115, 0.0
        %vm4194 = vcmp.ge.f32.partialorder %v3892, 0.0
        %vm4195 = vcmp.ge.f32.partialorder %v4118, 0.0
        %vm4196 = vcmp.ge.f32.partialorder %v3895, 0.0
        %vm4197 = vcmp.ge.f32.partialorder %v4121, 0.0
        %vm4198 = vcmp.ge.f32.partialorder %v3898, 0.0
        %vm4199 = vcmp.ge.f32.partialorder %v4124, 0.0
        %vm4200 = vcmp.ge.f32.partialorder %v3901, 0.0
        %vm4201 = vcmp.ge.f32.partialorder %v4127, 0.0
        %vm4202 = vcmp.ge.f32.partialorder %v3904, 0.0
        %vm4203 = vcmp.ge.f32.partialorder %v4130, 0.0
        %vm4204 = vcmp.ge.f32.partialorder %v3907, 0.0
        %vm4205 = vcmp.ge.f32.partialorder %v4133, 0.0
        %vm4206 = vcmp.ge.f32.partialorder %v3910, 0.0
        %vm4207 = vcmp.ge.f32.partialorder %v4136, 0.0
        %vm4208 = vcmp.ge.f32.partialorder %v3913, 0.0
        %vm4209 = vcmp.ge.f32.partialorder %v4139, 0.0
        %vm4210 = vcmp.ge.f32.partialorder %v3916, 0.0
        %vm4211 = vcmp.ge.f32.partialorder %v4142, 0.0
        %vm4212 = vcmp.ge.f32.partialorder %v3919, 0.0
        %vm4213 = vcmp.ge.f32.partialorder %v4145, 0.0
        %vm4214 = vcmp.ge.f32.partialorder %v3922, 0.0
        %vm4215 = vcmp.ge.f32.partialorder %v4148, 0.0
        %vm4216 = vcmp.ge.f32.partialorder %v3925, 0.0
        %vm4217 = vcmp.ge.f32.partialorder %v4151, 0.0
        %vm4218 = vcmp.ge.f32.partialorder %v3928, 0.0
        %vm4219 = vcmp.ge.f32.partialorder %v4154, 0.0
        %v4220 = vmul.f32 %v3835, 0.2
        %v4221 = vmul.f32 %v4061, 0.2
        %v4222 = vmul.f32 %v3838, 0.2
        %v4223 = vmul.f32 %v4064, 0.2
        %v4224 = vmul.f32 %v3841, 0.2
        %v4225 = vmul.f32 %v4067, 0.2
        %v4226 = vmul.f32 %v3844, 0.2
        %v4227 = vmul.f32 %v4070, 0.2
        %v4228 = vmul.f32 %v3847, 0.2
        %v4229 = vmul.f32 %v4073, 0.2
        %v4230 = vmul.f32 %v3850, 0.2
        %v4231 = vmul.f32 %v4076, 0.2
        %v4232 = vmul.f32 %v3853, 0.2
        %v4233 = vmul.f32 %v4079, 0.2
        %v4234 = vmul.f32 %v3856, 0.2
        %v4235 = vmul.f32 %v4082, 0.2
        %v4236 = vmul.f32 %v3859, 0.2
        %v4237 = vmul.f32 %v4085, 0.2
        %v4238 = vmul.f32 %v3862, 0.2
        %v4239 = vmul.f32 %v4088, 0.2
        %v4240 = vmul.f32 %v3865, 0.2
        %v4241 = vmul.f32 %v4091, 0.2
        %v4242 = vmul.f32 %v3868, 0.2
        %v4243 = vmul.f32 %v4094, 0.2
        %v4244 = vmul.f32 %v3871, 0.2
        %v4245 = vmul.f32 %v4097, 0.2
        %v4246 = vmul.f32 %v3874, 0.2
        %v4247 = vmul.f32 %v4100, 0.2
        %v4248 = vmul.f32 %v3877, 0.2
        %v4249 = vmul.f32 %v4103, 0.2
        %v4250 = vmul.f32 %v3880, 0.2
        %v4251 = vmul.f32 %v4106, 0.2
        %v4252 = vmul.f32 %v3883, 0.2
        %v4253 = vmul.f32 %v4109, 0.2
        %v4254 = vmul.f32 %v3886, 0.2
        %v4255 = vmul.f32 %v4112, 0.2
        %v4256 = vmul.f32 %v3889, 0.2
        %v4257 = vmul.f32 %v4115, 0.2
        %v4258 = vmul.f32 %v3892, 0.2
        %v4259 = vmul.f32 %v4118, 0.2
        %v4260 = vmul.f32 %v3895, 0.2
        %v4261 = vmul.f32 %v4121, 0.2
        %v4262 = vmul.f32 %v3898, 0.2
        %v4263 = vmul.f32 %v4124, 0.2
        %v4264 = vmul.f32 %v3901, 0.2
        %v4265 = vmul.f32 %v4127, 0.2
        %v4266 = vmul.f32 %v3904, 0.2
        %v4267 = vmul.f32 %v4130, 0.2
        %v4268 = vmul.f32 %v3907, 0.2
        %v4269 = vmul.f32 %v4133, 0.2
        %v4270 = vmul.f32 %v3910, 0.2
        %v4271 = vmul.f32 %v4136, 0.2
        %v4272 = vmul.f32 %v3913, 0.2
        %v4273 = vmul.f32 %v4139, 0.2
        %v4274 = vmul.f32 %v3916, 0.2
        %v4275 = vmul.f32 %v4142, 0.2
        %v4276 = vmul.f32 %v3919, 0.2
        %v4277 = vmul.f32 %v4145, 0.2
        %v4278 = vmul.f32 %v3922, 0.2
        %v4279 = vmul.f32 %v4148, 0.2
        %v4280 = vmul.f32 %v3925, 0.2
        %v4281 = vmul.f32 %v4151, 0.2
        %v4282 = vmul.f32 %v3928, 0.2
        %v4283 = vmul.f32 %v4154, 0.2
        %v4284 = vsel %vm4156, %v3835, %v4220
        %v4285 = vsel %vm4157, %v4061, %v4221
        %v4286 = vsel %vm4158, %v3838, %v4222
        %v4287 = vsel %vm4159, %v4064, %v4223
        %v4288 = vsel %vm4160, %v3841, %v4224
        %v4289 = vsel %vm4161, %v4067, %v4225
        %v4290 = vsel %vm4162, %v3844, %v4226
        %v4291 = vsel %vm4163, %v4070, %v4227
        %v4292 = vsel %vm4164, %v3847, %v4228
        %v4293 = vsel %vm4165, %v4073, %v4229
        %v4294 = vsel %vm4166, %v3850, %v4230
        %v4295 = vsel %vm4167, %v4076, %v4231
        %v4296 = vsel %vm4168, %v3853, %v4232
        %v4297 = vsel %vm4169, %v4079, %v4233
        %v4298 = vsel %vm4170, %v3856, %v4234
        %v4299 = vsel %vm4171, %v4082, %v4235
        %v4300 = vsel %vm4172, %v3859, %v4236
        %v4301 = vsel %vm4173, %v4085, %v4237
        %v4302 = vsel %vm4174, %v3862, %v4238
        %v4303 = vsel %vm4175, %v4088, %v4239
        %v4304 = vsel %vm4176, %v3865, %v4240
        %v4305 = vsel %vm4177, %v4091, %v4241
        %v4306 = vsel %vm4178, %v3868, %v4242
        %v4307 = vsel %vm4179, %v4094, %v4243
        %v4308 = vsel %vm4180, %v3871, %v4244
        %v4309 = vsel %vm4181, %v4097, %v4245
        %v4310 = vsel %vm4182, %v3874, %v4246
        %v4311 = vsel %vm4183, %v4100, %v4247
        %v4312 = vsel %vm4184, %v3877, %v4248
        %v4313 = vsel %vm4185, %v4103, %v4249
        %v4314 = vsel %vm4186, %v3880, %v4250
        %v4315 = vsel %vm4187, %v4106, %v4251
        %v4316 = vsel %vm4188, %v3883, %v4252
        %v4317 = vsel %vm4189, %v4109, %v4253
        %v4318 = vsel %vm4190, %v3886, %v4254
        %v4319 = vsel %vm4191, %v4112, %v4255
        %v4320 = vsel %vm4192, %v3889, %v4256
        %v4321 = vsel %vm4193, %v4115, %v4257
        %v4322 = vsel %vm4194, %v3892, %v4258
        %v4323 = vsel %vm4195, %v4118, %v4259
        %v4324 = vsel %vm4196, %v3895, %v4260
        %v4325 = vsel %vm4197, %v4121, %v4261
        %v4326 = vsel %vm4198, %v3898, %v4262
        %v4327 = vsel %vm4199, %v4124, %v4263
        %v4328 = vsel %vm4200, %v3901, %v4264
        %v4329 = vsel %vm4201, %v4127, %v4265
        %v4330 = vsel %vm4202, %v3904, %v4266
        %v4331 = vsel %vm4203, %v4130, %v4267
        %v4332 = vsel %vm4204, %v3907, %v4268
        %v4333 = vsel %vm4205, %v4133, %v4269
        %v4334 = vsel %vm4206, %v3910, %v4270
        %v4335 = vsel %vm4207, %v4136, %v4271
        %v4336 = vsel %vm4208, %v3913, %v4272
        %v4337 = vsel %vm4209, %v4139, %v4273
        %v4338 = vsel %vm4210, %v3916, %v4274
        %v4339 = vsel %vm4211, %v4142, %v4275
        %v4340 = vsel %vm4212, %v3919, %v4276
        %v4341 = vsel %vm4213, %v4145, %v4277
        %v4342 = vsel %vm4214, %v3922, %v4278
        %v4343 = vsel %vm4215, %v4148, %v4279
        %v4344 = vsel %vm4216, %v3925, %v4280
        %v4345 = vsel %vm4217, %v4151, %v4281
        %v4346 = vsel %vm4218, %v3928, %v4282
        %v4347 = vsel %vm4219, %v4154, %v4283
        %v4348 = vld [vmem:[#allocation14] sm:$0xff]
        %v4349 = vld [vmem:[#allocation14 + $0x8] sm:$0xff]
        %v4350 = vld [vmem:[#allocation14 + $0x10] sm:$0xff]
        %v4351 = vld [vmem:[#allocation14 + $0x18] sm:$0xff]
        %v4352 = vld [vmem:[#allocation14 + $0x20] sm:$0xff]
        %v4353 = vld [vmem:[#allocation14 + $0x28] sm:$0xff]
        %v4354 = vld [vmem:[#allocation14 + $0x30] sm:$0xff]
        %v4355 = vld [vmem:[#allocation14 + $0x38] sm:$0xff]
        %v4356 = vld [vmem:[#allocation14 + $0x40] sm:$0xff]
        %v4357 = vld [vmem:[#allocation14 + $0x48] sm:$0xff]
        %v4358 = vld [vmem:[#allocation14 + $0x50] sm:$0xff]
        %v4359 = vld [vmem:[#allocation14 + $0x58] sm:$0xff]
        %v4360 = vld [vmem:[#allocation14 + $0x60] sm:$0xff]
        %v4361 = vld [vmem:[#allocation14 + $0x68] sm:$0xff]
        %v4362 = vld [vmem:[#allocation14 + $0x70] sm:$0xff]
        %v4363 = vld [vmem:[#allocation14 + $0x78] sm:$0xff]
        %v4364 = vld [vmem:[#allocation14 + $0x80] sm:$0xff]
        %v4365 = vld [vmem:[#allocation14 + $0x88] sm:$0xff]
        %v4366 = vld [vmem:[#allocation14 + $0x90] sm:$0xff]
        %v4367 = vld [vmem:[#allocation14 + $0x98] sm:$0xff]
        %v4368 = vld [vmem:[#allocation14 + $0xa0] sm:$0xff]
        %v4369 = vld [vmem:[#allocation14 + $0xa8] sm:$0xff]
        %v4370 = vld [vmem:[#allocation14 + $0xb0] sm:$0xff]
        %v4371 = vld [vmem:[#allocation14 + $0xb8] sm:$0xff]
        %v4372 = vld [vmem:[#allocation14 + $0xc0] sm:$0xff]
        %v4373 = vld [vmem:[#allocation14 + $0xc8] sm:$0xff]
        %v4374 = vld [vmem:[#allocation14 + $0xd0] sm:$0xff]
        %v4375 = vld [vmem:[#allocation14 + $0xd8] sm:$0xff]
        %v4376 = vld [vmem:[#allocation14 + $0xe0] sm:$0xff]
        %v4377 = vld [vmem:[#allocation14 + $0xe8] sm:$0xff]
        %v4378 = vld [vmem:[#allocation14 + $0xf0] sm:$0xff]
        %v4379 = vld [vmem:[#allocation14 + $0xf8] sm:$0xff]
        %v4380 = vld [vmem:[#allocation16] sm:$0x1]
        %v4382 = vperm.slane %v4380, 0
        %4384 = vmatpush.msra.mxu0 %v4363
        %4385 = vmatpush.msra.mxu0 %v4362
        %4386 = vmatpush.msra.mxu0 %v4361
        %4387 = vmatpush.msra.mxu0 %v4360
        %4388 = vmatpush.msra.mxu0 %v4359
        %4389 = vmatpush.msra.mxu0 %v4358
        %4390 = vmatpush.msra.mxu0 %v4357
        %4391 = vmatpush.msra.mxu0 %v4356
        %4392 = vmatpush.msra.mxu0 %v4355
        %4393 = vmatpush.msra.mxu0 %v4354
        %4394 = vmatpush.msra.mxu0 %v4353
        %4395 = vmatpush.msra.mxu0 %v4352
        %4396 = vmatpush.msra.mxu0 %v4351
        %4397 = vmatpush.msra.mxu0 %v4350
        %4398 = vmatpush.msra.mxu0 %v4349
        %4399 = vmatpush.msra.mxu0 %v4348
        %4400 = vmatmul.f32.gmra.mxu0 %v4284
        %v4401 = vpop.f32.mrf.mxu0
        %v4402 = vadd.f32 %v4382, %v4401
        %4403 = vmatmul.f32.gmra.mxu0 %v4286
        %v4404 = vpop.f32.mrf.mxu0
        %v4405 = vadd.f32 %v4382, %v4404
        %4406 = vmatmul.f32.gmra.mxu0 %v4288
        %v4407 = vpop.f32.mrf.mxu0
        %v4408 = vadd.f32 %v4382, %v4407
        %4409 = vmatmul.f32.gmra.mxu0 %v4290
        %v4410 = vpop.f32.mrf.mxu0
        %v4411 = vadd.f32 %v4382, %v4410
        %4412 = vmatmul.f32.gmra.mxu0 %v4292
        %v4413 = vpop.f32.mrf.mxu0
        %v4414 = vadd.f32 %v4382, %v4413
        %4415 = vmatmul.f32.gmra.mxu0 %v4294
        %v4416 = vpop.f32.mrf.mxu0
        %v4417 = vadd.f32 %v4382, %v4416
        %4418 = vmatmul.f32.gmra.mxu0 %v4296
        %v4419 = vpop.f32.mrf.mxu0
        %v4420 = vadd.f32 %v4382, %v4419
        %4421 = vmatmul.f32.gmra.mxu0 %v4298
        %v4422 = vpop.f32.mrf.mxu0
        %v4423 = vadd.f32 %v4382, %v4422
        %4424 = vmatmul.f32.gmra.mxu0 %v4300
        %v4425 = vpop.f32.mrf.mxu0
        %v4426 = vadd.f32 %v4382, %v4425
        %4427 = vmatmul.f32.gmra.mxu0 %v4302
        %v4428 = vpop.f32.mrf.mxu0
        %v4429 = vadd.f32 %v4382, %v4428
        %4430 = vmatmul.f32.gmra.mxu0 %v4304
        %v4431 = vpop.f32.mrf.mxu0
        %v4432 = vadd.f32 %v4382, %v4431
        %4433 = vmatmul.f32.gmra.mxu0 %v4306
        %v4434 = vpop.f32.mrf.mxu0
        %v4435 = vadd.f32 %v4382, %v4434
        %4436 = vmatmul.f32.gmra.mxu0 %v4308
        %v4437 = vpop.f32.mrf.mxu0
        %v4438 = vadd.f32 %v4382, %v4437
        %4439 = vmatmul.f32.gmra.mxu0 %v4310
        %v4440 = vpop.f32.mrf.mxu0
        %v4441 = vadd.f32 %v4382, %v4440
        %4442 = vmatmul.f32.gmra.mxu0 %v4312
        %v4443 = vpop.f32.mrf.mxu0
        %v4444 = vadd.f32 %v4382, %v4443
        %4445 = vmatmul.f32.gmra.mxu0 %v4314
        %v4446 = vpop.f32.mrf.mxu0
        %v4447 = vadd.f32 %v4382, %v4446
        %4448 = vmatmul.f32.gmra.mxu0 %v4316
        %v4449 = vpop.f32.mrf.mxu0
        %v4450 = vadd.f32 %v4382, %v4449
        %4451 = vmatmul.f32.gmra.mxu0 %v4318
        %v4452 = vpop.f32.mrf.mxu0
        %v4453 = vadd.f32 %v4382, %v4452
        %4454 = vmatmul.f32.gmra.mxu0 %v4320
        %v4455 = vpop.f32.mrf.mxu0
        %v4456 = vadd.f32 %v4382, %v4455
        %4457 = vmatmul.f32.gmra.mxu0 %v4322
        %v4458 = vpop.f32.mrf.mxu0
        %v4459 = vadd.f32 %v4382, %v4458
        %4460 = vmatmul.f32.gmra.mxu0 %v4324
        %v4461 = vpop.f32.mrf.mxu0
        %v4462 = vadd.f32 %v4382, %v4461
        %4463 = vmatmul.f32.gmra.mxu0 %v4326
        %v4464 = vpop.f32.mrf.mxu0
        %v4465 = vadd.f32 %v4382, %v4464
        %4466 = vmatmul.f32.gmra.mxu0 %v4328
        %v4467 = vpop.f32.mrf.mxu0
        %v4468 = vadd.f32 %v4382, %v4467
        %4469 = vmatmul.f32.gmra.mxu0 %v4330
        %v4470 = vpop.f32.mrf.mxu0
        %v4471 = vadd.f32 %v4382, %v4470
        %4472 = vmatmul.f32.gmra.mxu0 %v4332
        %v4473 = vpop.f32.mrf.mxu0
        %v4474 = vadd.f32 %v4382, %v4473
        %4475 = vmatmul.f32.gmra.mxu0 %v4334
        %v4476 = vpop.f32.mrf.mxu0
        %v4477 = vadd.f32 %v4382, %v4476
        %4478 = vmatmul.f32.gmra.mxu0 %v4336
        %v4479 = vpop.f32.mrf.mxu0
        %v4480 = vadd.f32 %v4382, %v4479
        %4481 = vmatmul.f32.gmra.mxu0 %v4338
        %v4482 = vpop.f32.mrf.mxu0
        %v4483 = vadd.f32 %v4382, %v4482
        %4484 = vmatmul.f32.gmra.mxu0 %v4340
        %v4485 = vpop.f32.mrf.mxu0
        %v4486 = vadd.f32 %v4382, %v4485
        %4487 = vmatmul.f32.gmra.mxu0 %v4342
        %v4488 = vpop.f32.mrf.mxu0
        %v4489 = vadd.f32 %v4382, %v4488
        %4490 = vmatmul.f32.gmra.mxu0 %v4344
        %v4491 = vpop.f32.mrf.mxu0
        %v4492 = vadd.f32 %v4382, %v4491
        %4493 = vmatmul.f32.gmra.mxu0 %v4346
        %v4494 = vpop.f32.mrf.mxu0
        %v4495 = vadd.f32 %v4382, %v4494
        %4496 = vdwg.mxu0
        %4497 = vmatpush.msra.mxu0 %v4379
        %4498 = vmatpush.msra.mxu0 %v4378
        %4499 = vmatpush.msra.mxu0 %v4377
        %4500 = vmatpush.msra.mxu0 %v4376
        %4501 = vmatpush.msra.mxu0 %v4375
        %4502 = vmatpush.msra.mxu0 %v4374
        %4503 = vmatpush.msra.mxu0 %v4373
        %4504 = vmatpush.msra.mxu0 %v4372
        %4505 = vmatpush.msra.mxu0 %v4371
        %4506 = vmatpush.msra.mxu0 %v4370
        %4507 = vmatpush.msra.mxu0 %v4369
        %4508 = vmatpush.msra.mxu0 %v4368
        %4509 = vmatpush.msra.mxu0 %v4367
        %4510 = vmatpush.msra.mxu0 %v4366
        %4511 = vmatpush.msra.mxu0 %v4365
        %4512 = vmatpush.msra.mxu0 %v4364
        %4513 = vmatmul.f32.gmra.mxu0 %v4285
        %v4514 = vpop.f32.mrf.mxu0
        %v4515 = vadd.f32 %v4402, %v4514
        %4516 = vmatmul.f32.gmra.mxu0 %v4287
        %v4517 = vpop.f32.mrf.mxu0
        %v4518 = vadd.f32 %v4405, %v4517
        %4519 = vmatmul.f32.gmra.mxu0 %v4289
        %v4520 = vpop.f32.mrf.mxu0
        %v4521 = vadd.f32 %v4408, %v4520
        %4522 = vmatmul.f32.gmra.mxu0 %v4291
        %v4523 = vpop.f32.mrf.mxu0
        %v4524 = vadd.f32 %v4411, %v4523
        %4525 = vmatmul.f32.gmra.mxu0 %v4293
        %v4526 = vpop.f32.mrf.mxu0
        %v4527 = vadd.f32 %v4414, %v4526
        %4528 = vmatmul.f32.gmra.mxu0 %v4295
        %v4529 = vpop.f32.mrf.mxu0
        %v4530 = vadd.f32 %v4417, %v4529
        %4531 = vmatmul.f32.gmra.mxu0 %v4297
        %v4532 = vpop.f32.mrf.mxu0
        %v4533 = vadd.f32 %v4420, %v4532
        %4534 = vmatmul.f32.gmra.mxu0 %v4299
        %v4535 = vpop.f32.mrf.mxu0
        %v4536 = vadd.f32 %v4423, %v4535
        %4537 = vmatmul.f32.gmra.mxu0 %v4301
        %v4538 = vpop.f32.mrf.mxu0
        %v4539 = vadd.f32 %v4426, %v4538
        %4540 = vmatmul.f32.gmra.mxu0 %v4303
        %v4541 = vpop.f32.mrf.mxu0
        %v4542 = vadd.f32 %v4429, %v4541
        %4543 = vmatmul.f32.gmra.mxu0 %v4305
        %v4544 = vpop.f32.mrf.mxu0
        %v4545 = vadd.f32 %v4432, %v4544
        %4546 = vmatmul.f32.gmra.mxu0 %v4307
        %v4547 = vpop.f32.mrf.mxu0
        %v4548 = vadd.f32 %v4435, %v4547
        %4549 = vmatmul.f32.gmra.mxu0 %v4309
        %v4550 = vpop.f32.mrf.mxu0
        %v4551 = vadd.f32 %v4438, %v4550
        %4552 = vmatmul.f32.gmra.mxu0 %v4311
        %v4553 = vpop.f32.mrf.mxu0
        %v4554 = vadd.f32 %v4441, %v4553
        %4555 = vmatmul.f32.gmra.mxu0 %v4313
        %v4556 = vpop.f32.mrf.mxu0
        %v4557 = vadd.f32 %v4444, %v4556
        %4558 = vmatmul.f32.gmra.mxu0 %v4315
        %v4559 = vpop.f32.mrf.mxu0
        %v4560 = vadd.f32 %v4447, %v4559
        %4561 = vmatmul.f32.gmra.mxu0 %v4317
        %v4562 = vpop.f32.mrf.mxu0
        %v4563 = vadd.f32 %v4450, %v4562
        %4564 = vmatmul.f32.gmra.mxu0 %v4319
        %v4565 = vpop.f32.mrf.mxu0
        %v4566 = vadd.f32 %v4453, %v4565
        %4567 = vmatmul.f32.gmra.mxu0 %v4321
        %v4568 = vpop.f32.mrf.mxu0
        %v4569 = vadd.f32 %v4456, %v4568
        %4570 = vmatmul.f32.gmra.mxu0 %v4323
        %v4571 = vpop.f32.mrf.mxu0
        %v4572 = vadd.f32 %v4459, %v4571
        %4573 = vmatmul.f32.gmra.mxu0 %v4325
        %v4574 = vpop.f32.mrf.mxu0
        %v4575 = vadd.f32 %v4462, %v4574
        %4576 = vmatmul.f32.gmra.mxu0 %v4327
        %v4577 = vpop.f32.mrf.mxu0
        %v4578 = vadd.f32 %v4465, %v4577
        %4579 = vmatmul.f32.gmra.mxu0 %v4329
        %v4580 = vpop.f32.mrf.mxu0
        %v4581 = vadd.f32 %v4468, %v4580
        %4582 = vmatmul.f32.gmra.mxu0 %v4331
        %v4583 = vpop.f32.mrf.mxu0
        %v4584 = vadd.f32 %v4471, %v4583
        %4585 = vmatmul.f32.gmra.mxu0 %v4333
        %v4586 = vpop.f32.mrf.mxu0
        %v4587 = vadd.f32 %v4474, %v4586
        %4588 = vmatmul.f32.gmra.mxu0 %v4335
        %v4589 = vpop.f32.mrf.mxu0
        %v4590 = vadd.f32 %v4477, %v4589
        %4591 = vmatmul.f32.gmra.mxu0 %v4337
        %v4592 = vpop.f32.mrf.mxu0
        %v4593 = vadd.f32 %v4480, %v4592
        %4594 = vmatmul.f32.gmra.mxu0 %v4339
        %v4595 = vpop.f32.mrf.mxu0
        %v4596 = vadd.f32 %v4483, %v4595
        %4597 = vmatmul.f32.gmra.mxu0 %v4341
        %v4598 = vpop.f32.mrf.mxu0
        %v4599 = vadd.f32 %v4486, %v4598
        %4600 = vmatmul.f32.gmra.mxu0 %v4343
        %v4601 = vpop.f32.mrf.mxu0
        %v4602 = vadd.f32 %v4489, %v4601
        %4603 = vmatmul.f32.gmra.mxu0 %v4345
        %v4604 = vpop.f32.mrf.mxu0
        %v4605 = vadd.f32 %v4492, %v4604
        %4606 = vmatmul.f32.gmra.mxu0 %v4347
        %v4607 = vpop.f32.mrf.mxu0
        %v4608 = vadd.f32 %v4495, %v4607
        %4609 = vdwg.mxu0
        %4610 = vst [vmem:[%s671] sm:$0xff] %v4515
        %4611 = vst [vmem:[%s671 + $0x8] sm:$0xff] %v4518
        %4612 = vst [vmem:[%s671 + $0x10] sm:$0xff] %v4521
        %4613 = vst [vmem:[%s671 + $0x18] sm:$0xff] %v4524
        %4614 = vst [vmem:[%s671 + $0x20] sm:$0xff] %v4527
        %4615 = vst [vmem:[%s671 + $0x28] sm:$0xff] %v4530
        %4616 = vst [vmem:[%s671 + $0x30] sm:$0xff] %v4533
        %4617 = vst [vmem:[%s671 + $0x38] sm:$0xff] %v4536
        %4618 = vst [vmem:[%s671 + $0x40] sm:$0xff] %v4539
        %4619 = vst [vmem:[%s671 + $0x48] sm:$0xff] %v4542
        %4620 = vst [vmem:[%s671 + $0x50] sm:$0xff] %v4545
        %4621 = vst [vmem:[%s671 + $0x58] sm:$0xff] %v4548
        %4622 = vst [vmem:[%s671 + $0x60] sm:$0xff] %v4551
        %4623 = vst [vmem:[%s671 + $0x68] sm:$0xff] %v4554
        %4624 = vst [vmem:[%s671 + $0x70] sm:$0xff] %v4557
        %4625 = vst [vmem:[%s671 + $0x78] sm:$0xff] %v4560
        %4626 = vst [vmem:[%s671 + $0x80] sm:$0xff] %v4563
        %4627 = vst [vmem:[%s671 + $0x88] sm:$0xff] %v4566
        %4628 = vst [vmem:[%s671 + $0x90] sm:$0xff] %v4569
        %4629 = vst [vmem:[%s671 + $0x98] sm:$0xff] %v4572
        %4630 = vst [vmem:[%s671 + $0xa0] sm:$0xff] %v4575
        %4631 = vst [vmem:[%s671 + $0xa8] sm:$0xff] %v4578
        %4632 = vst [vmem:[%s671 + $0xb0] sm:$0xff] %v4581
        %4633 = vst [vmem:[%s671 + $0xb8] sm:$0xff] %v4584
        %4634 = vst [vmem:[%s671 + $0xc0] sm:$0xff] %v4587
        %4635 = vst [vmem:[%s671 + $0xc8] sm:$0xff] %v4590
        %4636 = vst [vmem:[%s671 + $0xd0] sm:$0xff] %v4593
        %4637 = vst [vmem:[%s671 + $0xd8] sm:$0xff] %v4596
        %4638 = vst [vmem:[%s671 + $0xe0] sm:$0xff] %v4599
        %4639 = vst [vmem:[%s671 + $0xe8] sm:$0xff] %v4602
        %4640 = vst [vmem:[%s671 + $0xf0] sm:$0xff] %v4605
        %4641 = vst [vmem:[%s671 + $0xf8] sm:$0xff] %v4608
        %s4642 = sand.u32 %s348, 1
        %s4643 = scalar_lea.sflag [#allocation4], %s4642
        %s4644 = sand.u32 %s348, 1
        %s4645 = smul.addr %s4644, 256
        %s4646 = scalar_lea.vmem [#allocation17], %s4645
        %s4647 = smul.u32 32, %s36
        %p4648 = scmp.lt.s32.totalorder %s4647, 63
        %s4649 = scalar_select %p4648, %s4647, 63
        %s4650 = smul.addr %s4649, 2
        %s4651 = smul.addr %s4650, 8
        %s4652 = scalar_lea.vmem %s15, %s4651
        %s4653 = smul.u32 32, %s36
        %p4654 = scmp.lt.s32.totalorder %s4653, 63
        %s4655 = scalar_select %p4654, %s4653, 63
        %s4656 = smul.addr %s4655, 2
        %s4657 = smul.addr %s4656, 8
        %s4658 = scalar_lea.vmem %s16, %s4657
        // Predicated region
        $region113: #{mog_vae_forward.1} parent=75 // pred_check
          %p4659 = pneg %p358
        $region114: #{mog_vae_forward.1} parent=75 // pred_check_branch
          %4661 = sbr.rel (%p4659) target = $region116
        $region115: #{mog_vae_forward.1} parent=75 // pred_region
          %s4662 = smul.u32 32, %s36
          %4664 = vsyncadd %s4643, 0
          %s4665 = smul.addr %s4662, 8
          %s4666 = scalar_lea.hbm %s14, %s4665
          %s4667 = sshll.u32 %s4646, 4
          %s4668 = int_to_ptr.vmem [resolvable:$true] %s4667
          %s4669 = sshll.u32 %s4666, 4
          %s4670 = int_to_ptr.hbm [resolvable:$true] %s4669
          %4675 = dma.vmem_to_hbm [thread:$0]  %s4668, 4096, %s4670, %s4643, 128, 128, 8
        $region116: #{mog_vae_forward.1} parent=75 // pred_fallthru
          _
        // Predicated region
        $region117: #{mog_vae_forward.1} parent=75 // pred_check
          %p4676 = pneg %p384
        $region118: #{mog_vae_forward.1} parent=75 // pred_check_branch
          %4678 = sbr.rel (%p4676) target = $region120
        $region119: #{mog_vae_forward.1} parent=75 // pred_region
          %s4679 = smul.u32 32, %s36
        $region120: #{mog_vae_forward.1} parent=75 // pred_fallthru
          _
        // Predicated region
        $region121: #{mog_vae_forward.1} parent=75 // pred_check
          %p4680 = pneg %p410
        $region122: #{mog_vae_forward.1} parent=75 // pred_check_branch
          %4682 = sbr.rel (%p4680) target = $region124
        $region123: #{mog_vae_forward.1} parent=75 // pred_region
          %s4683 = smul.u32 32, %s36
        $region124: #{mog_vae_forward.1} parent=75 // pred_fallthru
          _
      $region76: #{mog_vae_forward.1} parent=5 // pred_fallthru
        _
      %p4684 = scmp.le.s32.totalorder 2, %s31
      // Predicated region
      $region125: #{mog_vae_forward.1} parent=5 // pred_check
        %p4685 = pneg %p4684
      $region126: #{mog_vae_forward.1} parent=5 // pred_check_branch
        %4687 = sbr.rel (%p4685) target = $region128
      $region127: #{mog_vae_forward.1} parent=5 // pred_region
        %s4688 = ssub.s32 %s31, 2
        // Predicated region
        $region129: #{mog_vae_forward.1} parent=127 // pred_check
          %p4689 = pneg %p364
        $region130: #{mog_vae_forward.1} parent=127 // pred_check_branch
          %4691 = sbr.rel (%p4689) target = $region132
        $region131: #{mog_vae_forward.1} parent=127 // pred_region
          %s4692 = sand.u32 %s349, 1
          %s4693 = scalar_lea.sflag [#allocation4], %s4692
          %s4694 = sand.u32 %s349, 1
          %s4695 = smul.addr %s4694, 256
          %s4696 = scalar_lea.vmem [#allocation17], %s4695
          %4698 = dma.done %s4693, 4096
        $region132: #{mog_vae_forward.1} parent=127 // pred_fallthru
          _
        // Predicated region
        $region133: #{mog_vae_forward.1} parent=127 // pred_check
          %p4699 = pneg %p390
        $region134: #{mog_vae_forward.1} parent=127 // pred_check_branch
          %4701 = sbr.rel (%p4699) target = $region136
        $region135: #{mog_vae_forward.1} parent=127 // pred_region
          %s4702 = smul.u32 32, %s37
          %p4703 = scmp.lt.s32.totalorder %s4702, 63
          %s4704 = scalar_select %p4703, %s4702, 63
          %s4705 = smul.addr %s4704, 2
          %s4706 = smul.addr %s4705, 8
          %s4707 = scalar_lea.vmem %s15, %s4706
        $region136: #{mog_vae_forward.1} parent=127 // pred_fallthru
          _
        // Predicated region
        $region137: #{mog_vae_forward.1} parent=127 // pred_check
          %p4708 = pneg %p416
        $region138: #{mog_vae_forward.1} parent=127 // pred_check_branch
          %4710 = sbr.rel (%p4708) target = $region140
        $region139: #{mog_vae_forward.1} parent=127 // pred_region
          %s4711 = smul.u32 32, %s37
          %p4712 = scmp.lt.s32.totalorder %s4711, 63
          %s4713 = scalar_select %p4712, %s4711, 63
          %s4714 = smul.addr %s4713, 2
          %s4715 = smul.addr %s4714, 8
          %s4716 = scalar_lea.vmem %s16, %s4715
        $region140: #{mog_vae_forward.1} parent=127 // pred_fallthru
          _
      $region128: #{mog_vae_forward.1} parent=5 // pred_fallthru
        _
    $region6: #{mog_vae_forward.1} parent=1 // loop_footer
      %s35 = sadd.s32 1, %s31
    $region7: #{mog_vae_forward.1} parent=1 // loop_footer_branch
      %30 = sbr.rel target = $region3
    $region8: #{mog_vae_forward.1} parent=1 // loop_exit
      _
    %4717 = vsyncpa [#allocation3], 1
    %s4718 = scalar_lea.sflag [#allocation3], 1
    %4719 = vsyncpa %s4718, 1
    %4720 = vsyncpa [#allocation6], 1
    %4721 = vsyncpa [#allocation9], 1
    %4722 = vsyncpa [#allocation12], 1
    %4723 = vsyncpa [#allocation15], 1
    %4724 = vsyncpa [#allocation4], 1
    %s4725 = scalar_lea.sflag [#allocation4], 1
    %4726 = vsyncpa %s4725, 1

</llo_original>
